<compile_context>
chip_gen: v7x
topology: tpu7x:2x2x1
jax: 0.10.0
libtpu: 0.0.40
codegen_flags: <defaults>
</compile_context>

<pallas_src>
import jax
import jax.numpy as jnp
from jax import lax
from jax.experimental import pallas as pl
from jax.experimental.pallas import tpu as pltpu

H_DIM = 400      # logical hidden size (PyTorch h_dim)
H_PAD = 512      # padded to 4*128 lanes
IN_DIM = 2
W4_ROWS = 8      # sublane-padded row count for the transposed last-layer weight


def _round_up(x, m):
    return (x + m - 1) // m * m


def _discriminator_kernel(x_ref,
                          w1_ref, b1_ref,
                          w2_ref, b2_ref,
                          w3_ref, b3_ref,
                          w4_ref, b4_ref,
                          o_ref):
    # ---- layer 1: Linear(2 -> H) on the VPU (K=2 is too small for the MXU) ----
    x0 = x_ref[:, 0:1].astype(jnp.float32)                 # (T, 1)
    x1 = x_ref[:, 1:2].astype(jnp.float32)                 # (T, 1)
    h = x0 * w1_ref[0:1, :] + x1 * w1_ref[1:2, :] + b1_ref[...]   # (T, H_PAD)
    h = jnp.maximum(h, 0.0)

    # ---- layers 2 & 3: H x H MXU matmuls, bf16 inputs / f32 accumulation ----
    h = jnp.dot(h.astype(jnp.bfloat16), w2_ref[...],
                preferred_element_type=jnp.float32) + b2_ref[...]
    h = jnp.maximum(h, 0.0)

    h = jnp.dot(h.astype(jnp.bfloat16), w3_ref[...],
                preferred_element_type=jnp.float32) + b3_ref[...]
    h = jnp.maximum(h, 0.0)

    # ---- layer 4: Linear(H -> 1) as w4 @ h^T -> lane-dense (1, T) logit row ----
    # w4_ref is (8, H_PAD) with only row 0 meaningful (rows 1..7 are zero).
    logits = lax.dot_general(
        w4_ref[...], h.astype(jnp.bfloat16),
        dimension_numbers=(((1,), (1,)), ((), ())),
        preferred_element_type=jnp.float32)                # (8, T)
    logit_row = logits[0:1, :] + b4_ref[...]               # (1, T)
    o_ref[...] = jax.nn.sigmoid(logit_row).astype(o_ref.dtype)


def pack_params(params):
    """Pad / transpose / cast logical params for the kernel.

    Logical params: weights stored as (in_features, out_features) f32,
    biases as (out_features,) f32 (equivalent to PyTorch's x @ W.T + b).
    """
    (w1, b1), (w2, b2), (w3, b3), (w4, b4) = params

    def pad_to(a, shape):
        out = jnp.zeros(shape, a.dtype)
        return out.at[:a.shape[0], :a.shape[1]].set(a)

    w1p = pad_to(w1, (IN_DIM, H_PAD)).astype(jnp.float32)            # (2, 512)
    b1p = pad_to(b1.reshape(1, -1), (1, H_PAD)).astype(jnp.float32)
    w2p = pad_to(w2, (H_PAD, H_PAD)).astype(jnp.bfloat16)            # (512, 512)
    b2p = pad_to(b2.reshape(1, -1), (1, H_PAD)).astype(jnp.float32)
    w3p = pad_to(w3, (H_PAD, H_PAD)).astype(jnp.bfloat16)            # (512, 512)
    b3p = pad_to(b3.reshape(1, -1), (1, H_PAD)).astype(jnp.float32)
    w4p = pad_to(w4.T, (W4_ROWS, H_PAD)).astype(jnp.bfloat16)        # (8, 512)
    b4p = b4.reshape(1, 1).astype(jnp.float32)                       # (1, 1)
    return (w1p, b1p, w2p, b2p, w3p, b3p, w4p, b4p)


def discriminator_forward(x, params, *, batch_tile=256):
    """x: (B, 2) float32.  Returns (B,) float32, matching output.view(-1)."""
    B = x.shape[0]
    packed = pack_params(params)
    w1p, b1p, w2p, b2p, w3p, b3p, w4p, b4p = packed

    # Lane/sublane-aligned batch tile; pad the batch up to a tile multiple.
    tile = _round_up(min(batch_tile, _round_up(max(B, 1), 128)), 128)
    B_pad = _round_up(B, tile)
    if B_pad != B:
        x = jnp.pad(x, ((0, B_pad - B), (0, 0)))
    grid = (B_pad // tile,)

    def full(a):
        return pl.BlockSpec(a.shape, lambda i: (0, 0))

    out = pl.pallas_call(
        _discriminator_kernel,
        out_shape=jax.ShapeDtypeStruct((1, B_pad), jnp.float32),
        grid_spec=pltpu.PrefetchScalarGridSpec(
            num_scalar_prefetch=0,
            grid=grid,
            in_specs=[
                pl.BlockSpec((tile, IN_DIM), lambda i: (i, 0)),   # x tile
                full(w1p), full(b1p),
                full(w2p), full(b2p),
                full(w3p), full(b3p),
                full(w4p), full(b4p),
            ],
            out_specs=pl.BlockSpec((1, tile), lambda i: (0, i)),  # lane-dense row
        ),
        compiler_params=pltpu.CompilerParams(
            dimension_semantics=("parallel",)),
    )(x, *packed)

    return out.reshape(-1)[:B]


def init_params(key):
    """Deterministic init mirroring nn.Linear (weights stored as (in, out))."""
    dims = [(IN_DIM, H_DIM), (H_DIM, H_DIM), (H_DIM, H_DIM), (H_DIM, 1)]
    params = []
    for fan_in, fan_out in dims:
        key, kw, kb = jax.random.split(key, 3)
        bound = 1.0 / jnp.sqrt(fan_in)
        w = jax.random.uniform(kw, (fan_in, fan_out), jnp.float32, -bound, bound)
        b = jax.random.uniform(kb, (fan_out,), jnp.float32, -bound, bound)
        params.append((w, b))
    return params


def reference_forward(x, params):
    """Pure-JAX f32 reference identical to the PyTorch module."""
    h = x
    for i, (w, b) in enumerate(params):
        h = h @ w + b
        if i < len(params) - 1:
            h = jnp.maximum(h, 0.0)
    return jax.nn.sigmoid(h).reshape(-1)


if __name__ == "__main__":
    key = jax.random.PRNGKey(0)
    key, kx = jax.random.split(key)

    B = 300  # deliberately not tile-aligned: exercises batch padding + 2 grid steps
    x = jax.random.normal(kx, (B, IN_DIM), jnp.float32)
    params = init_params(key)

    out = discriminator_forward(x, params, batch_tile=256)
    out = jax.block_until_ready(out)

    ref = reference_forward(x, params)
    assert out.shape == (B,)
    max_err = float(jnp.max(jnp.abs(out - ref)))
    # bf16 MXU matmuls with f32 accumulation: loosen tolerance vs f32 reference.
    assert max_err < 1e-2, f"mismatch vs. reference: max abs err = {max_err}"

    print("KERNEL_OK")
</pallas_src>

<mosaic_0001>
module attributes {stable_mosaic.version = 11 : i64} {
  func.func @_discriminator_kernel(%arg0: i32, %arg1: memref<256x2xf32, #tpu.memory_space<vmem>>, %arg2: memref<2x512xf32, #tpu.memory_space<vmem>>, %arg3: memref<1x512xf32, #tpu.memory_space<vmem>>, %arg4: memref<512x512xbf16, #tpu.memory_space<vmem>>, %arg5: memref<1x512xf32, #tpu.memory_space<vmem>>, %arg6: memref<512x512xbf16, #tpu.memory_space<vmem>>, %arg7: memref<1x512xf32, #tpu.memory_space<vmem>>, %arg8: memref<8x512xbf16, #tpu.memory_space<vmem>>, %arg9: memref<1x1xf32, #tpu.memory_space<vmem>>, %arg10: memref<1x256xf32, #tpu.memory_space<vmem>>) attributes {dimension_semantics = [#tpu.dimension_semantics<parallel>], iteration_bounds = array<i64: 2>, scalar_prefetch = 0 : i64, scratch_operands = 0 : i64, tpu.core_type = #tpu.core_type<tc>, window_params = [{transform_indices = @transform_0, window_bounds = array<i64: 256, 2>}, {pipeline_mode = #tpu.pipeline_mode<synchronous>, transform_indices = @transform_1, window_bounds = array<i64: 2, 512>}, {pipeline_mode = #tpu.pipeline_mode<synchronous>, transform_indices = @transform_2, window_bounds = array<i64: 1, 512>}, {pipeline_mode = #tpu.pipeline_mode<synchronous>, transform_indices = @transform_3, window_bounds = array<i64: 512, 512>}, {pipeline_mode = #tpu.pipeline_mode<synchronous>, transform_indices = @transform_4, window_bounds = array<i64: 1, 512>}, {pipeline_mode = #tpu.pipeline_mode<synchronous>, transform_indices = @transform_5, window_bounds = array<i64: 512, 512>}, {pipeline_mode = #tpu.pipeline_mode<synchronous>, transform_indices = @transform_6, window_bounds = array<i64: 1, 512>}, {pipeline_mode = #tpu.pipeline_mode<synchronous>, transform_indices = @transform_7, window_bounds = array<i64: 8, 512>}, {pipeline_mode = #tpu.pipeline_mode<synchronous>, transform_indices = @transform_8, window_bounds = array<i64: 1, 1>}, {transform_indices = @transform_9, window_bounds = array<i64: 1, 256>}]} {
    %c0 = arith.constant 0 : index
    %c0_0 = arith.constant 0 : index
    %0 = vector.load %arg1[%c0, %c0_0] : memref<256x2xf32, #tpu.memory_space<vmem>>, vector<256x1xf32>
    %c0_1 = arith.constant 0 : index
    %c1 = arith.constant 1 : index
    %1 = vector.load %arg1[%c0_1, %c1] : memref<256x2xf32, #tpu.memory_space<vmem>>, vector<256x1xf32>
    %c0_2 = arith.constant 0 : index
    %c0_3 = arith.constant 0 : index
    %2 = vector.load %arg2[%c0_2, %c0_3] : memref<2x512xf32, #tpu.memory_space<vmem>>, vector<1x512xf32>
    %3 = vector.broadcast %0 : vector<256x1xf32> to vector<256x512xf32>
    %4 = vector.broadcast %2 : vector<1x512xf32> to vector<256x512xf32>
    %5 = arith.mulf %3, %4 : vector<256x512xf32>
    %c1_4 = arith.constant 1 : index
    %c0_5 = arith.constant 0 : index
    %6 = vector.load %arg2[%c1_4, %c0_5] : memref<2x512xf32, #tpu.memory_space<vmem>>, vector<1x512xf32>
    %7 = vector.broadcast %1 : vector<256x1xf32> to vector<256x512xf32>
    %8 = vector.broadcast %6 : vector<1x512xf32> to vector<256x512xf32>
    %9 = arith.mulf %7, %8 : vector<256x512xf32>
    %10 = arith.addf %5, %9 : vector<256x512xf32>
    %c0_6 = arith.constant 0 : index
    %c0_7 = arith.constant 0 : index
    %11 = vector.load %arg3[%c0_6, %c0_7] : memref<1x512xf32, #tpu.memory_space<vmem>>, vector<1x512xf32>
    %12 = vector.broadcast %11 : vector<1x512xf32> to vector<256x512xf32>
    %13 = arith.addf %10, %12 : vector<256x512xf32>
    %cst = arith.constant 0.000000e+00 : f32
    %14 = vector.broadcast %cst : f32 to vector<256x512xf32>
    %15 = arith.maximumf %13, %14 : vector<256x512xf32>
    %16 = arith.truncf %15 : vector<256x512xf32> to vector<256x512xbf16>
    %c0_8 = arith.constant 0 : index
    %c0_9 = arith.constant 0 : index
    %17 = vector.load %arg4[%c0_8, %c0_9] : memref<512x512xbf16, #tpu.memory_space<vmem>>, vector<512x512xbf16>
    %cst_10 = arith.constant dense<0.000000e+00> : vector<256x512xf32>
    %18 = tpu.matmul %16, %17, %cst_10 {dimension_numbers = #tpu.dot_dimension_numbers<[1], [0], [0], [1], [0, 0, 1, 1], [], []>} : vector<256x512xbf16>, vector<512x512xbf16>, vector<256x512xf32> -> vector<256x512xf32>
    %c0_11 = arith.constant 0 : index
    %c0_12 = arith.constant 0 : index
    %19 = vector.load %arg5[%c0_11, %c0_12] : memref<1x512xf32, #tpu.memory_space<vmem>>, vector<1x512xf32>
    %20 = vector.broadcast %19 : vector<1x512xf32> to vector<256x512xf32>
    %21 = arith.addf %18, %20 : vector<256x512xf32>
    %cst_13 = arith.constant 0.000000e+00 : f32
    %22 = vector.broadcast %cst_13 : f32 to vector<256x512xf32>
    %23 = arith.maximumf %21, %22 : vector<256x512xf32>
    %24 = arith.truncf %23 : vector<256x512xf32> to vector<256x512xbf16>
    %c0_14 = arith.constant 0 : index
    %c0_15 = arith.constant 0 : index
    %25 = vector.load %arg6[%c0_14, %c0_15] : memref<512x512xbf16, #tpu.memory_space<vmem>>, vector<512x512xbf16>
    %cst_16 = arith.constant dense<0.000000e+00> : vector<256x512xf32>
    %26 = tpu.matmul %24, %25, %cst_16 {dimension_numbers = #tpu.dot_dimension_numbers<[1], [0], [0], [1], [0, 0, 1, 1], [], []>} : vector<256x512xbf16>, vector<512x512xbf16>, vector<256x512xf32> -> vector<256x512xf32>
    %c0_17 = arith.constant 0 : index
    %c0_18 = arith.constant 0 : index
    %27 = vector.load %arg7[%c0_17, %c0_18] : memref<1x512xf32, #tpu.memory_space<vmem>>, vector<1x512xf32>
    %28 = vector.broadcast %27 : vector<1x512xf32> to vector<256x512xf32>
    %29 = arith.addf %26, %28 : vector<256x512xf32>
    %cst_19 = arith.constant 0.000000e+00 : f32
    %30 = vector.broadcast %cst_19 : f32 to vector<256x512xf32>
    %31 = arith.maximumf %29, %30 : vector<256x512xf32>
    %c0_20 = arith.constant 0 : index
    %c0_21 = arith.constant 0 : index
    %32 = vector.load %arg8[%c0_20, %c0_21] : memref<8x512xbf16, #tpu.memory_space<vmem>>, vector<8x512xbf16>
    %33 = arith.truncf %31 : vector<256x512xf32> to vector<256x512xbf16>
    %cst_22 = arith.constant dense<0.000000e+00> : vector<8x256xf32>
    %34 = tpu.matmul %32, %33, %cst_22 {dimension_numbers = #tpu.dot_dimension_numbers<[1], [1], [0], [0], [0, 0, 1, 0], [], []>} : vector<8x512xbf16>, vector<256x512xbf16>, vector<8x256xf32> -> vector<8x256xf32>
    %35 = vector.extract_strided_slice %34 {offsets = [0, 0], sizes = [1, 256], strides = [1, 1]} : vector<8x256xf32> to vector<1x256xf32>
    %c0_23 = arith.constant 0 : index
    %c0_24 = arith.constant 0 : index
    %36 = vector.load %arg9[%c0_23, %c0_24] : memref<1x1xf32, #tpu.memory_space<vmem>>, vector<1x1xf32>
    %37 = vector.broadcast %36 : vector<1x1xf32> to vector<1x256xf32>
    %38 = arith.addf %35, %37 : vector<1x256xf32>
    %39 = arith.negf %38 : vector<1x256xf32>
    %40 = math.exp %39 : vector<1x256xf32>
    %cst_25 = arith.constant 1.000000e+00 : f32
    %41 = vector.broadcast %cst_25 : f32 to vector<1x256xf32>
    %42 = arith.addf %41, %40 : vector<1x256xf32>
    %43 = arith.divf %41, %42 : vector<1x256xf32>
    %c0_26 = arith.constant 0 : index
    %c0_27 = arith.constant 0 : index
    %44 = vector.load %arg10[%c0_26, %c0_27] : memref<1x256xf32, #tpu.memory_space<vmem>>, vector<1x256xf32>
    tpu.vector_store %arg10[%c0_26, %c0_27], %43 {strides = array<i32>} : memref<1x256xf32, #tpu.memory_space<vmem>>, vector<1x256xf32>,
    return
  }
  func.func @transform_0(%arg0: i32) -> (i32, i32) {
    %c0_i32 = arith.constant 0 : i32
    %c0_i32_0 = arith.constant 0 : i32
    return %arg0, %c0_i32 : i32, i32
  }
  func.func @transform_1(%arg0: i32) -> (i32, i32) {
    %c0_i32 = arith.constant 0 : i32
    %c0_i32_0 = arith.constant 0 : i32
    %c0_i32_1 = arith.constant 0 : i32
    return %c0_i32, %c0_i32_0 : i32, i32
  }
  func.func @transform_2(%arg0: i32) -> (i32, i32) {
    %c0_i32 = arith.constant 0 : i32
    %c0_i32_0 = arith.constant 0 : i32
    %c0_i32_1 = arith.constant 0 : i32
    return %c0_i32, %c0_i32_0 : i32, i32
  }
  func.func @transform_3(%arg0: i32) -> (i32, i32) {
    %c0_i32 = arith.constant 0 : i32
    %c0_i32_0 = arith.constant 0 : i32
    %c0_i32_1 = arith.constant 0 : i32
    return %c0_i32, %c0_i32_0 : i32, i32
  }
  func.func @transform_4(%arg0: i32) -> (i32, i32) {
    %c0_i32 = arith.constant 0 : i32
    %c0_i32_0 = arith.constant 0 : i32
    %c0_i32_1 = arith.constant 0 : i32
    return %c0_i32, %c0_i32_0 : i32, i32
  }
  func.func @transform_5(%arg0: i32) -> (i32, i32) {
    %c0_i32 = arith.constant 0 : i32
    %c0_i32_0 = arith.constant 0 : i32
    %c0_i32_1 = arith.constant 0 : i32
    return %c0_i32, %c0_i32_0 : i32, i32
  }
  func.func @transform_6(%arg0: i32) -> (i32, i32) {
    %c0_i32 = arith.constant 0 : i32
    %c0_i32_0 = arith.constant 0 : i32
    %c0_i32_1 = arith.constant 0 : i32
    return %c0_i32, %c0_i32_0 : i32, i32
  }
  func.func @transform_7(%arg0: i32) -> (i32, i32) {
    %c0_i32 = arith.constant 0 : i32
    %c0_i32_0 = arith.constant 0 : i32
    %c0_i32_1 = arith.constant 0 : i32
    return %c0_i32, %c0_i32_0 : i32, i32
  }
  func.func @transform_8(%arg0: i32) -> (i32, i32) {
    %c0_i32 = arith.constant 0 : i32
    %c0_i32_0 = arith.constant 0 : i32
    %c0_i32_1 = arith.constant 0 : i32
    return %c0_i32, %c0_i32_0 : i32, i32
  }
  func.func @transform_9(%arg0: i32) -> (i32, i32) {
    %c0_i32 = arith.constant 0 : i32
    %c0_i32_0 = arith.constant 0 : i32
    return %c0_i32, %arg0 : i32, i32
  }
}

</mosaic_0001>

<llo_original>
// kernel: tpu_custom_call.1
$region0: #{tpu_custom_call.1}
  #allocation0 [shape = 'u32[]', space=smem, size = 0x4, offset = 0x4, fixed_abs, tag = 'smem constant byte address 0x4 - core index']
  #allocation1 [shape = 'u32[144,128]{1,0:T(1,128)}', space=vmem, size = 0x12000, scoped, tag = 'internal scratch']
  #allocation2 [shape = 'f32[1,1]{1,0:T(1,128)S(1)}', space=vmem, size = 0x200, scoped, tag = 'scoped memory for tpu_custom_call.1']
  %s0 = inlined_call_operand.vmem [shape: f32[512,2], index: 0, kind: input, shape index: {}]
  %s1 = inlined_call_operand.vmem [shape: f32[2,512], index: 1, kind: input, shape index: {}]
  %s2 = inlined_call_operand.vmem [shape: f32[1,512], index: 2, kind: input, shape index: {}]
  %s3 = inlined_call_operand.hbm [shape: bf16[512,512], index: 3, kind: input, shape index: {}]
  %s4 = inlined_call_operand.vmem [shape: f32[1,512], index: 4, kind: input, shape index: {}]
  %s5 = inlined_call_operand.hbm [shape: bf16[512,512], index: 5, kind: input, shape index: {}]
  %s6 = inlined_call_operand.vmem [shape: f32[1,512], index: 6, kind: input, shape index: {}]
  %s7 = inlined_call_operand.vmem [shape: bf16[8,512], index: 7, kind: input, shape index: {}]
  %s8 = inlined_call_operand.<no memory space> [shape: f32[1,1], index: 8, kind: input, shape index: {}]
  %s9 = inlined_call_operand.hbm [shape: f32[1,512], index: 9, kind: output, shape index: {}]
  %s10 = sld [smem:[#allocation0]]
  $region77: #{tpu_custom_call.1} parent=0
    _
  %s12 = ssub.s32 1, %s10
  %s13 = scalar_select 0, %s12, %s10
  %v14 = vstv %s8
  %15 = vst [vmem:[#allocation2] sm:$0x1] %v14
  $region1: #{tpu_custom_call.1} parent=0
    #allocation3 [shape = 'u8[524288]{0}', space=vmem, size = 0x80000, scoped, tag = 'input window, operand 3, single buffered']
    #allocation4 [shape = 's32[2]{0}', space=sflag, size = 0x8, scoped, tag = 'scoped memory for tpu_custom_call.1']
    #allocation5 [shape = 's32[2]{0}', space=sflag, size = 0x8, scoped, tag = 'scoped memory for tpu_custom_call.1']
    #allocation6 [shape = 'u8[524288]{0}', space=vmem, size = 0x80000, scoped, tag = 'input window, operand 5, single buffered']
    #allocation7 [shape = 's32[1]{0}', space=sflag, size = 0x4, scoped, tag = 'scoped memory for tpu_custom_call.1']
    #allocation8 [shape = 'u8[2048]{0}', space=vmem, size = 0x800, scoped, tag = 'output window, operand 0']
    %16 = vsyncpa [#allocation4], 0
    %17 = vsyncpa [#allocation7], 0
    %18 = vsyncpa [#allocation5], 0
    %s19 = scalar_lea.sflag [#allocation5], 1
    %20 = vsyncpa %s19, 0
    loop: start=0, step=1, limit=4
    $region2: #{tpu_custom_call.1} parent=1 // loop_pre_header
      _
    $region3: #{tpu_custom_call.1} parent=1 // loop_header
      %s22 = sphi 0, %s26
      %p23 = scmp.ge.s32.totalorder %s22, 4
      %s32 = sphi 0, %s34
      %s35 = sphi 0, %s32
      %s36 = sphi 0, %s35
      %s52 = sphi 0, %s36
      %s56 = sphi 0, %s56
      %s58 = sphi 0, %s56
      %s59 = sphi 0, %s58
      %s73 = sphi 0, %s59
      %s77 = sphi 0, %s77
      %s79 = sphi 0, %s77
      %s80 = sphi 0, %s79
      %s94 = sphi 0, %s80
      %s98 = sphi 0, %s98
      %s100 = sphi 0, %s98
      %s101 = sphi 0, %s100
      %s115 = sphi 0, %s101
      %s119 = sphi 0, %s119
      %s121 = sphi 0, %s119
      %s122 = sphi 0, %s121
      %s136 = sphi 0, %s122
      %s140 = sphi 0, %s140
      %s142 = sphi 0, %s140
      %s143 = sphi 0, %s142
      %s157 = sphi 0, %s143
      %s161 = sphi 0, %s161
      %s163 = sphi 0, %s161
      %s164 = sphi 0, %s163
      %s178 = sphi 0, %s164
      %s182 = sphi 0, %s182
      %s184 = sphi 0, %s182
      %s185 = sphi 0, %s184
      %s199 = sphi 0, %s185
      %s203 = sphi 0, %s203
      %s205 = sphi 0, %s203
      %s206 = sphi 0, %s205
      %s220 = sphi 0, %s206
      %s226 = sphi 0, %s228
      %s229 = sphi 0, %s226
      %s230 = sphi 0, %s229
      %s246 = sphi 0, %s230
    $region4: #{tpu_custom_call.1} parent=1 // loop_header_branch
      %25 = sbr.rel (%p23) target = $region8
    $region5: #{tpu_custom_call.1} parent=1 // loop_body
      %s27 = ssub.s32 %s22, 1
      %s28 = ssub.s32 %s22, 2
      %s29 = sadd.s32 %s22, 1
      %s30 = ssub.s32 %s22, %s29
      %p31 = scmp.eq.s32.totalorder %s30, 0
      %s33 = sadd.s32 %s32, 1
      %s34 = scalar_select %p31, %s32, %s33
      %p37 = pneg %p31
      %p38 = scmp.eq.s32.totalorder %s22, 1
      %p39 = por %p37, %p38
      %p40 = scmp.ne.s32.totalorder %s32, %s35
      %p41 = scmp.eq.s32.totalorder %s22, 0
      %p42 = por %p40, %p41
      %p43 = scmp.ne.s32.totalorder %s32, %s35
      %p44 = scmp.eq.s32.totalorder %s27, 1
      %p45 = por %p43, %p44
      %p46 = scmp.ne.s32.totalorder %s35, %s36
      %p47 = scmp.eq.s32.totalorder %s27, 0
      %p48 = por %p46, %p47
      %p49 = scmp.ne.s32.totalorder %s35, %s36
      %p50 = scmp.eq.s32.totalorder %s28, 1
      %p51 = por %p49, %p50
      %p53 = scmp.ne.s32.totalorder %s36, %s52
      %p54 = scmp.eq.s32.totalorder %s28, 0
      %p55 = por %p53, %p54
      %s57 = sadd.s32 %s56, 1
      %p60 = scmp.eq.s32.totalorder %s22, 1
      %p61 = scmp.ne.s32.totalorder %s56, %s58
      %p62 = scmp.eq.s32.totalorder %s22, 0
      %p63 = por %p61, %p62
      %p64 = scmp.ne.s32.totalorder %s56, %s58
      %p65 = scmp.eq.s32.totalorder %s27, 1
      %p66 = por %p64, %p65
      %p67 = scmp.ne.s32.totalorder %s58, %s59
      %p68 = scmp.eq.s32.totalorder %s27, 0
      %p69 = por %p67, %p68
      %p70 = scmp.ne.s32.totalorder %s58, %s59
      %p71 = scmp.eq.s32.totalorder %s28, 1
      %p72 = por %p70, %p71
      %p74 = scmp.ne.s32.totalorder %s59, %s73
      %p75 = scmp.eq.s32.totalorder %s28, 0
      %p76 = por %p74, %p75
      %s78 = sadd.s32 %s77, 1
      %p81 = scmp.eq.s32.totalorder %s22, 1
      %p82 = scmp.ne.s32.totalorder %s77, %s79
      %p83 = scmp.eq.s32.totalorder %s22, 0
      %p84 = por %p82, %p83
      %p85 = scmp.ne.s32.totalorder %s77, %s79
      %p86 = scmp.eq.s32.totalorder %s27, 1
      %p87 = por %p85, %p86
      %p88 = scmp.ne.s32.totalorder %s79, %s80
      %p89 = scmp.eq.s32.totalorder %s27, 0
      %p90 = por %p88, %p89
      %p91 = scmp.ne.s32.totalorder %s79, %s80
      %p92 = scmp.eq.s32.totalorder %s28, 1
      %p93 = por %p91, %p92
      %p95 = scmp.ne.s32.totalorder %s80, %s94
      %p96 = scmp.eq.s32.totalorder %s28, 0
      %p97 = por %p95, %p96
      %s99 = sadd.s32 %s98, 1
      %p102 = scmp.eq.s32.totalorder %s22, 1
      %p103 = scmp.ne.s32.totalorder %s98, %s100
      %p104 = scmp.eq.s32.totalorder %s22, 0
      %p105 = por %p103, %p104
      %p106 = scmp.ne.s32.totalorder %s98, %s100
      %p107 = scmp.eq.s32.totalorder %s27, 1
      %p108 = por %p106, %p107
      %p109 = scmp.ne.s32.totalorder %s100, %s101
      %p110 = scmp.eq.s32.totalorder %s27, 0
      %p111 = por %p109, %p110
      %p112 = scmp.ne.s32.totalorder %s100, %s101
      %p113 = scmp.eq.s32.totalorder %s28, 1
      %p114 = por %p112, %p113
      %p116 = scmp.ne.s32.totalorder %s101, %s115
      %p117 = scmp.eq.s32.totalorder %s28, 0
      %p118 = por %p116, %p117
      %s120 = sadd.s32 %s119, 1
      %p123 = scmp.eq.s32.totalorder %s22, 1
      %p124 = scmp.ne.s32.totalorder %s119, %s121
      %p125 = scmp.eq.s32.totalorder %s22, 0
      %p126 = por %p124, %p125
      %p127 = scmp.ne.s32.totalorder %s119, %s121
      %p128 = scmp.eq.s32.totalorder %s27, 1
      %p129 = por %p127, %p128
      %p130 = scmp.ne.s32.totalorder %s121, %s122
      %p131 = scmp.eq.s32.totalorder %s27, 0
      %p132 = por %p130, %p131
      %p133 = scmp.ne.s32.totalorder %s121, %s122
      %p134 = scmp.eq.s32.totalorder %s28, 1
      %p135 = por %p133, %p134
      %p137 = scmp.ne.s32.totalorder %s122, %s136
      %p138 = scmp.eq.s32.totalorder %s28, 0
      %p139 = por %p137, %p138
      %s141 = sadd.s32 %s140, 1
      %p144 = scmp.eq.s32.totalorder %s22, 1
      %p145 = scmp.ne.s32.totalorder %s140, %s142
      %p146 = scmp.eq.s32.totalorder %s22, 0
      %p147 = por %p145, %p146
      %p148 = scmp.ne.s32.totalorder %s140, %s142
      %p149 = scmp.eq.s32.totalorder %s27, 1
      %p150 = por %p148, %p149
      %p151 = scmp.ne.s32.totalorder %s142, %s143
      %p152 = scmp.eq.s32.totalorder %s27, 0
      %p153 = por %p151, %p152
      %p154 = scmp.ne.s32.totalorder %s142, %s143
      %p155 = scmp.eq.s32.totalorder %s28, 1
      %p156 = por %p154, %p155
      %p158 = scmp.ne.s32.totalorder %s143, %s157
      %p159 = scmp.eq.s32.totalorder %s28, 0
      %p160 = por %p158, %p159
      %s162 = sadd.s32 %s161, 1
      %p165 = scmp.eq.s32.totalorder %s22, 1
      %p166 = scmp.ne.s32.totalorder %s161, %s163
      %p167 = scmp.eq.s32.totalorder %s22, 0
      %p168 = por %p166, %p167
      %p169 = scmp.ne.s32.totalorder %s161, %s163
      %p170 = scmp.eq.s32.totalorder %s27, 1
      %p171 = por %p169, %p170
      %p172 = scmp.ne.s32.totalorder %s163, %s164
      %p173 = scmp.eq.s32.totalorder %s27, 0
      %p174 = por %p172, %p173
      %p175 = scmp.ne.s32.totalorder %s163, %s164
      %p176 = scmp.eq.s32.totalorder %s28, 1
      %p177 = por %p175, %p176
      %p179 = scmp.ne.s32.totalorder %s164, %s178
      %p180 = scmp.eq.s32.totalorder %s28, 0
      %p181 = por %p179, %p180
      %s183 = sadd.s32 %s182, 1
      %p186 = scmp.eq.s32.totalorder %s22, 1
      %p187 = scmp.ne.s32.totalorder %s182, %s184
      %p188 = scmp.eq.s32.totalorder %s22, 0
      %p189 = por %p187, %p188
      %p190 = scmp.ne.s32.totalorder %s182, %s184
      %p191 = scmp.eq.s32.totalorder %s27, 1
      %p192 = por %p190, %p191
      %p193 = scmp.ne.s32.totalorder %s184, %s185
      %p194 = scmp.eq.s32.totalorder %s27, 0
      %p195 = por %p193, %p194
      %p196 = scmp.ne.s32.totalorder %s184, %s185
      %p197 = scmp.eq.s32.totalorder %s28, 1
      %p198 = por %p196, %p197
      %p200 = scmp.ne.s32.totalorder %s185, %s199
      %p201 = scmp.eq.s32.totalorder %s28, 0
      %p202 = por %p200, %p201
      %s204 = sadd.s32 %s203, 1
      %p207 = scmp.eq.s32.totalorder %s22, 1
      %p208 = scmp.ne.s32.totalorder %s203, %s205
      %p209 = scmp.eq.s32.totalorder %s22, 0
      %p210 = por %p208, %p209
      %p211 = scmp.ne.s32.totalorder %s203, %s205
      %p212 = scmp.eq.s32.totalorder %s27, 1
      %p213 = por %p211, %p212
      %p214 = scmp.ne.s32.totalorder %s205, %s206
      %p215 = scmp.eq.s32.totalorder %s27, 0
      %p216 = por %p214, %p215
      %p217 = scmp.ne.s32.totalorder %s205, %s206
      %p218 = scmp.eq.s32.totalorder %s28, 1
      %p219 = por %p217, %p218
      %p221 = scmp.ne.s32.totalorder %s206, %s220
      %p222 = scmp.eq.s32.totalorder %s28, 0
      %p223 = por %p221, %p222
      %s224 = ssub.s32 %s22, %s29
      %p225 = scmp.eq.s32.totalorder %s224, 0
      %s227 = sadd.s32 %s226, 1
      %s228 = scalar_select %p225, %s226, %s227
      %p231 = pneg %p225
      %p232 = scmp.eq.s32.totalorder %s22, 1
      %p233 = por %p231, %p232
      %p234 = scmp.ne.s32.totalorder %s226, %s229
      %p235 = scmp.eq.s32.totalorder %s22, 0
      %p236 = por %p234, %p235
      %p237 = scmp.ne.s32.totalorder %s226, %s229
      %p238 = scmp.eq.s32.totalorder %s27, 1
      %p239 = por %p237, %p238
      %p240 = scmp.ne.s32.totalorder %s229, %s230
      %p241 = scmp.eq.s32.totalorder %s27, 0
      %p242 = por %p240, %p241
      %p243 = scmp.ne.s32.totalorder %s229, %s230
      %p244 = scmp.eq.s32.totalorder %s28, 1
      %p245 = por %p243, %p244
      %p247 = scmp.ne.s32.totalorder %s230, %s246
      %p248 = scmp.eq.s32.totalorder %s28, 0
      %p249 = por %p247, %p248
      %p250 = scmp.le.s32.totalorder 1, %s22
      %p251 = scmp.lt.s32.totalorder %s22, 3
      %p252 = pnand %p250, %p251
      %p253 = pneg %p252
      // Predicated region
      $region9: #{tpu_custom_call.1} parent=5 // pred_check
        _
      $region10: #{tpu_custom_call.1} parent=5 // pred_check_branch
        %255 = sbr.rel (%p252) target = $region12
      $region11: #{tpu_custom_call.1} parent=5 // pred_region
        %s256 = ssub.s32 %s22, 1
        // Predicated region
        $region13: #{tpu_custom_call.1} parent=11 // pred_check
          %p257 = pneg %p69
        $region14: #{tpu_custom_call.1} parent=11 // pred_check_branch
          %259 = sbr.rel (%p257) target = $region16
        $region15: #{tpu_custom_call.1} parent=11 // pred_region
          _
        $region16: #{tpu_custom_call.1} parent=11 // pred_fallthru
          _
        // Predicated region
        $region17: #{tpu_custom_call.1} parent=11 // pred_check
          %p260 = pneg %p90
        $region18: #{tpu_custom_call.1} parent=11 // pred_check_branch
          %262 = sbr.rel (%p260) target = $region20
        $region19: #{tpu_custom_call.1} parent=11 // pred_region
          _
        $region20: #{tpu_custom_call.1} parent=11 // pred_fallthru
          _
        // Predicated region
        $region21: #{tpu_custom_call.1} parent=11 // pred_check
          %p263 = pneg %p111
        $region22: #{tpu_custom_call.1} parent=11 // pred_check_branch
          %265 = sbr.rel (%p263) target = $region24
        $region23: #{tpu_custom_call.1} parent=11 // pred_region
          %s267 = ssub.s32 16384, 16384
          %268 = vsyncadd [#allocation4], %s267
          %s269 = sshll.u32 [#allocation3], 4
          %s270 = int_to_ptr.vmem [resolvable:$true] %s269
          %275 = dma.hbm_to_vmem [thread:$0]  %s3, 16384, %s270, [#allocation4], 256, 256, 16
        $region24: #{tpu_custom_call.1} parent=11 // pred_fallthru
          _
        // Predicated region
        $region25: #{tpu_custom_call.1} parent=11 // pred_check
          %p276 = pneg %p132
        $region26: #{tpu_custom_call.1} parent=11 // pred_check_branch
          %278 = sbr.rel (%p276) target = $region28
        $region27: #{tpu_custom_call.1} parent=11 // pred_region
          _
        $region28: #{tpu_custom_call.1} parent=11 // pred_fallthru
          _
        // Predicated region
        $region29: #{tpu_custom_call.1} parent=11 // pred_check
          %p279 = pneg %p153
        $region30: #{tpu_custom_call.1} parent=11 // pred_check_branch
          %281 = sbr.rel (%p279) target = $region32
        $region31: #{tpu_custom_call.1} parent=11 // pred_region
          %s283 = ssub.s32 16384, 16384
          %284 = vsyncadd [#allocation7], %s283
          %s285 = sshll.u32 [#allocation6], 4
          %s286 = int_to_ptr.vmem [resolvable:$true] %s285
          %291 = dma.hbm_to_vmem [thread:$0]  %s5, 16384, %s286, [#allocation7], 256, 256, 16
        $region32: #{tpu_custom_call.1} parent=11 // pred_fallthru
          _
        // Predicated region
        $region33: #{tpu_custom_call.1} parent=11 // pred_check
          %p292 = pneg %p174
        $region34: #{tpu_custom_call.1} parent=11 // pred_check_branch
          %294 = sbr.rel (%p292) target = $region36
        $region35: #{tpu_custom_call.1} parent=11 // pred_region
          _
        $region36: #{tpu_custom_call.1} parent=11 // pred_fallthru
          _
        // Predicated region
        $region37: #{tpu_custom_call.1} parent=11 // pred_check
          %p295 = pneg %p195
        $region38: #{tpu_custom_call.1} parent=11 // pred_check_branch
          %297 = sbr.rel (%p295) target = $region40
        $region39: #{tpu_custom_call.1} parent=11 // pred_region
          _
        $region40: #{tpu_custom_call.1} parent=11 // pred_fallthru
          _
        // Predicated region
        $region41: #{tpu_custom_call.1} parent=11 // pred_check
          %p298 = pneg %p216
        $region42: #{tpu_custom_call.1} parent=11 // pred_check_branch
          %300 = sbr.rel (%p298) target = $region44
        $region43: #{tpu_custom_call.1} parent=11 // pred_region
          _
        $region44: #{tpu_custom_call.1} parent=11 // pred_fallthru
          _
      $region12: #{tpu_custom_call.1} parent=5 // pred_fallthru
        _
      %p301 = scmp.lt.s32.totalorder %s22, 2
      // Predicated region
      $region45: #{tpu_custom_call.1} parent=5 // pred_check
        %p302 = pneg %p301
      $region46: #{tpu_custom_call.1} parent=5 // pred_check_branch
        %304 = sbr.rel (%p302) target = $region48
      $region47: #{tpu_custom_call.1} parent=5 // pred_region
        // Predicated region
        $region49: #{tpu_custom_call.1} parent=47 // pred_check
          %p305 = pneg %p42
        $region50: #{tpu_custom_call.1} parent=47 // pred_check_branch
          %307 = sbr.rel (%p305) target = $region52
        $region51: #{tpu_custom_call.1} parent=47 // pred_region
          %s308 = smul.u32 32, %s22
          %p309 = scmp.lt.s32.totalorder %s308, 63
          %s310 = scalar_select %p309, %s308, 63
          %s311 = smul.addr %s310, 8
          %s312 = scalar_lea.vmem %s0, %s311
          %s313 = smul.u32 32, %s22
        $region52: #{tpu_custom_call.1} parent=47 // pred_fallthru
          _
      $region48: #{tpu_custom_call.1} parent=5 // pred_fallthru
        _
      %p314 = scmp.le.s32.totalorder 1, %s22
      %p315 = scmp.lt.s32.totalorder %s22, 3
      %p316 = pnand %p314, %p315
      %p317 = pneg %p316
      // Predicated region
      $region53: #{tpu_custom_call.1} parent=5 // pred_check
        _
      $region54: #{tpu_custom_call.1} parent=5 // pred_check_branch
        %319 = sbr.rel (%p316) target = $region56
      $region55: #{tpu_custom_call.1} parent=5 // pred_region
        %s320 = ssub.s32 %s22, 1
        // Predicated region
        $region57: #{tpu_custom_call.1} parent=55 // pred_check
          %p321 = pneg %p111
        $region58: #{tpu_custom_call.1} parent=55 // pred_check_branch
          %323 = sbr.rel (%p321) target = $region60
        $region59: #{tpu_custom_call.1} parent=55 // pred_region
          %324 = dma.done [#allocation4], 16384
        $region60: #{tpu_custom_call.1} parent=55 // pred_fallthru
          _
        // Predicated region
        $region61: #{tpu_custom_call.1} parent=55 // pred_check
          %p325 = pneg %p153
        $region62: #{tpu_custom_call.1} parent=55 // pred_check_branch
          %327 = sbr.rel (%p325) target = $region64
        $region63: #{tpu_custom_call.1} parent=55 // pred_region
          %328 = dma.done [#allocation7], 16384
        $region64: #{tpu_custom_call.1} parent=55 // pred_fallthru
          _
        %s329 = smul.u32 32, %s27
        %p330 = scmp.lt.s32.totalorder %s329, 63
        %s331 = scalar_select %p330, %s329, 63
        %s332 = smul.addr %s331, 8
        %s333 = scalar_lea.vmem %s0, %s332
        %p334 = pneg %p48
        %p335 = pneg %p45
        %p336 = pneg %p69
        %p337 = pneg %p66
        %p338 = pneg %p90
        %p339 = pneg %p87
        %p340 = pneg %p111
        %p341 = pneg %p108
        %p342 = pneg %p132
        %p343 = pneg %p129
        %p344 = pneg %p153
        %p345 = pneg %p150
        %p346 = pneg %p174
        %p347 = pneg %p171
        %p348 = pneg %p195
        %p349 = pneg %p192
        %p350 = pneg %p216
        %p351 = pneg %p213
        %p352 = pneg %p242
        %p353 = pneg %p239
        %s354 = sand.u32 %s229, 1
        %s355 = scalar_lea.sflag [#allocation5], %s354
        %s356 = sand.u32 %s229, 1
        %s357 = smul.addr %s356, 2
        %s358 = scalar_lea.vmem [#allocation8], %s357
        %s359 = smul.u32 32, %s27
        %p360 = scmp.lt.s32.totalorder %s359, 63
        %s361 = scalar_select %p360, %s359, 63
        %s362 = smul.addr %s361, 8
        %s363 = scalar_lea.vmem %s0, %s362
        %s364 = smul.u32 32, %s27
        %s365 = smul.u32 2, %s27
        %v366 = vld [vmem:[%s363] sm:$0xff]
        %v367 = vld [vmem:[%s363 + $0x8] sm:$0xff]
        %v368 = vld [vmem:[%s363 + $0x10] sm:$0xff]
        %v369 = vld [vmem:[%s363 + $0x18] sm:$0xff]
        %v370 = vld [vmem:[%s363 + $0x20] sm:$0xff]
        %v371 = vld [vmem:[%s363 + $0x28] sm:$0xff]
        %v372 = vld [vmem:[%s363 + $0x30] sm:$0xff]
        %v373 = vld [vmem:[%s363 + $0x38] sm:$0xff]
        %v374 = vld [vmem:[%s363 + $0x40] sm:$0xff]
        %v375 = vld [vmem:[%s363 + $0x48] sm:$0xff]
        %v376 = vld [vmem:[%s363 + $0x50] sm:$0xff]
        %v377 = vld [vmem:[%s363 + $0x58] sm:$0xff]
        %v378 = vld [vmem:[%s363 + $0x60] sm:$0xff]
        %v379 = vld [vmem:[%s363 + $0x68] sm:$0xff]
        %v380 = vld [vmem:[%s363 + $0x70] sm:$0xff]
        %v381 = vld [vmem:[%s363 + $0x78] sm:$0xff]
        %v382 = vld [vmem:[%s363 + $0x80] sm:$0xff]
        %v383 = vld [vmem:[%s363 + $0x88] sm:$0xff]
        %v384 = vld [vmem:[%s363 + $0x90] sm:$0xff]
        %v385 = vld [vmem:[%s363 + $0x98] sm:$0xff]
        %v386 = vld [vmem:[%s363 + $0xa0] sm:$0xff]
        %v387 = vld [vmem:[%s363 + $0xa8] sm:$0xff]
        %v388 = vld [vmem:[%s363 + $0xb0] sm:$0xff]
        %v389 = vld [vmem:[%s363 + $0xb8] sm:$0xff]
        %v390 = vld [vmem:[%s363 + $0xc0] sm:$0xff]
        %v391 = vld [vmem:[%s363 + $0xc8] sm:$0xff]
        %v392 = vld [vmem:[%s363 + $0xd0] sm:$0xff]
        %v393 = vld [vmem:[%s363 + $0xd8] sm:$0xff]
        %v394 = vld [vmem:[%s363 + $0xe0] sm:$0xff]
        %v395 = vld [vmem:[%s363 + $0xe8] sm:$0xff]
        %v396 = vld [vmem:[%s363 + $0xf0] sm:$0xff]
        %v397 = vld [vmem:[%s363 + $0xf8] sm:$0xff]
        %v398 = vld [vmem:[%s1] ss:$2 sm:$0xf]
        %400 = vset.pattern.permute.xlu0 0
        %401 = vperm.xlu0 %400, %v366
        %v402 = vpop.permute.xlu0 %401
        %405 = vset.pattern.permute.xlu0 0
        %406 = vperm.xlu0 %405, %v367
        %v407 = vpop.permute.xlu0 %406
        %410 = vset.pattern.permute.xlu0 0
        %411 = vperm.xlu0 %410, %v368
        %v412 = vpop.permute.xlu0 %411
        %415 = vset.pattern.permute.xlu0 0
        %416 = vperm.xlu0 %415, %v369
        %v417 = vpop.permute.xlu0 %416
        %420 = vset.pattern.permute.xlu0 0
        %421 = vperm.xlu0 %420, %v370
        %v422 = vpop.permute.xlu0 %421
        %425 = vset.pattern.permute.xlu0 0
        %426 = vperm.xlu0 %425, %v371
        %v427 = vpop.permute.xlu0 %426
        %430 = vset.pattern.permute.xlu0 0
        %431 = vperm.xlu0 %430, %v372
        %v432 = vpop.permute.xlu0 %431
        %435 = vset.pattern.permute.xlu0 0
        %436 = vperm.xlu0 %435, %v373
        %v437 = vpop.permute.xlu0 %436
        %440 = vset.pattern.permute.xlu0 0
        %441 = vperm.xlu0 %440, %v374
        %v442 = vpop.permute.xlu0 %441
        %445 = vset.pattern.permute.xlu0 0
        %446 = vperm.xlu0 %445, %v375
        %v447 = vpop.permute.xlu0 %446
        %450 = vset.pattern.permute.xlu0 0
        %451 = vperm.xlu0 %450, %v376
        %v452 = vpop.permute.xlu0 %451
        %455 = vset.pattern.permute.xlu0 0
        %456 = vperm.xlu0 %455, %v377
        %v457 = vpop.permute.xlu0 %456
        %460 = vset.pattern.permute.xlu0 0
        %461 = vperm.xlu0 %460, %v378
        %v462 = vpop.permute.xlu0 %461
        %465 = vset.pattern.permute.xlu0 0
        %466 = vperm.xlu0 %465, %v379
        %v467 = vpop.permute.xlu0 %466
        %470 = vset.pattern.permute.xlu0 0
        %471 = vperm.xlu0 %470, %v380
        %v472 = vpop.permute.xlu0 %471
        %475 = vset.pattern.permute.xlu0 0
        %476 = vperm.xlu0 %475, %v381
        %v477 = vpop.permute.xlu0 %476
        %480 = vset.pattern.permute.xlu0 0
        %481 = vperm.xlu0 %480, %v382
        %v482 = vpop.permute.xlu0 %481
        %485 = vset.pattern.permute.xlu0 0
        %486 = vperm.xlu0 %485, %v383
        %v487 = vpop.permute.xlu0 %486
        %490 = vset.pattern.permute.xlu0 0
        %491 = vperm.xlu0 %490, %v384
        %v492 = vpop.permute.xlu0 %491
        %495 = vset.pattern.permute.xlu0 0
        %496 = vperm.xlu0 %495, %v385
        %v497 = vpop.permute.xlu0 %496
        %500 = vset.pattern.permute.xlu0 0
        %501 = vperm.xlu0 %500, %v386
        %v502 = vpop.permute.xlu0 %501
        %505 = vset.pattern.permute.xlu0 0
        %506 = vperm.xlu0 %505, %v387
        %v507 = vpop.permute.xlu0 %506
        %510 = vset.pattern.permute.xlu0 0
        %511 = vperm.xlu0 %510, %v388
        %v512 = vpop.permute.xlu0 %511
        %515 = vset.pattern.permute.xlu0 0
        %516 = vperm.xlu0 %515, %v389
        %v517 = vpop.permute.xlu0 %516
        %520 = vset.pattern.permute.xlu0 0
        %521 = vperm.xlu0 %520, %v390
        %v522 = vpop.permute.xlu0 %521
        %525 = vset.pattern.permute.xlu0 0
        %526 = vperm.xlu0 %525, %v391
        %v527 = vpop.permute.xlu0 %526
        %530 = vset.pattern.permute.xlu0 0
        %531 = vperm.xlu0 %530, %v392
        %v532 = vpop.permute.xlu0 %531
        %535 = vset.pattern.permute.xlu0 0
        %536 = vperm.xlu0 %535, %v393
        %v537 = vpop.permute.xlu0 %536
        %540 = vset.pattern.permute.xlu0 0
        %541 = vperm.xlu0 %540, %v394
        %v542 = vpop.permute.xlu0 %541
        %545 = vset.pattern.permute.xlu0 0
        %546 = vperm.xlu0 %545, %v395
        %v547 = vpop.permute.xlu0 %546
        %550 = vset.pattern.permute.xlu0 0
        %551 = vperm.xlu0 %550, %v396
        %v552 = vpop.permute.xlu0 %551
        %555 = vset.pattern.permute.xlu0 0
        %556 = vperm.xlu0 %555, %v397
        %v557 = vpop.permute.xlu0 %556
        %v560 = vlaneseq
        %v561 = vshrl.u32 %v560, 7
        %v562 = vsub.s32 0, %v561
        %v563 = vrot.slane %v398, %v562
        %v564 = vlaneseq
        %v565 = vshrl.u32 %v564, 7
        %v566 = vsub.s32 1, %v565
        %v567 = vrot.slane %v398, %v566
        %v568 = vlaneseq
        %v569 = vshrl.u32 %v568, 7
        %v570 = vsub.s32 2, %v569
        %v571 = vrot.slane %v398, %v570
        %v572 = vlaneseq
        %v573 = vshrl.u32 %v572, 7
        %v574 = vsub.s32 3, %v573
        %v575 = vrot.slane %v398, %v574
        %v580 = vmul.f32 %v402, %v563
        %v581 = vmul.f32 %v402, %v567
        %v582 = vmul.f32 %v402, %v571
        %v583 = vmul.f32 %v402, %v575
        %v584 = vmul.f32 %v407, %v563
        %v585 = vmul.f32 %v407, %v567
        %v586 = vmul.f32 %v407, %v571
        %v587 = vmul.f32 %v407, %v575
        %v588 = vmul.f32 %v412, %v563
        %v589 = vmul.f32 %v412, %v567
        %v590 = vmul.f32 %v412, %v571
        %v591 = vmul.f32 %v412, %v575
        %v592 = vmul.f32 %v417, %v563
        %v593 = vmul.f32 %v417, %v567
        %v594 = vmul.f32 %v417, %v571
        %v595 = vmul.f32 %v417, %v575
        %v596 = vmul.f32 %v422, %v563
        %v597 = vmul.f32 %v422, %v567
        %v598 = vmul.f32 %v422, %v571
        %v599 = vmul.f32 %v422, %v575
        %v600 = vmul.f32 %v427, %v563
        %v601 = vmul.f32 %v427, %v567
        %v602 = vmul.f32 %v427, %v571
        %v603 = vmul.f32 %v427, %v575
        %v604 = vmul.f32 %v432, %v563
        %v605 = vmul.f32 %v432, %v567
        %v606 = vmul.f32 %v432, %v571
        %v607 = vmul.f32 %v432, %v575
        %v608 = vmul.f32 %v437, %v563
        %v609 = vmul.f32 %v437, %v567
        %v610 = vmul.f32 %v437, %v571
        %v611 = vmul.f32 %v437, %v575
        %v612 = vmul.f32 %v442, %v563
        %v613 = vmul.f32 %v442, %v567
        %v614 = vmul.f32 %v442, %v571
        %v615 = vmul.f32 %v442, %v575
        %v616 = vmul.f32 %v447, %v563
        %v617 = vmul.f32 %v447, %v567
        %v618 = vmul.f32 %v447, %v571
        %v619 = vmul.f32 %v447, %v575
        %v620 = vmul.f32 %v452, %v563
        %v621 = vmul.f32 %v452, %v567
        %v622 = vmul.f32 %v452, %v571
        %v623 = vmul.f32 %v452, %v575
        %v624 = vmul.f32 %v457, %v563
        %v625 = vmul.f32 %v457, %v567
        %v626 = vmul.f32 %v457, %v571
        %v627 = vmul.f32 %v457, %v575
        %v628 = vmul.f32 %v462, %v563
        %v629 = vmul.f32 %v462, %v567
        %v630 = vmul.f32 %v462, %v571
        %v631 = vmul.f32 %v462, %v575
        %v632 = vmul.f32 %v467, %v563
        %v633 = vmul.f32 %v467, %v567
        %v634 = vmul.f32 %v467, %v571
        %v635 = vmul.f32 %v467, %v575
        %v636 = vmul.f32 %v472, %v563
        %v637 = vmul.f32 %v472, %v567
        %v638 = vmul.f32 %v472, %v571
        %v639 = vmul.f32 %v472, %v575
        %v640 = vmul.f32 %v477, %v563
        %v641 = vmul.f32 %v477, %v567
        %v642 = vmul.f32 %v477, %v571
        %v643 = vmul.f32 %v477, %v575
        %v644 = vmul.f32 %v482, %v563
        %v645 = vmul.f32 %v482, %v567
        %v646 = vmul.f32 %v482, %v571
        %v647 = vmul.f32 %v482, %v575
        %v648 = vmul.f32 %v487, %v563
        %v649 = vmul.f32 %v487, %v567
        %v650 = vmul.f32 %v487, %v571
        %v651 = vmul.f32 %v487, %v575
        %v652 = vmul.f32 %v492, %v563
        %v653 = vmul.f32 %v492, %v567
        %v654 = vmul.f32 %v492, %v571
        %v655 = vmul.f32 %v492, %v575
        %v656 = vmul.f32 %v497, %v563
        %v657 = vmul.f32 %v497, %v567
        %v658 = vmul.f32 %v497, %v571
        %v659 = vmul.f32 %v497, %v575
        %v660 = vmul.f32 %v502, %v563
        %v661 = vmul.f32 %v502, %v567
        %v662 = vmul.f32 %v502, %v571
        %v663 = vmul.f32 %v502, %v575
        %v664 = vmul.f32 %v507, %v563
        %v665 = vmul.f32 %v507, %v567
        %v666 = vmul.f32 %v507, %v571
        %v667 = vmul.f32 %v507, %v575
        %v668 = vmul.f32 %v512, %v563
        %v669 = vmul.f32 %v512, %v567
        %v670 = vmul.f32 %v512, %v571
        %v671 = vmul.f32 %v512, %v575
        %v672 = vmul.f32 %v517, %v563
        %v673 = vmul.f32 %v517, %v567
        %v674 = vmul.f32 %v517, %v571
        %v675 = vmul.f32 %v517, %v575
        %v676 = vmul.f32 %v522, %v563
        %v677 = vmul.f32 %v522, %v567
        %v678 = vmul.f32 %v522, %v571
        %v679 = vmul.f32 %v522, %v575
        %v680 = vmul.f32 %v527, %v563
        %v681 = vmul.f32 %v527, %v567
        %v682 = vmul.f32 %v527, %v571
        %v683 = vmul.f32 %v527, %v575
        %v684 = vmul.f32 %v532, %v563
        %v685 = vmul.f32 %v532, %v567
        %v686 = vmul.f32 %v532, %v571
        %v687 = vmul.f32 %v532, %v575
        %v688 = vmul.f32 %v537, %v563
        %v689 = vmul.f32 %v537, %v567
        %v690 = vmul.f32 %v537, %v571
        %v691 = vmul.f32 %v537, %v575
        %v692 = vmul.f32 %v542, %v563
        %v693 = vmul.f32 %v542, %v567
        %v694 = vmul.f32 %v542, %v571
        %v695 = vmul.f32 %v542, %v575
        %v696 = vmul.f32 %v547, %v563
        %v697 = vmul.f32 %v547, %v567
        %v698 = vmul.f32 %v547, %v571
        %v699 = vmul.f32 %v547, %v575
        %v700 = vmul.f32 %v552, %v563
        %v701 = vmul.f32 %v552, %v567
        %v702 = vmul.f32 %v552, %v571
        %v703 = vmul.f32 %v552, %v575
        %v704 = vmul.f32 %v557, %v563
        %v705 = vmul.f32 %v557, %v567
        %v706 = vmul.f32 %v557, %v571
        %v707 = vmul.f32 %v557, %v575
        %s708 = scalar_lea.vmem %s1, 1
        %v709 = vld [vmem:[%s708] ss:$2 sm:$0xf]
        %710 = vset.pattern.permute.xlu0 1
        %711 = vperm.xlu0 %710, %v366
        %v712 = vpop.permute.xlu0 %711
        %714 = vset.pattern.permute.xlu0 1
        %715 = vperm.xlu0 %714, %v367
        %v716 = vpop.permute.xlu0 %715
        %718 = vset.pattern.permute.xlu0 1
        %719 = vperm.xlu0 %718, %v368
        %v720 = vpop.permute.xlu0 %719
        %722 = vset.pattern.permute.xlu0 1
        %723 = vperm.xlu0 %722, %v369
        %v724 = vpop.permute.xlu0 %723
        %726 = vset.pattern.permute.xlu0 1
        %727 = vperm.xlu0 %726, %v370
        %v728 = vpop.permute.xlu0 %727
        %730 = vset.pattern.permute.xlu0 1
        %731 = vperm.xlu0 %730, %v371
        %v732 = vpop.permute.xlu0 %731
        %734 = vset.pattern.permute.xlu0 1
        %735 = vperm.xlu0 %734, %v372
        %v736 = vpop.permute.xlu0 %735
        %738 = vset.pattern.permute.xlu0 1
        %739 = vperm.xlu0 %738, %v373
        %v740 = vpop.permute.xlu0 %739
        %742 = vset.pattern.permute.xlu0 1
        %743 = vperm.xlu0 %742, %v374
        %v744 = vpop.permute.xlu0 %743
        %746 = vset.pattern.permute.xlu0 1
        %747 = vperm.xlu0 %746, %v375
        %v748 = vpop.permute.xlu0 %747
        %750 = vset.pattern.permute.xlu0 1
        %751 = vperm.xlu0 %750, %v376
        %v752 = vpop.permute.xlu0 %751
        %754 = vset.pattern.permute.xlu0 1
        %755 = vperm.xlu0 %754, %v377
        %v756 = vpop.permute.xlu0 %755
        %758 = vset.pattern.permute.xlu0 1
        %759 = vperm.xlu0 %758, %v378
        %v760 = vpop.permute.xlu0 %759
        %762 = vset.pattern.permute.xlu0 1
        %763 = vperm.xlu0 %762, %v379
        %v764 = vpop.permute.xlu0 %763
        %766 = vset.pattern.permute.xlu0 1
        %767 = vperm.xlu0 %766, %v380
        %v768 = vpop.permute.xlu0 %767
        %770 = vset.pattern.permute.xlu0 1
        %771 = vperm.xlu0 %770, %v381
        %v772 = vpop.permute.xlu0 %771
        %774 = vset.pattern.permute.xlu0 1
        %775 = vperm.xlu0 %774, %v382
        %v776 = vpop.permute.xlu0 %775
        %778 = vset.pattern.permute.xlu0 1
        %779 = vperm.xlu0 %778, %v383
        %v780 = vpop.permute.xlu0 %779
        %782 = vset.pattern.permute.xlu0 1
        %783 = vperm.xlu0 %782, %v384
        %v784 = vpop.permute.xlu0 %783
        %786 = vset.pattern.permute.xlu0 1
        %787 = vperm.xlu0 %786, %v385
        %v788 = vpop.permute.xlu0 %787
        %790 = vset.pattern.permute.xlu0 1
        %791 = vperm.xlu0 %790, %v386
        %v792 = vpop.permute.xlu0 %791
        %794 = vset.pattern.permute.xlu0 1
        %795 = vperm.xlu0 %794, %v387
        %v796 = vpop.permute.xlu0 %795
        %798 = vset.pattern.permute.xlu0 1
        %799 = vperm.xlu0 %798, %v388
        %v800 = vpop.permute.xlu0 %799
        %802 = vset.pattern.permute.xlu0 1
        %803 = vperm.xlu0 %802, %v389
        %v804 = vpop.permute.xlu0 %803
        %806 = vset.pattern.permute.xlu0 1
        %807 = vperm.xlu0 %806, %v390
        %v808 = vpop.permute.xlu0 %807
        %810 = vset.pattern.permute.xlu0 1
        %811 = vperm.xlu0 %810, %v391
        %v812 = vpop.permute.xlu0 %811
        %814 = vset.pattern.permute.xlu0 1
        %815 = vperm.xlu0 %814, %v392
        %v816 = vpop.permute.xlu0 %815
        %818 = vset.pattern.permute.xlu0 1
        %819 = vperm.xlu0 %818, %v393
        %v820 = vpop.permute.xlu0 %819
        %822 = vset.pattern.permute.xlu0 1
        %823 = vperm.xlu0 %822, %v394
        %v824 = vpop.permute.xlu0 %823
        %826 = vset.pattern.permute.xlu0 1
        %827 = vperm.xlu0 %826, %v395
        %v828 = vpop.permute.xlu0 %827
        %830 = vset.pattern.permute.xlu0 1
        %831 = vperm.xlu0 %830, %v396
        %v832 = vpop.permute.xlu0 %831
        %834 = vset.pattern.permute.xlu0 1
        %835 = vperm.xlu0 %834, %v397
        %v836 = vpop.permute.xlu0 %835
        %v839 = vlaneseq
        %v840 = vshrl.u32 %v839, 7
        %v841 = vsub.s32 0, %v840
        %v842 = vrot.slane %v709, %v841
        %v843 = vlaneseq
        %v844 = vshrl.u32 %v843, 7
        %v845 = vsub.s32 1, %v844
        %v846 = vrot.slane %v709, %v845
        %v847 = vlaneseq
        %v848 = vshrl.u32 %v847, 7
        %v849 = vsub.s32 2, %v848
        %v850 = vrot.slane %v709, %v849
        %v851 = vlaneseq
        %v852 = vshrl.u32 %v851, 7
        %v853 = vsub.s32 3, %v852
        %v854 = vrot.slane %v709, %v853
        %v859 = vmul.f32 %v712, %v842
        %v860 = vmul.f32 %v712, %v846
        %v861 = vmul.f32 %v712, %v850
        %v862 = vmul.f32 %v712, %v854
        %v863 = vmul.f32 %v716, %v842
        %v864 = vmul.f32 %v716, %v846
        %v865 = vmul.f32 %v716, %v850
        %v866 = vmul.f32 %v716, %v854
        %v867 = vmul.f32 %v720, %v842
        %v868 = vmul.f32 %v720, %v846
        %v869 = vmul.f32 %v720, %v850
        %v870 = vmul.f32 %v720, %v854
        %v871 = vmul.f32 %v724, %v842
        %v872 = vmul.f32 %v724, %v846
        %v873 = vmul.f32 %v724, %v850
        %v874 = vmul.f32 %v724, %v854
        %v875 = vmul.f32 %v728, %v842
        %v876 = vmul.f32 %v728, %v846
        %v877 = vmul.f32 %v728, %v850
        %v878 = vmul.f32 %v728, %v854
        %v879 = vmul.f32 %v732, %v842
        %v880 = vmul.f32 %v732, %v846
        %v881 = vmul.f32 %v732, %v850
        %v882 = vmul.f32 %v732, %v854
        %v883 = vmul.f32 %v736, %v842
        %v884 = vmul.f32 %v736, %v846
        %v885 = vmul.f32 %v736, %v850
        %v886 = vmul.f32 %v736, %v854
        %v887 = vmul.f32 %v740, %v842
        %v888 = vmul.f32 %v740, %v846
        %v889 = vmul.f32 %v740, %v850
        %v890 = vmul.f32 %v740, %v854
        %v891 = vmul.f32 %v744, %v842
        %v892 = vmul.f32 %v744, %v846
        %v893 = vmul.f32 %v744, %v850
        %v894 = vmul.f32 %v744, %v854
        %v895 = vmul.f32 %v748, %v842
        %v896 = vmul.f32 %v748, %v846
        %v897 = vmul.f32 %v748, %v850
        %v898 = vmul.f32 %v748, %v854
        %v899 = vmul.f32 %v752, %v842
        %v900 = vmul.f32 %v752, %v846
        %v901 = vmul.f32 %v752, %v850
        %v902 = vmul.f32 %v752, %v854
        %v903 = vmul.f32 %v756, %v842
        %v904 = vmul.f32 %v756, %v846
        %v905 = vmul.f32 %v756, %v850
        %v906 = vmul.f32 %v756, %v854
        %v907 = vmul.f32 %v760, %v842
        %v908 = vmul.f32 %v760, %v846
        %v909 = vmul.f32 %v760, %v850
        %v910 = vmul.f32 %v760, %v854
        %v911 = vmul.f32 %v764, %v842
        %v912 = vmul.f32 %v764, %v846
        %v913 = vmul.f32 %v764, %v850
        %v914 = vmul.f32 %v764, %v854
        %v915 = vmul.f32 %v768, %v842
        %v916 = vmul.f32 %v768, %v846
        %v917 = vmul.f32 %v768, %v850
        %v918 = vmul.f32 %v768, %v854
        %v919 = vmul.f32 %v772, %v842
        %v920 = vmul.f32 %v772, %v846
        %v921 = vmul.f32 %v772, %v850
        %v922 = vmul.f32 %v772, %v854
        %v923 = vmul.f32 %v776, %v842
        %v924 = vmul.f32 %v776, %v846
        %v925 = vmul.f32 %v776, %v850
        %v926 = vmul.f32 %v776, %v854
        %v927 = vmul.f32 %v780, %v842
        %v928 = vmul.f32 %v780, %v846
        %v929 = vmul.f32 %v780, %v850
        %v930 = vmul.f32 %v780, %v854
        %v931 = vmul.f32 %v784, %v842
        %v932 = vmul.f32 %v784, %v846
        %v933 = vmul.f32 %v784, %v850
        %v934 = vmul.f32 %v784, %v854
        %v935 = vmul.f32 %v788, %v842
        %v936 = vmul.f32 %v788, %v846
        %v937 = vmul.f32 %v788, %v850
        %v938 = vmul.f32 %v788, %v854
        %v939 = vmul.f32 %v792, %v842
        %v940 = vmul.f32 %v792, %v846
        %v941 = vmul.f32 %v792, %v850
        %v942 = vmul.f32 %v792, %v854
        %v943 = vmul.f32 %v796, %v842
        %v944 = vmul.f32 %v796, %v846
        %v945 = vmul.f32 %v796, %v850
        %v946 = vmul.f32 %v796, %v854
        %v947 = vmul.f32 %v800, %v842
        %v948 = vmul.f32 %v800, %v846
        %v949 = vmul.f32 %v800, %v850
        %v950 = vmul.f32 %v800, %v854
        %v951 = vmul.f32 %v804, %v842
        %v952 = vmul.f32 %v804, %v846
        %v953 = vmul.f32 %v804, %v850
        %v954 = vmul.f32 %v804, %v854
        %v955 = vmul.f32 %v808, %v842
        %v956 = vmul.f32 %v808, %v846
        %v957 = vmul.f32 %v808, %v850
        %v958 = vmul.f32 %v808, %v854
        %v959 = vmul.f32 %v812, %v842
        %v960 = vmul.f32 %v812, %v846
        %v961 = vmul.f32 %v812, %v850
        %v962 = vmul.f32 %v812, %v854
        %v963 = vmul.f32 %v816, %v842
        %v964 = vmul.f32 %v816, %v846
        %v965 = vmul.f32 %v816, %v850
        %v966 = vmul.f32 %v816, %v854
        %v967 = vmul.f32 %v820, %v842
        %v968 = vmul.f32 %v820, %v846
        %v969 = vmul.f32 %v820, %v850
        %v970 = vmul.f32 %v820, %v854
        %v971 = vmul.f32 %v824, %v842
        %v972 = vmul.f32 %v824, %v846
        %v973 = vmul.f32 %v824, %v850
        %v974 = vmul.f32 %v824, %v854
        %v975 = vmul.f32 %v828, %v842
        %v976 = vmul.f32 %v828, %v846
        %v977 = vmul.f32 %v828, %v850
        %v978 = vmul.f32 %v828, %v854
        %v979 = vmul.f32 %v832, %v842
        %v980 = vmul.f32 %v832, %v846
        %v981 = vmul.f32 %v832, %v850
        %v982 = vmul.f32 %v832, %v854
        %v983 = vmul.f32 %v836, %v842
        %v984 = vmul.f32 %v836, %v846
        %v985 = vmul.f32 %v836, %v850
        %v986 = vmul.f32 %v836, %v854
        %v987 = vadd.f32 %v580, %v859
        %v988 = vadd.f32 %v581, %v860
        %v989 = vadd.f32 %v582, %v861
        %v990 = vadd.f32 %v583, %v862
        %v991 = vadd.f32 %v584, %v863
        %v992 = vadd.f32 %v585, %v864
        %v993 = vadd.f32 %v586, %v865
        %v994 = vadd.f32 %v587, %v866
        %v995 = vadd.f32 %v588, %v867
        %v996 = vadd.f32 %v589, %v868
        %v997 = vadd.f32 %v590, %v869
        %v998 = vadd.f32 %v591, %v870
        %v999 = vadd.f32 %v592, %v871
        %v1000 = vadd.f32 %v593, %v872
        %v1001 = vadd.f32 %v594, %v873
        %v1002 = vadd.f32 %v595, %v874
        %v1003 = vadd.f32 %v596, %v875
        %v1004 = vadd.f32 %v597, %v876
        %v1005 = vadd.f32 %v598, %v877
        %v1006 = vadd.f32 %v599, %v878
        %v1007 = vadd.f32 %v600, %v879
        %v1008 = vadd.f32 %v601, %v880
        %v1009 = vadd.f32 %v602, %v881
        %v1010 = vadd.f32 %v603, %v882
        %v1011 = vadd.f32 %v604, %v883
        %v1012 = vadd.f32 %v605, %v884
        %v1013 = vadd.f32 %v606, %v885
        %v1014 = vadd.f32 %v607, %v886
        %v1015 = vadd.f32 %v608, %v887
        %v1016 = vadd.f32 %v609, %v888
        %v1017 = vadd.f32 %v610, %v889
        %v1018 = vadd.f32 %v611, %v890
        %v1019 = vadd.f32 %v612, %v891
        %v1020 = vadd.f32 %v613, %v892
        %v1021 = vadd.f32 %v614, %v893
        %v1022 = vadd.f32 %v615, %v894
        %v1023 = vadd.f32 %v616, %v895
        %v1024 = vadd.f32 %v617, %v896
        %v1025 = vadd.f32 %v618, %v897
        %v1026 = vadd.f32 %v619, %v898
        %v1027 = vadd.f32 %v620, %v899
        %v1028 = vadd.f32 %v621, %v900
        %v1029 = vadd.f32 %v622, %v901
        %v1030 = vadd.f32 %v623, %v902
        %v1031 = vadd.f32 %v624, %v903
        %v1032 = vadd.f32 %v625, %v904
        %v1033 = vadd.f32 %v626, %v905
        %v1034 = vadd.f32 %v627, %v906
        %v1035 = vadd.f32 %v628, %v907
        %v1036 = vadd.f32 %v629, %v908
        %v1037 = vadd.f32 %v630, %v909
        %v1038 = vadd.f32 %v631, %v910
        %v1039 = vadd.f32 %v632, %v911
        %v1040 = vadd.f32 %v633, %v912
        %v1041 = vadd.f32 %v634, %v913
        %v1042 = vadd.f32 %v635, %v914
        %v1043 = vadd.f32 %v636, %v915
        %v1044 = vadd.f32 %v637, %v916
        %v1045 = vadd.f32 %v638, %v917
        %v1046 = vadd.f32 %v639, %v918
        %v1047 = vadd.f32 %v640, %v919
        %v1048 = vadd.f32 %v641, %v920
        %v1049 = vadd.f32 %v642, %v921
        %v1050 = vadd.f32 %v643, %v922
        %v1051 = vadd.f32 %v644, %v923
        %v1052 = vadd.f32 %v645, %v924
        %v1053 = vadd.f32 %v646, %v925
        %v1054 = vadd.f32 %v647, %v926
        %v1055 = vadd.f32 %v648, %v927
        %v1056 = vadd.f32 %v649, %v928
        %v1057 = vadd.f32 %v650, %v929
        %v1058 = vadd.f32 %v651, %v930
        %v1059 = vadd.f32 %v652, %v931
        %v1060 = vadd.f32 %v653, %v932
        %v1061 = vadd.f32 %v654, %v933
        %v1062 = vadd.f32 %v655, %v934
        %v1063 = vadd.f32 %v656, %v935
        %v1064 = vadd.f32 %v657, %v936
        %v1065 = vadd.f32 %v658, %v937
        %v1066 = vadd.f32 %v659, %v938
        %v1067 = vadd.f32 %v660, %v939
        %v1068 = vadd.f32 %v661, %v940
        %v1069 = vadd.f32 %v662, %v941
        %v1070 = vadd.f32 %v663, %v942
        %v1071 = vadd.f32 %v664, %v943
        %v1072 = vadd.f32 %v665, %v944
        %v1073 = vadd.f32 %v666, %v945
        %v1074 = vadd.f32 %v667, %v946
        %v1075 = vadd.f32 %v668, %v947
        %v1076 = vadd.f32 %v669, %v948
        %v1077 = vadd.f32 %v670, %v949
        %v1078 = vadd.f32 %v671, %v950
        %v1079 = vadd.f32 %v672, %v951
        %v1080 = vadd.f32 %v673, %v952
        %v1081 = vadd.f32 %v674, %v953
        %v1082 = vadd.f32 %v675, %v954
        %v1083 = vadd.f32 %v676, %v955
        %v1084 = vadd.f32 %v677, %v956
        %v1085 = vadd.f32 %v678, %v957
        %v1086 = vadd.f32 %v679, %v958
        %v1087 = vadd.f32 %v680, %v959
        %v1088 = vadd.f32 %v681, %v960
        %v1089 = vadd.f32 %v682, %v961
        %v1090 = vadd.f32 %v683, %v962
        %v1091 = vadd.f32 %v684, %v963
        %v1092 = vadd.f32 %v685, %v964
        %v1093 = vadd.f32 %v686, %v965
        %v1094 = vadd.f32 %v687, %v966
        %v1095 = vadd.f32 %v688, %v967
        %v1096 = vadd.f32 %v689, %v968
        %v1097 = vadd.f32 %v690, %v969
        %v1098 = vadd.f32 %v691, %v970
        %v1099 = vadd.f32 %v692, %v971
        %v1100 = vadd.f32 %v693, %v972
        %v1101 = vadd.f32 %v694, %v973
        %v1102 = vadd.f32 %v695, %v974
        %v1103 = vadd.f32 %v696, %v975
        %v1104 = vadd.f32 %v697, %v976
        %v1105 = vadd.f32 %v698, %v977
        %v1106 = vadd.f32 %v699, %v978
        %v1107 = vadd.f32 %v700, %v979
        %v1108 = vadd.f32 %v701, %v980
        %v1109 = vadd.f32 %v702, %v981
        %v1110 = vadd.f32 %v703, %v982
        %v1111 = vadd.f32 %v704, %v983
        %v1112 = vadd.f32 %v705, %v984
        %v1113 = vadd.f32 %v706, %v985
        %v1114 = vadd.f32 %v707, %v986
        %v1115 = vld [vmem:[%s2] sm:$0xf]
        %v1117 = vlaneseq
        %v1118 = vshrl.u32 %v1117, 7
        %v1119 = vsub.s32 0, %v1118
        %v1120 = vrot.slane %v1115, %v1119
        %v1121 = vlaneseq
        %v1122 = vshrl.u32 %v1121, 7
        %v1123 = vsub.s32 1, %v1122
        %v1124 = vrot.slane %v1115, %v1123
        %v1125 = vlaneseq
        %v1126 = vshrl.u32 %v1125, 7
        %v1127 = vsub.s32 2, %v1126
        %v1128 = vrot.slane %v1115, %v1127
        %v1129 = vlaneseq
        %v1130 = vshrl.u32 %v1129, 7
        %v1131 = vsub.s32 3, %v1130
        %v1132 = vrot.slane %v1115, %v1131
        %v1137 = vadd.f32 %v987, %v1120
        %v1138 = vadd.f32 %v988, %v1124
        %v1139 = vadd.f32 %v989, %v1128
        %v1140 = vadd.f32 %v990, %v1132
        %v1141 = vadd.f32 %v991, %v1120
        %v1142 = vadd.f32 %v992, %v1124
        %v1143 = vadd.f32 %v993, %v1128
        %v1144 = vadd.f32 %v994, %v1132
        %v1145 = vadd.f32 %v995, %v1120
        %v1146 = vadd.f32 %v996, %v1124
        %v1147 = vadd.f32 %v997, %v1128
        %v1148 = vadd.f32 %v998, %v1132
        %v1149 = vadd.f32 %v999, %v1120
        %v1150 = vadd.f32 %v1000, %v1124
        %v1151 = vadd.f32 %v1001, %v1128
        %v1152 = vadd.f32 %v1002, %v1132
        %v1153 = vadd.f32 %v1003, %v1120
        %v1154 = vadd.f32 %v1004, %v1124
        %v1155 = vadd.f32 %v1005, %v1128
        %v1156 = vadd.f32 %v1006, %v1132
        %v1157 = vadd.f32 %v1007, %v1120
        %v1158 = vadd.f32 %v1008, %v1124
        %v1159 = vadd.f32 %v1009, %v1128
        %v1160 = vadd.f32 %v1010, %v1132
        %v1161 = vadd.f32 %v1011, %v1120
        %v1162 = vadd.f32 %v1012, %v1124
        %v1163 = vadd.f32 %v1013, %v1128
        %v1164 = vadd.f32 %v1014, %v1132
        %v1165 = vadd.f32 %v1015, %v1120
        %v1166 = vadd.f32 %v1016, %v1124
        %v1167 = vadd.f32 %v1017, %v1128
        %v1168 = vadd.f32 %v1018, %v1132
        %v1169 = vadd.f32 %v1019, %v1120
        %v1170 = vadd.f32 %v1020, %v1124
        %v1171 = vadd.f32 %v1021, %v1128
        %v1172 = vadd.f32 %v1022, %v1132
        %v1173 = vadd.f32 %v1023, %v1120
        %v1174 = vadd.f32 %v1024, %v1124
        %v1175 = vadd.f32 %v1025, %v1128
        %v1176 = vadd.f32 %v1026, %v1132
        %v1177 = vadd.f32 %v1027, %v1120
        %v1178 = vadd.f32 %v1028, %v1124
        %v1179 = vadd.f32 %v1029, %v1128
        %v1180 = vadd.f32 %v1030, %v1132
        %v1181 = vadd.f32 %v1031, %v1120
        %v1182 = vadd.f32 %v1032, %v1124
        %v1183 = vadd.f32 %v1033, %v1128
        %v1184 = vadd.f32 %v1034, %v1132
        %v1185 = vadd.f32 %v1035, %v1120
        %v1186 = vadd.f32 %v1036, %v1124
        %v1187 = vadd.f32 %v1037, %v1128
        %v1188 = vadd.f32 %v1038, %v1132
        %v1189 = vadd.f32 %v1039, %v1120
        %v1190 = vadd.f32 %v1040, %v1124
        %v1191 = vadd.f32 %v1041, %v1128
        %v1192 = vadd.f32 %v1042, %v1132
        %v1193 = vadd.f32 %v1043, %v1120
        %v1194 = vadd.f32 %v1044, %v1124
        %v1195 = vadd.f32 %v1045, %v1128
        %v1196 = vadd.f32 %v1046, %v1132
        %v1197 = vadd.f32 %v1047, %v1120
        %v1198 = vadd.f32 %v1048, %v1124
        %v1199 = vadd.f32 %v1049, %v1128
        %v1200 = vadd.f32 %v1050, %v1132
        %v1201 = vadd.f32 %v1051, %v1120
        %v1202 = vadd.f32 %v1052, %v1124
        %v1203 = vadd.f32 %v1053, %v1128
        %v1204 = vadd.f32 %v1054, %v1132
        %v1205 = vadd.f32 %v1055, %v1120
        %v1206 = vadd.f32 %v1056, %v1124
        %v1207 = vadd.f32 %v1057, %v1128
        %v1208 = vadd.f32 %v1058, %v1132
        %v1209 = vadd.f32 %v1059, %v1120
        %v1210 = vadd.f32 %v1060, %v1124
        %v1211 = vadd.f32 %v1061, %v1128
        %v1212 = vadd.f32 %v1062, %v1132
        %v1213 = vadd.f32 %v1063, %v1120
        %v1214 = vadd.f32 %v1064, %v1124
        %v1215 = vadd.f32 %v1065, %v1128
        %v1216 = vadd.f32 %v1066, %v1132
        %v1217 = vadd.f32 %v1067, %v1120
        %v1218 = vadd.f32 %v1068, %v1124
        %v1219 = vadd.f32 %v1069, %v1128
        %v1220 = vadd.f32 %v1070, %v1132
        %v1221 = vadd.f32 %v1071, %v1120
        %v1222 = vadd.f32 %v1072, %v1124
        %v1223 = vadd.f32 %v1073, %v1128
        %v1224 = vadd.f32 %v1074, %v1132
        %v1225 = vadd.f32 %v1075, %v1120
        %v1226 = vadd.f32 %v1076, %v1124
        %v1227 = vadd.f32 %v1077, %v1128
        %v1228 = vadd.f32 %v1078, %v1132
        %v1229 = vadd.f32 %v1079, %v1120
        %v1230 = vadd.f32 %v1080, %v1124
        %v1231 = vadd.f32 %v1081, %v1128
        %v1232 = vadd.f32 %v1082, %v1132
        %v1233 = vadd.f32 %v1083, %v1120
        %v1234 = vadd.f32 %v1084, %v1124
        %v1235 = vadd.f32 %v1085, %v1128
        %v1236 = vadd.f32 %v1086, %v1132
        %v1237 = vadd.f32 %v1087, %v1120
        %v1238 = vadd.f32 %v1088, %v1124
        %v1239 = vadd.f32 %v1089, %v1128
        %v1240 = vadd.f32 %v1090, %v1132
        %v1241 = vadd.f32 %v1091, %v1120
        %v1242 = vadd.f32 %v1092, %v1124
        %v1243 = vadd.f32 %v1093, %v1128
        %v1244 = vadd.f32 %v1094, %v1132
        %v1245 = vadd.f32 %v1095, %v1120
        %v1246 = vadd.f32 %v1096, %v1124
        %v1247 = vadd.f32 %v1097, %v1128
        %v1248 = vadd.f32 %v1098, %v1132
        %v1249 = vadd.f32 %v1099, %v1120
        %v1250 = vadd.f32 %v1100, %v1124
        %v1251 = vadd.f32 %v1101, %v1128
        %v1252 = vadd.f32 %v1102, %v1132
        %v1253 = vadd.f32 %v1103, %v1120
        %v1254 = vadd.f32 %v1104, %v1124
        %v1255 = vadd.f32 %v1105, %v1128
        %v1256 = vadd.f32 %v1106, %v1132
        %v1257 = vadd.f32 %v1107, %v1120
        %v1258 = vadd.f32 %v1108, %v1124
        %v1259 = vadd.f32 %v1109, %v1128
        %v1260 = vadd.f32 %v1110, %v1132
        %v1261 = vadd.f32 %v1111, %v1120
        %v1262 = vadd.f32 %v1112, %v1124
        %v1263 = vadd.f32 %v1113, %v1128
        %v1264 = vadd.f32 %v1114, %v1132
        %v1265 = vmax.f32 %v1137, 0.0
        %v1266 = vmax.f32 %v1138, 0.0
        %v1267 = vmax.f32 %v1139, 0.0
        %v1268 = vmax.f32 %v1140, 0.0
        %v1269 = vmax.f32 %v1141, 0.0
        %v1270 = vmax.f32 %v1142, 0.0
        %v1271 = vmax.f32 %v1143, 0.0
        %v1272 = vmax.f32 %v1144, 0.0
        %v1273 = vmax.f32 %v1145, 0.0
        %v1274 = vmax.f32 %v1146, 0.0
        %v1275 = vmax.f32 %v1147, 0.0
        %v1276 = vmax.f32 %v1148, 0.0
        %v1277 = vmax.f32 %v1149, 0.0
        %v1278 = vmax.f32 %v1150, 0.0
        %v1279 = vmax.f32 %v1151, 0.0
        %v1280 = vmax.f32 %v1152, 0.0
        %v1281 = vmax.f32 %v1153, 0.0
        %v1282 = vmax.f32 %v1154, 0.0
        %v1283 = vmax.f32 %v1155, 0.0
        %v1284 = vmax.f32 %v1156, 0.0
        %v1285 = vmax.f32 %v1157, 0.0
        %v1286 = vmax.f32 %v1158, 0.0
        %v1287 = vmax.f32 %v1159, 0.0
        %v1288 = vmax.f32 %v1160, 0.0
        %v1289 = vmax.f32 %v1161, 0.0
        %v1290 = vmax.f32 %v1162, 0.0
        %v1291 = vmax.f32 %v1163, 0.0
        %v1292 = vmax.f32 %v1164, 0.0
        %v1293 = vmax.f32 %v1165, 0.0
        %v1294 = vmax.f32 %v1166, 0.0
        %v1295 = vmax.f32 %v1167, 0.0
        %v1296 = vmax.f32 %v1168, 0.0
        %v1297 = vmax.f32 %v1169, 0.0
        %v1298 = vmax.f32 %v1170, 0.0
        %v1299 = vmax.f32 %v1171, 0.0
        %v1300 = vmax.f32 %v1172, 0.0
        %v1301 = vmax.f32 %v1173, 0.0
        %v1302 = vmax.f32 %v1174, 0.0
        %v1303 = vmax.f32 %v1175, 0.0
        %v1304 = vmax.f32 %v1176, 0.0
        %v1305 = vmax.f32 %v1177, 0.0
        %v1306 = vmax.f32 %v1178, 0.0
        %v1307 = vmax.f32 %v1179, 0.0
        %v1308 = vmax.f32 %v1180, 0.0
        %v1309 = vmax.f32 %v1181, 0.0
        %v1310 = vmax.f32 %v1182, 0.0
        %v1311 = vmax.f32 %v1183, 0.0
        %v1312 = vmax.f32 %v1184, 0.0
        %v1313 = vmax.f32 %v1185, 0.0
        %v1314 = vmax.f32 %v1186, 0.0
        %v1315 = vmax.f32 %v1187, 0.0
        %v1316 = vmax.f32 %v1188, 0.0
        %v1317 = vmax.f32 %v1189, 0.0
        %v1318 = vmax.f32 %v1190, 0.0
        %v1319 = vmax.f32 %v1191, 0.0
        %v1320 = vmax.f32 %v1192, 0.0
        %v1321 = vmax.f32 %v1193, 0.0
        %v1322 = vmax.f32 %v1194, 0.0
        %v1323 = vmax.f32 %v1195, 0.0
        %v1324 = vmax.f32 %v1196, 0.0
        %v1325 = vmax.f32 %v1197, 0.0
        %v1326 = vmax.f32 %v1198, 0.0
        %v1327 = vmax.f32 %v1199, 0.0
        %v1328 = vmax.f32 %v1200, 0.0
        %v1329 = vmax.f32 %v1201, 0.0
        %v1330 = vmax.f32 %v1202, 0.0
        %v1331 = vmax.f32 %v1203, 0.0
        %v1332 = vmax.f32 %v1204, 0.0
        %v1333 = vmax.f32 %v1205, 0.0
        %v1334 = vmax.f32 %v1206, 0.0
        %v1335 = vmax.f32 %v1207, 0.0
        %v1336 = vmax.f32 %v1208, 0.0
        %v1337 = vmax.f32 %v1209, 0.0
        %v1338 = vmax.f32 %v1210, 0.0
        %v1339 = vmax.f32 %v1211, 0.0
        %v1340 = vmax.f32 %v1212, 0.0
        %v1341 = vmax.f32 %v1213, 0.0
        %v1342 = vmax.f32 %v1214, 0.0
        %v1343 = vmax.f32 %v1215, 0.0
        %v1344 = vmax.f32 %v1216, 0.0
        %v1345 = vmax.f32 %v1217, 0.0
        %v1346 = vmax.f32 %v1218, 0.0
        %v1347 = vmax.f32 %v1219, 0.0
        %v1348 = vmax.f32 %v1220, 0.0
        %v1349 = vmax.f32 %v1221, 0.0
        %v1350 = vmax.f32 %v1222, 0.0
        %v1351 = vmax.f32 %v1223, 0.0
        %v1352 = vmax.f32 %v1224, 0.0
        %v1353 = vmax.f32 %v1225, 0.0
        %v1354 = vmax.f32 %v1226, 0.0
        %v1355 = vmax.f32 %v1227, 0.0
        %v1356 = vmax.f32 %v1228, 0.0
        %v1357 = vmax.f32 %v1229, 0.0
        %v1358 = vmax.f32 %v1230, 0.0
        %v1359 = vmax.f32 %v1231, 0.0
        %v1360 = vmax.f32 %v1232, 0.0
        %v1361 = vmax.f32 %v1233, 0.0
        %v1362 = vmax.f32 %v1234, 0.0
        %v1363 = vmax.f32 %v1235, 0.0
        %v1364 = vmax.f32 %v1236, 0.0
        %v1365 = vmax.f32 %v1237, 0.0
        %v1366 = vmax.f32 %v1238, 0.0
        %v1367 = vmax.f32 %v1239, 0.0
        %v1368 = vmax.f32 %v1240, 0.0
        %v1369 = vmax.f32 %v1241, 0.0
        %v1370 = vmax.f32 %v1242, 0.0
        %v1371 = vmax.f32 %v1243, 0.0
        %v1372 = vmax.f32 %v1244, 0.0
        %v1373 = vmax.f32 %v1245, 0.0
        %v1374 = vmax.f32 %v1246, 0.0
        %v1375 = vmax.f32 %v1247, 0.0
        %v1376 = vmax.f32 %v1248, 0.0
        %v1377 = vmax.f32 %v1249, 0.0
        %v1378 = vmax.f32 %v1250, 0.0
        %v1379 = vmax.f32 %v1251, 0.0
        %v1380 = vmax.f32 %v1252, 0.0
        %v1381 = vmax.f32 %v1253, 0.0
        %v1382 = vmax.f32 %v1254, 0.0
        %v1383 = vmax.f32 %v1255, 0.0
        %v1384 = vmax.f32 %v1256, 0.0
        %v1385 = vmax.f32 %v1257, 0.0
        %v1386 = vmax.f32 %v1258, 0.0
        %v1387 = vmax.f32 %v1259, 0.0
        %v1388 = vmax.f32 %v1260, 0.0
        %v1389 = vmax.f32 %v1261, 0.0
        %v1390 = vmax.f32 %v1262, 0.0
        %v1391 = vmax.f32 %v1263, 0.0
        %v1392 = vmax.f32 %v1264, 0.0
        %v1393 = vpack.c.bf16 %v1269, %v1265
        %v1394 = vpack.c.bf16 %v1270, %v1266
        %v1395 = vpack.c.bf16 %v1271, %v1267
        %v1396 = vpack.c.bf16 %v1272, %v1268
        %v1397 = vpack.c.bf16 %v1277, %v1273
        %v1398 = vpack.c.bf16 %v1278, %v1274
        %v1399 = vpack.c.bf16 %v1279, %v1275
        %v1400 = vpack.c.bf16 %v1280, %v1276
        %v1401 = vpack.c.bf16 %v1285, %v1281
        %v1402 = vpack.c.bf16 %v1286, %v1282
        %v1403 = vpack.c.bf16 %v1287, %v1283
        %v1404 = vpack.c.bf16 %v1288, %v1284
        %v1405 = vpack.c.bf16 %v1293, %v1289
        %v1406 = vpack.c.bf16 %v1294, %v1290
        %v1407 = vpack.c.bf16 %v1295, %v1291
        %v1408 = vpack.c.bf16 %v1296, %v1292
        %v1409 = vpack.c.bf16 %v1301, %v1297
        %v1410 = vpack.c.bf16 %v1302, %v1298
        %v1411 = vpack.c.bf16 %v1303, %v1299
        %v1412 = vpack.c.bf16 %v1304, %v1300
        %v1413 = vpack.c.bf16 %v1309, %v1305
        %v1414 = vpack.c.bf16 %v1310, %v1306
        %v1415 = vpack.c.bf16 %v1311, %v1307
        %v1416 = vpack.c.bf16 %v1312, %v1308
        %v1417 = vpack.c.bf16 %v1317, %v1313
        %v1418 = vpack.c.bf16 %v1318, %v1314
        %v1419 = vpack.c.bf16 %v1319, %v1315
        %v1420 = vpack.c.bf16 %v1320, %v1316
        %v1421 = vpack.c.bf16 %v1325, %v1321
        %v1422 = vpack.c.bf16 %v1326, %v1322
        %v1423 = vpack.c.bf16 %v1327, %v1323
        %v1424 = vpack.c.bf16 %v1328, %v1324
        %v1425 = vpack.c.bf16 %v1333, %v1329
        %v1426 = vpack.c.bf16 %v1334, %v1330
        %v1427 = vpack.c.bf16 %v1335, %v1331
        %v1428 = vpack.c.bf16 %v1336, %v1332
        %v1429 = vpack.c.bf16 %v1341, %v1337
        %v1430 = vpack.c.bf16 %v1342, %v1338
        %v1431 = vpack.c.bf16 %v1343, %v1339
        %v1432 = vpack.c.bf16 %v1344, %v1340
        %v1433 = vpack.c.bf16 %v1349, %v1345
        %v1434 = vpack.c.bf16 %v1350, %v1346
        %v1435 = vpack.c.bf16 %v1351, %v1347
        %v1436 = vpack.c.bf16 %v1352, %v1348
        %v1437 = vpack.c.bf16 %v1357, %v1353
        %v1438 = vpack.c.bf16 %v1358, %v1354
        %v1439 = vpack.c.bf16 %v1359, %v1355
        %v1440 = vpack.c.bf16 %v1360, %v1356
        %v1441 = vpack.c.bf16 %v1365, %v1361
        %v1442 = vpack.c.bf16 %v1366, %v1362
        %v1443 = vpack.c.bf16 %v1367, %v1363
        %v1444 = vpack.c.bf16 %v1368, %v1364
        %v1445 = vpack.c.bf16 %v1373, %v1369
        %v1446 = vpack.c.bf16 %v1374, %v1370
        %v1447 = vpack.c.bf16 %v1375, %v1371
        %v1448 = vpack.c.bf16 %v1376, %v1372
        %v1449 = vpack.c.bf16 %v1381, %v1377
        %v1450 = vpack.c.bf16 %v1382, %v1378
        %v1451 = vpack.c.bf16 %v1383, %v1379
        %v1452 = vpack.c.bf16 %v1384, %v1380
        %v1453 = vpack.c.bf16 %v1389, %v1385
        %v1454 = vpack.c.bf16 %v1390, %v1386
        %v1455 = vpack.c.bf16 %v1391, %v1387
        %v1456 = vpack.c.bf16 %v1392, %v1388
        %v1457 = vld [vmem:[#allocation3] sm:$0xff]
        %v1458 = vld [vmem:[#allocation3 + $0x8] sm:$0xff]
        %v1459 = vld [vmem:[#allocation3 + $0x10] sm:$0xff]
        %v1460 = vld [vmem:[#allocation3 + $0x18] sm:$0xff]
        %v1461 = vld [vmem:[#allocation3 + $0x20] sm:$0xff]
        %v1462 = vld [vmem:[#allocation3 + $0x28] sm:$0xff]
        %v1463 = vld [vmem:[#allocation3 + $0x30] sm:$0xff]
        %v1464 = vld [vmem:[#allocation3 + $0x38] sm:$0xff]
        %v1465 = vld [vmem:[#allocation3 + $0x40] sm:$0xff]
        %v1466 = vld [vmem:[#allocation3 + $0x48] sm:$0xff]
        %v1467 = vld [vmem:[#allocation3 + $0x50] sm:$0xff]
        %v1468 = vld [vmem:[#allocation3 + $0x58] sm:$0xff]
        %v1469 = vld [vmem:[#allocation3 + $0x60] sm:$0xff]
        %v1470 = vld [vmem:[#allocation3 + $0x68] sm:$0xff]
        %v1471 = vld [vmem:[#allocation3 + $0x70] sm:$0xff]
        %v1472 = vld [vmem:[#allocation3 + $0x78] sm:$0xff]
        %v1473 = vld [vmem:[#allocation3 + $0x80] sm:$0xff]
        %v1474 = vld [vmem:[#allocation3 + $0x88] sm:$0xff]
        %v1475 = vld [vmem:[#allocation3 + $0x90] sm:$0xff]
        %v1476 = vld [vmem:[#allocation3 + $0x98] sm:$0xff]
        %v1477 = vld [vmem:[#allocation3 + $0xa0] sm:$0xff]
        %v1478 = vld [vmem:[#allocation3 + $0xa8] sm:$0xff]
        %v1479 = vld [vmem:[#allocation3 + $0xb0] sm:$0xff]
        %v1480 = vld [vmem:[#allocation3 + $0xb8] sm:$0xff]
        %v1481 = vld [vmem:[#allocation3 + $0xc0] sm:$0xff]
        %v1482 = vld [vmem:[#allocation3 + $0xc8] sm:$0xff]
        %v1483 = vld [vmem:[#allocation3 + $0xd0] sm:$0xff]
        %v1484 = vld [vmem:[#allocation3 + $0xd8] sm:$0xff]
        %v1485 = vld [vmem:[#allocation3 + $0xe0] sm:$0xff]
        %v1486 = vld [vmem:[#allocation3 + $0xe8] sm:$0xff]
        %v1487 = vld [vmem:[#allocation3 + $0xf0] sm:$0xff]
        %v1488 = vld [vmem:[#allocation3 + $0xf8] sm:$0xff]
        %v1489 = vld [vmem:[#allocation3 + $0x100] sm:$0xff]
        %v1490 = vld [vmem:[#allocation3 + $0x108] sm:$0xff]
        %v1491 = vld [vmem:[#allocation3 + $0x110] sm:$0xff]
        %v1492 = vld [vmem:[#allocation3 + $0x118] sm:$0xff]
        %v1493 = vld [vmem:[#allocation3 + $0x120] sm:$0xff]
        %v1494 = vld [vmem:[#allocation3 + $0x128] sm:$0xff]
        %v1495 = vld [vmem:[#allocation3 + $0x130] sm:$0xff]
        %v1496 = vld [vmem:[#allocation3 + $0x138] sm:$0xff]
        %v1497 = vld [vmem:[#allocation3 + $0x140] sm:$0xff]
        %v1498 = vld [vmem:[#allocation3 + $0x148] sm:$0xff]
        %v1499 = vld [vmem:[#allocation3 + $0x150] sm:$0xff]
        %v1500 = vld [vmem:[#allocation3 + $0x158] sm:$0xff]
        %v1501 = vld [vmem:[#allocation3 + $0x160] sm:$0xff]
        %v1502 = vld [vmem:[#allocation3 + $0x168] sm:$0xff]
        %v1503 = vld [vmem:[#allocation3 + $0x170] sm:$0xff]
        %v1504 = vld [vmem:[#allocation3 + $0x178] sm:$0xff]
        %v1505 = vld [vmem:[#allocation3 + $0x180] sm:$0xff]
        %v1506 = vld [vmem:[#allocation3 + $0x188] sm:$0xff]
        %v1507 = vld [vmem:[#allocation3 + $0x190] sm:$0xff]
        %v1508 = vld [vmem:[#allocation3 + $0x198] sm:$0xff]
        %v1509 = vld [vmem:[#allocation3 + $0x1a0] sm:$0xff]
        %v1510 = vld [vmem:[#allocation3 + $0x1a8] sm:$0xff]
        %v1511 = vld [vmem:[#allocation3 + $0x1b0] sm:$0xff]
        %v1512 = vld [vmem:[#allocation3 + $0x1b8] sm:$0xff]
        %v1513 = vld [vmem:[#allocation3 + $0x1c0] sm:$0xff]
        %v1514 = vld [vmem:[#allocation3 + $0x1c8] sm:$0xff]
        %v1515 = vld [vmem:[#allocation3 + $0x1d0] sm:$0xff]
        %v1516 = vld [vmem:[#allocation3 + $0x1d8] sm:$0xff]
        %v1517 = vld [vmem:[#allocation3 + $0x1e0] sm:$0xff]
        %v1518 = vld [vmem:[#allocation3 + $0x1e8] sm:$0xff]
        %v1519 = vld [vmem:[#allocation3 + $0x1f0] sm:$0xff]
        %v1520 = vld [vmem:[#allocation3 + $0x1f8] sm:$0xff]
        %v1521 = vld [vmem:[#allocation3 + $0x200] sm:$0xff]
        %v1522 = vld [vmem:[#allocation3 + $0x208] sm:$0xff]
        %v1523 = vld [vmem:[#allocation3 + $0x210] sm:$0xff]
        %v1524 = vld [vmem:[#allocation3 + $0x218] sm:$0xff]
        %v1525 = vld [vmem:[#allocation3 + $0x220] sm:$0xff]
        %v1526 = vld [vmem:[#allocation3 + $0x228] sm:$0xff]
        %v1527 = vld [vmem:[#allocation3 + $0x230] sm:$0xff]
        %v1528 = vld [vmem:[#allocation3 + $0x238] sm:$0xff]
        %v1529 = vld [vmem:[#allocation3 + $0x240] sm:$0xff]
        %v1530 = vld [vmem:[#allocation3 + $0x248] sm:$0xff]
        %v1531 = vld [vmem:[#allocation3 + $0x250] sm:$0xff]
        %v1532 = vld [vmem:[#allocation3 + $0x258] sm:$0xff]
        %v1533 = vld [vmem:[#allocation3 + $0x260] sm:$0xff]
        %v1534 = vld [vmem:[#allocation3 + $0x268] sm:$0xff]
        %v1535 = vld [vmem:[#allocation3 + $0x270] sm:$0xff]
        %v1536 = vld [vmem:[#allocation3 + $0x278] sm:$0xff]
        %v1537 = vld [vmem:[#allocation3 + $0x280] sm:$0xff]
        %v1538 = vld [vmem:[#allocation3 + $0x288] sm:$0xff]
        %v1539 = vld [vmem:[#allocation3 + $0x290] sm:$0xff]
        %v1540 = vld [vmem:[#allocation3 + $0x298] sm:$0xff]
        %v1541 = vld [vmem:[#allocation3 + $0x2a0] sm:$0xff]
        %v1542 = vld [vmem:[#allocation3 + $0x2a8] sm:$0xff]
        %v1543 = vld [vmem:[#allocation3 + $0x2b0] sm:$0xff]
        %v1544 = vld [vmem:[#allocation3 + $0x2b8] sm:$0xff]
        %v1545 = vld [vmem:[#allocation3 + $0x2c0] sm:$0xff]
        %v1546 = vld [vmem:[#allocation3 + $0x2c8] sm:$0xff]
        %v1547 = vld [vmem:[#allocation3 + $0x2d0] sm:$0xff]
        %v1548 = vld [vmem:[#allocation3 + $0x2d8] sm:$0xff]
        %v1549 = vld [vmem:[#allocation3 + $0x2e0] sm:$0xff]
        %v1550 = vld [vmem:[#allocation3 + $0x2e8] sm:$0xff]
        %v1551 = vld [vmem:[#allocation3 + $0x2f0] sm:$0xff]
        %v1552 = vld [vmem:[#allocation3 + $0x2f8] sm:$0xff]
        %v1553 = vld [vmem:[#allocation3 + $0x300] sm:$0xff]
        %v1554 = vld [vmem:[#allocation3 + $0x308] sm:$0xff]
        %v1555 = vld [vmem:[#allocation3 + $0x310] sm:$0xff]
        %v1556 = vld [vmem:[#allocation3 + $0x318] sm:$0xff]
        %v1557 = vld [vmem:[#allocation3 + $0x320] sm:$0xff]
        %v1558 = vld [vmem:[#allocation3 + $0x328] sm:$0xff]
        %v1559 = vld [vmem:[#allocation3 + $0x330] sm:$0xff]
        %v1560 = vld [vmem:[#allocation3 + $0x338] sm:$0xff]
        %v1561 = vld [vmem:[#allocation3 + $0x340] sm:$0xff]
        %v1562 = vld [vmem:[#allocation3 + $0x348] sm:$0xff]
        %v1563 = vld [vmem:[#allocation3 + $0x350] sm:$0xff]
        %v1564 = vld [vmem:[#allocation3 + $0x358] sm:$0xff]
        %v1565 = vld [vmem:[#allocation3 + $0x360] sm:$0xff]
        %v1566 = vld [vmem:[#allocation3 + $0x368] sm:$0xff]
        %v1567 = vld [vmem:[#allocation3 + $0x370] sm:$0xff]
        %v1568 = vld [vmem:[#allocation3 + $0x378] sm:$0xff]
        %v1569 = vld [vmem:[#allocation3 + $0x380] sm:$0xff]
        %v1570 = vld [vmem:[#allocation3 + $0x388] sm:$0xff]
        %v1571 = vld [vmem:[#allocation3 + $0x390] sm:$0xff]
        %v1572 = vld [vmem:[#allocation3 + $0x398] sm:$0xff]
        %v1573 = vld [vmem:[#allocation3 + $0x3a0] sm:$0xff]
        %v1574 = vld [vmem:[#allocation3 + $0x3a8] sm:$0xff]
        %v1575 = vld [vmem:[#allocation3 + $0x3b0] sm:$0xff]
        %v1576 = vld [vmem:[#allocation3 + $0x3b8] sm:$0xff]
        %v1577 = vld [vmem:[#allocation3 + $0x3c0] sm:$0xff]
        %v1578 = vld [vmem:[#allocation3 + $0x3c8] sm:$0xff]
        %v1579 = vld [vmem:[#allocation3 + $0x3d0] sm:$0xff]
        %v1580 = vld [vmem:[#allocation3 + $0x3d8] sm:$0xff]
        %v1581 = vld [vmem:[#allocation3 + $0x3e0] sm:$0xff]
        %v1582 = vld [vmem:[#allocation3 + $0x3e8] sm:$0xff]
        %v1583 = vld [vmem:[#allocation3 + $0x3f0] sm:$0xff]
        %v1584 = vld [vmem:[#allocation3 + $0x3f8] sm:$0xff]
        %v1585 = vld [vmem:[%s4] sm:$0xf]
        %v1587 = vlaneseq
        %v1588 = vshrl.u32 %v1587, 7
        %v1589 = vsub.s32 0, %v1588
        %v1590 = vrot.slane %v1585, %v1589
        %v1591 = vlaneseq
        %v1592 = vshrl.u32 %v1591, 7
        %v1593 = vsub.s32 1, %v1592
        %v1594 = vrot.slane %v1585, %v1593
        %v1595 = vlaneseq
        %v1596 = vshrl.u32 %v1595, 7
        %v1597 = vsub.s32 2, %v1596
        %v1598 = vrot.slane %v1585, %v1597
        %v1599 = vlaneseq
        %v1600 = vshrl.u32 %v1599, 7
        %v1601 = vsub.s32 3, %v1600
        %v1602 = vrot.slane %v1585, %v1601
        %v1735 = vunpack.c.l.b16 %v1457
        %v1736 = vunpack.c.h.b16 %v1457
        %v1737 = vunpack.c.l.b16 %v1458
        %v1738 = vunpack.c.h.b16 %v1458
        %v1739 = vunpack.c.l.b16 %v1459
        %v1740 = vunpack.c.h.b16 %v1459
        %v1741 = vunpack.c.l.b16 %v1460
        %v1742 = vunpack.c.h.b16 %v1460
        %v1743 = vunpack.c.l.b16 %v1461
        %v1744 = vunpack.c.h.b16 %v1461
        %v1745 = vunpack.c.l.b16 %v1462
        %v1746 = vunpack.c.h.b16 %v1462
        %v1747 = vunpack.c.l.b16 %v1463
        %v1748 = vunpack.c.h.b16 %v1463
        %v1749 = vunpack.c.l.b16 %v1464
        %v1750 = vunpack.c.h.b16 %v1464
        %v1751 = vunpack.c.l.b16 %v1465
        %v1752 = vunpack.c.h.b16 %v1465
        %v1753 = vunpack.c.l.b16 %v1466
        %v1754 = vunpack.c.h.b16 %v1466
        %v1755 = vunpack.c.l.b16 %v1467
        %v1756 = vunpack.c.h.b16 %v1467
        %v1757 = vunpack.c.l.b16 %v1468
        %v1758 = vunpack.c.h.b16 %v1468
        %v1759 = vunpack.c.l.b16 %v1469
        %v1760 = vunpack.c.h.b16 %v1469
        %v1761 = vunpack.c.l.b16 %v1470
        %v1762 = vunpack.c.h.b16 %v1470
        %v1763 = vunpack.c.l.b16 %v1471
        %v1764 = vunpack.c.h.b16 %v1471
        %v1765 = vunpack.c.l.b16 %v1472
        %v1766 = vunpack.c.h.b16 %v1472
        %v1767 = vunpack.c.l.b16 %v1473
        %v1768 = vunpack.c.h.b16 %v1473
        %v1769 = vunpack.c.l.b16 %v1474
        %v1770 = vunpack.c.h.b16 %v1474
        %v1771 = vunpack.c.l.b16 %v1475
        %v1772 = vunpack.c.h.b16 %v1475
        %v1773 = vunpack.c.l.b16 %v1476
        %v1774 = vunpack.c.h.b16 %v1476
        %v1775 = vunpack.c.l.b16 %v1477
        %v1776 = vunpack.c.h.b16 %v1477
        %v1777 = vunpack.c.l.b16 %v1478
        %v1778 = vunpack.c.h.b16 %v1478
        %v1779 = vunpack.c.l.b16 %v1479
        %v1780 = vunpack.c.h.b16 %v1479
        %v1781 = vunpack.c.l.b16 %v1480
        %v1782 = vunpack.c.h.b16 %v1480
        %v1783 = vunpack.c.l.b16 %v1481
        %v1784 = vunpack.c.h.b16 %v1481
        %v1785 = vunpack.c.l.b16 %v1482
        %v1786 = vunpack.c.h.b16 %v1482
        %v1787 = vunpack.c.l.b16 %v1483
        %v1788 = vunpack.c.h.b16 %v1483
        %v1789 = vunpack.c.l.b16 %v1484
        %v1790 = vunpack.c.h.b16 %v1484
        %v1791 = vunpack.c.l.b16 %v1485
        %v1792 = vunpack.c.h.b16 %v1485
        %v1793 = vunpack.c.l.b16 %v1486
        %v1794 = vunpack.c.h.b16 %v1486
        %v1795 = vunpack.c.l.b16 %v1487
        %v1796 = vunpack.c.h.b16 %v1487
        %v1797 = vunpack.c.l.b16 %v1488
        %v1798 = vunpack.c.h.b16 %v1488
        %v1799 = vunpack.c.l.b16 %v1489
        %v1800 = vunpack.c.h.b16 %v1489
        %v1801 = vunpack.c.l.b16 %v1490
        %v1802 = vunpack.c.h.b16 %v1490
        %v1803 = vunpack.c.l.b16 %v1491
        %v1804 = vunpack.c.h.b16 %v1491
        %v1805 = vunpack.c.l.b16 %v1492
        %v1806 = vunpack.c.h.b16 %v1492
        %v1807 = vunpack.c.l.b16 %v1493
        %v1808 = vunpack.c.h.b16 %v1493
        %v1809 = vunpack.c.l.b16 %v1494
        %v1810 = vunpack.c.h.b16 %v1494
        %v1811 = vunpack.c.l.b16 %v1495
        %v1812 = vunpack.c.h.b16 %v1495
        %v1813 = vunpack.c.l.b16 %v1496
        %v1814 = vunpack.c.h.b16 %v1496
        %v1815 = vunpack.c.l.b16 %v1497
        %v1816 = vunpack.c.h.b16 %v1497
        %v1817 = vunpack.c.l.b16 %v1498
        %v1818 = vunpack.c.h.b16 %v1498
        %v1819 = vunpack.c.l.b16 %v1499
        %v1820 = vunpack.c.h.b16 %v1499
        %v1821 = vunpack.c.l.b16 %v1500
        %v1822 = vunpack.c.h.b16 %v1500
        %v1823 = vunpack.c.l.b16 %v1501
        %v1824 = vunpack.c.h.b16 %v1501
        %v1825 = vunpack.c.l.b16 %v1502
        %v1826 = vunpack.c.h.b16 %v1502
        %v1827 = vunpack.c.l.b16 %v1503
        %v1828 = vunpack.c.h.b16 %v1503
        %v1829 = vunpack.c.l.b16 %v1504
        %v1830 = vunpack.c.h.b16 %v1504
        %v1831 = vunpack.c.l.b16 %v1505
        %v1832 = vunpack.c.h.b16 %v1505
        %v1833 = vunpack.c.l.b16 %v1506
        %v1834 = vunpack.c.h.b16 %v1506
        %v1835 = vunpack.c.l.b16 %v1507
        %v1836 = vunpack.c.h.b16 %v1507
        %v1837 = vunpack.c.l.b16 %v1508
        %v1838 = vunpack.c.h.b16 %v1508
        %v1839 = vunpack.c.l.b16 %v1509
        %v1840 = vunpack.c.h.b16 %v1509
        %v1841 = vunpack.c.l.b16 %v1510
        %v1842 = vunpack.c.h.b16 %v1510
        %v1843 = vunpack.c.l.b16 %v1511
        %v1844 = vunpack.c.h.b16 %v1511
        %v1845 = vunpack.c.l.b16 %v1512
        %v1846 = vunpack.c.h.b16 %v1512
        %v1847 = vunpack.c.l.b16 %v1513
        %v1848 = vunpack.c.h.b16 %v1513
        %v1849 = vunpack.c.l.b16 %v1514
        %v1850 = vunpack.c.h.b16 %v1514
        %v1851 = vunpack.c.l.b16 %v1515
        %v1852 = vunpack.c.h.b16 %v1515
        %v1853 = vunpack.c.l.b16 %v1516
        %v1854 = vunpack.c.h.b16 %v1516
        %v1855 = vunpack.c.l.b16 %v1517
        %v1856 = vunpack.c.h.b16 %v1517
        %v1857 = vunpack.c.l.b16 %v1518
        %v1858 = vunpack.c.h.b16 %v1518
        %v1859 = vunpack.c.l.b16 %v1519
        %v1860 = vunpack.c.h.b16 %v1519
        %v1861 = vunpack.c.l.b16 %v1520
        %v1862 = vunpack.c.h.b16 %v1520
        %v1863 = vunpack.c.l.b16 %v1521
        %v1864 = vunpack.c.h.b16 %v1521
        %v1865 = vunpack.c.l.b16 %v1522
        %v1866 = vunpack.c.h.b16 %v1522
        %v1867 = vunpack.c.l.b16 %v1523
        %v1868 = vunpack.c.h.b16 %v1523
        %v1869 = vunpack.c.l.b16 %v1524
        %v1870 = vunpack.c.h.b16 %v1524
        %v1871 = vunpack.c.l.b16 %v1525
        %v1872 = vunpack.c.h.b16 %v1525
        %v1873 = vunpack.c.l.b16 %v1526
        %v1874 = vunpack.c.h.b16 %v1526
        %v1875 = vunpack.c.l.b16 %v1527
        %v1876 = vunpack.c.h.b16 %v1527
        %v1877 = vunpack.c.l.b16 %v1528
        %v1878 = vunpack.c.h.b16 %v1528
        %v1879 = vunpack.c.l.b16 %v1529
        %v1880 = vunpack.c.h.b16 %v1529
        %v1881 = vunpack.c.l.b16 %v1530
        %v1882 = vunpack.c.h.b16 %v1530
        %v1883 = vunpack.c.l.b16 %v1531
        %v1884 = vunpack.c.h.b16 %v1531
        %v1885 = vunpack.c.l.b16 %v1532
        %v1886 = vunpack.c.h.b16 %v1532
        %v1887 = vunpack.c.l.b16 %v1533
        %v1888 = vunpack.c.h.b16 %v1533
        %v1889 = vunpack.c.l.b16 %v1534
        %v1890 = vunpack.c.h.b16 %v1534
        %v1891 = vunpack.c.l.b16 %v1535
        %v1892 = vunpack.c.h.b16 %v1535
        %v1893 = vunpack.c.l.b16 %v1536
        %v1894 = vunpack.c.h.b16 %v1536
        %v1895 = vunpack.c.l.b16 %v1537
        %v1896 = vunpack.c.h.b16 %v1537
        %v1897 = vunpack.c.l.b16 %v1538
        %v1898 = vunpack.c.h.b16 %v1538
        %v1899 = vunpack.c.l.b16 %v1539
        %v1900 = vunpack.c.h.b16 %v1539
        %v1901 = vunpack.c.l.b16 %v1540
        %v1902 = vunpack.c.h.b16 %v1540
        %v1903 = vunpack.c.l.b16 %v1541
        %v1904 = vunpack.c.h.b16 %v1541
        %v1905 = vunpack.c.l.b16 %v1542
        %v1906 = vunpack.c.h.b16 %v1542
        %v1907 = vunpack.c.l.b16 %v1543
        %v1908 = vunpack.c.h.b16 %v1543
        %v1909 = vunpack.c.l.b16 %v1544
        %v1910 = vunpack.c.h.b16 %v1544
        %v1911 = vunpack.c.l.b16 %v1545
        %v1912 = vunpack.c.h.b16 %v1545
        %v1913 = vunpack.c.l.b16 %v1546
        %v1914 = vunpack.c.h.b16 %v1546
        %v1915 = vunpack.c.l.b16 %v1547
        %v1916 = vunpack.c.h.b16 %v1547
        %v1917 = vunpack.c.l.b16 %v1548
        %v1918 = vunpack.c.h.b16 %v1548
        %v1919 = vunpack.c.l.b16 %v1549
        %v1920 = vunpack.c.h.b16 %v1549
        %v1921 = vunpack.c.l.b16 %v1550
        %v1922 = vunpack.c.h.b16 %v1550
        %v1923 = vunpack.c.l.b16 %v1551
        %v1924 = vunpack.c.h.b16 %v1551
        %v1925 = vunpack.c.l.b16 %v1552
        %v1926 = vunpack.c.h.b16 %v1552
        %v1927 = vunpack.c.l.b16 %v1553
        %v1928 = vunpack.c.h.b16 %v1553
        %v1929 = vunpack.c.l.b16 %v1554
        %v1930 = vunpack.c.h.b16 %v1554
        %v1931 = vunpack.c.l.b16 %v1555
        %v1932 = vunpack.c.h.b16 %v1555
        %v1933 = vunpack.c.l.b16 %v1556
        %v1934 = vunpack.c.h.b16 %v1556
        %v1935 = vunpack.c.l.b16 %v1557
        %v1936 = vunpack.c.h.b16 %v1557
        %v1937 = vunpack.c.l.b16 %v1558
        %v1938 = vunpack.c.h.b16 %v1558
        %v1939 = vunpack.c.l.b16 %v1559
        %v1940 = vunpack.c.h.b16 %v1559
        %v1941 = vunpack.c.l.b16 %v1560
        %v1942 = vunpack.c.h.b16 %v1560
        %v1943 = vunpack.c.l.b16 %v1561
        %v1944 = vunpack.c.h.b16 %v1561
        %v1945 = vunpack.c.l.b16 %v1562
        %v1946 = vunpack.c.h.b16 %v1562
        %v1947 = vunpack.c.l.b16 %v1563
        %v1948 = vunpack.c.h.b16 %v1563
        %v1949 = vunpack.c.l.b16 %v1564
        %v1950 = vunpack.c.h.b16 %v1564
        %v1951 = vunpack.c.l.b16 %v1565
        %v1952 = vunpack.c.h.b16 %v1565
        %v1953 = vunpack.c.l.b16 %v1566
        %v1954 = vunpack.c.h.b16 %v1566
        %v1955 = vunpack.c.l.b16 %v1567
        %v1956 = vunpack.c.h.b16 %v1567
        %v1957 = vunpack.c.l.b16 %v1568
        %v1958 = vunpack.c.h.b16 %v1568
        %v1959 = vunpack.c.l.b16 %v1569
        %v1960 = vunpack.c.h.b16 %v1569
        %v1961 = vunpack.c.l.b16 %v1570
        %v1962 = vunpack.c.h.b16 %v1570
        %v1963 = vunpack.c.l.b16 %v1571
        %v1964 = vunpack.c.h.b16 %v1571
        %v1965 = vunpack.c.l.b16 %v1572
        %v1966 = vunpack.c.h.b16 %v1572
        %v1967 = vunpack.c.l.b16 %v1573
        %v1968 = vunpack.c.h.b16 %v1573
        %v1969 = vunpack.c.l.b16 %v1574
        %v1970 = vunpack.c.h.b16 %v1574
        %v1971 = vunpack.c.l.b16 %v1575
        %v1972 = vunpack.c.h.b16 %v1575
        %v1973 = vunpack.c.l.b16 %v1576
        %v1974 = vunpack.c.h.b16 %v1576
        %v1975 = vunpack.c.l.b16 %v1577
        %v1976 = vunpack.c.h.b16 %v1577
        %v1977 = vunpack.c.l.b16 %v1578
        %v1978 = vunpack.c.h.b16 %v1578
        %v1979 = vunpack.c.l.b16 %v1579
        %v1980 = vunpack.c.h.b16 %v1579
        %v1981 = vunpack.c.l.b16 %v1580
        %v1982 = vunpack.c.h.b16 %v1580
        %v1983 = vunpack.c.l.b16 %v1581
        %v1984 = vunpack.c.h.b16 %v1581
        %v1985 = vunpack.c.l.b16 %v1582
        %v1986 = vunpack.c.h.b16 %v1582
        %v1987 = vunpack.c.l.b16 %v1583
        %v1988 = vunpack.c.h.b16 %v1583
        %v1989 = vunpack.c.l.b16 %v1584
        %v1990 = vunpack.c.h.b16 %v1584
        %v1991 = vpack.c.b16 %v1739, %v1735
        %v1992 = vpack.c.b16 %v1740, %v1736
        %v1993 = vpack.c.b16 %v1741, %v1737
        %v1994 = vpack.c.b16 %v1742, %v1738
        %v1995 = vpack.c.b16 %v1747, %v1743
        %v1996 = vpack.c.b16 %v1748, %v1744
        %v1997 = vpack.c.b16 %v1749, %v1745
        %v1998 = vpack.c.b16 %v1750, %v1746
        %v1999 = vpack.c.b16 %v1755, %v1751
        %v2000 = vpack.c.b16 %v1756, %v1752
        %v2001 = vpack.c.b16 %v1757, %v1753
        %v2002 = vpack.c.b16 %v1758, %v1754
        %v2003 = vpack.c.b16 %v1763, %v1759
        %v2004 = vpack.c.b16 %v1764, %v1760
        %v2005 = vpack.c.b16 %v1765, %v1761
        %v2006 = vpack.c.b16 %v1766, %v1762
        %v2007 = vpack.c.b16 %v1771, %v1767
        %v2008 = vpack.c.b16 %v1772, %v1768
        %v2009 = vpack.c.b16 %v1773, %v1769
        %v2010 = vpack.c.b16 %v1774, %v1770
        %v2011 = vpack.c.b16 %v1779, %v1775
        %v2012 = vpack.c.b16 %v1780, %v1776
        %v2013 = vpack.c.b16 %v1781, %v1777
        %v2014 = vpack.c.b16 %v1782, %v1778
        %v2015 = vpack.c.b16 %v1787, %v1783
        %v2016 = vpack.c.b16 %v1788, %v1784
        %v2017 = vpack.c.b16 %v1789, %v1785
        %v2018 = vpack.c.b16 %v1790, %v1786
        %v2019 = vpack.c.b16 %v1795, %v1791
        %v2020 = vpack.c.b16 %v1796, %v1792
        %v2021 = vpack.c.b16 %v1797, %v1793
        %v2022 = vpack.c.b16 %v1798, %v1794
        %v2023 = vpack.c.b16 %v1803, %v1799
        %v2024 = vpack.c.b16 %v1804, %v1800
        %v2025 = vpack.c.b16 %v1805, %v1801
        %v2026 = vpack.c.b16 %v1806, %v1802
        %v2027 = vpack.c.b16 %v1811, %v1807
        %v2028 = vpack.c.b16 %v1812, %v1808
        %v2029 = vpack.c.b16 %v1813, %v1809
        %v2030 = vpack.c.b16 %v1814, %v1810
        %v2031 = vpack.c.b16 %v1819, %v1815
        %v2032 = vpack.c.b16 %v1820, %v1816
        %v2033 = vpack.c.b16 %v1821, %v1817
        %v2034 = vpack.c.b16 %v1822, %v1818
        %v2035 = vpack.c.b16 %v1827, %v1823
        %v2036 = vpack.c.b16 %v1828, %v1824
        %v2037 = vpack.c.b16 %v1829, %v1825
        %v2038 = vpack.c.b16 %v1830, %v1826
        %v2039 = vpack.c.b16 %v1835, %v1831
        %v2040 = vpack.c.b16 %v1836, %v1832
        %v2041 = vpack.c.b16 %v1837, %v1833
        %v2042 = vpack.c.b16 %v1838, %v1834
        %v2043 = vpack.c.b16 %v1843, %v1839
        %v2044 = vpack.c.b16 %v1844, %v1840
        %v2045 = vpack.c.b16 %v1845, %v1841
        %v2046 = vpack.c.b16 %v1846, %v1842
        %v2047 = vpack.c.b16 %v1851, %v1847
        %v2048 = vpack.c.b16 %v1852, %v1848
        %v2049 = vpack.c.b16 %v1853, %v1849
        %v2050 = vpack.c.b16 %v1854, %v1850
        %v2051 = vpack.c.b16 %v1859, %v1855
        %v2052 = vpack.c.b16 %v1860, %v1856
        %v2053 = vpack.c.b16 %v1861, %v1857
        %v2054 = vpack.c.b16 %v1862, %v1858
        %v2055 = vpack.c.b16 %v1867, %v1863
        %v2056 = vpack.c.b16 %v1868, %v1864
        %v2057 = vpack.c.b16 %v1869, %v1865
        %v2058 = vpack.c.b16 %v1870, %v1866
        %v2059 = vpack.c.b16 %v1875, %v1871
        %v2060 = vpack.c.b16 %v1876, %v1872
        %v2061 = vpack.c.b16 %v1877, %v1873
        %v2062 = vpack.c.b16 %v1878, %v1874
        %v2063 = vpack.c.b16 %v1883, %v1879
        %v2064 = vpack.c.b16 %v1884, %v1880
        %v2065 = vpack.c.b16 %v1885, %v1881
        %v2066 = vpack.c.b16 %v1886, %v1882
        %v2067 = vpack.c.b16 %v1891, %v1887
        %v2068 = vpack.c.b16 %v1892, %v1888
        %v2069 = vpack.c.b16 %v1893, %v1889
        %v2070 = vpack.c.b16 %v1894, %v1890
        %v2071 = vpack.c.b16 %v1899, %v1895
        %v2072 = vpack.c.b16 %v1900, %v1896
        %v2073 = vpack.c.b16 %v1901, %v1897
        %v2074 = vpack.c.b16 %v1902, %v1898
        %v2075 = vpack.c.b16 %v1907, %v1903
        %v2076 = vpack.c.b16 %v1908, %v1904
        %v2077 = vpack.c.b16 %v1909, %v1905
        %v2078 = vpack.c.b16 %v1910, %v1906
        %v2079 = vpack.c.b16 %v1915, %v1911
        %v2080 = vpack.c.b16 %v1916, %v1912
        %v2081 = vpack.c.b16 %v1917, %v1913
        %v2082 = vpack.c.b16 %v1918, %v1914
        %v2083 = vpack.c.b16 %v1923, %v1919
        %v2084 = vpack.c.b16 %v1924, %v1920
        %v2085 = vpack.c.b16 %v1925, %v1921
        %v2086 = vpack.c.b16 %v1926, %v1922
        %v2087 = vpack.c.b16 %v1931, %v1927
        %v2088 = vpack.c.b16 %v1932, %v1928
        %v2089 = vpack.c.b16 %v1933, %v1929
        %v2090 = vpack.c.b16 %v1934, %v1930
        %v2091 = vpack.c.b16 %v1939, %v1935
        %v2092 = vpack.c.b16 %v1940, %v1936
        %v2093 = vpack.c.b16 %v1941, %v1937
        %v2094 = vpack.c.b16 %v1942, %v1938
        %v2095 = vpack.c.b16 %v1947, %v1943
        %v2096 = vpack.c.b16 %v1948, %v1944
        %v2097 = vpack.c.b16 %v1949, %v1945
        %v2098 = vpack.c.b16 %v1950, %v1946
        %v2099 = vpack.c.b16 %v1955, %v1951
        %v2100 = vpack.c.b16 %v1956, %v1952
        %v2101 = vpack.c.b16 %v1957, %v1953
        %v2102 = vpack.c.b16 %v1958, %v1954
        %v2103 = vpack.c.b16 %v1963, %v1959
        %v2104 = vpack.c.b16 %v1964, %v1960
        %v2105 = vpack.c.b16 %v1965, %v1961
        %v2106 = vpack.c.b16 %v1966, %v1962
        %v2107 = vpack.c.b16 %v1971, %v1967
        %v2108 = vpack.c.b16 %v1972, %v1968
        %v2109 = vpack.c.b16 %v1973, %v1969
        %v2110 = vpack.c.b16 %v1974, %v1970
        %v2111 = vpack.c.b16 %v1979, %v1975
        %v2112 = vpack.c.b16 %v1980, %v1976
        %v2113 = vpack.c.b16 %v1981, %v1977
        %v2114 = vpack.c.b16 %v1982, %v1978
        %v2115 = vpack.c.b16 %v1987, %v1983
        %v2116 = vpack.c.b16 %v1988, %v1984
        %v2117 = vpack.c.b16 %v1989, %v1985
        %v2118 = vpack.c.b16 %v1990, %v1986
        %2247 = vmatprep.subr.bf16.mxu0 %v1992
        %2248 = vmatpush1.bf16.msra.mxu0 %v1991
        %2249 = vmatprep.subr.bf16.mxu0 %v1996
        %2250 = vmatpush1.bf16.msra.mxu0 %v1995
        %2251 = vmatprep.subr.bf16.mxu0 %v2000
        %2252 = vmatpush1.bf16.msra.mxu0 %v1999
        %2253 = vmatprep.subr.bf16.mxu0 %v2004
        %2254 = vmatpush1.bf16.msra.mxu0 %v2003
        %2255 = vmatprep.subr.bf16.mxu0 %v2008
        %2256 = vmatpush1.bf16.msra.mxu0 %v2007
        %2257 = vmatprep.subr.bf16.mxu0 %v2012
        %2258 = vmatpush1.bf16.msra.mxu0 %v2011
        %2259 = vmatprep.subr.bf16.mxu0 %v2016
        %2260 = vmatpush1.bf16.msra.mxu0 %v2015
        %2261 = vmatprep.subr.bf16.mxu0 %v2020
        %2262 = vmatpush1.bf16.msra.mxu0 %v2019
        %2263 = vmatprep.subr.bf16.mxu0 %v2024
        %2264 = vmatpush1.bf16.msra.mxu0 %v2023
        %2265 = vmatprep.subr.bf16.mxu0 %v2028
        %2266 = vmatpush1.bf16.msra.mxu0 %v2027
        %2267 = vmatprep.subr.bf16.mxu0 %v2032
        %2268 = vmatpush1.bf16.msra.mxu0 %v2031
        %2269 = vmatprep.subr.bf16.mxu0 %v2036
        %2270 = vmatpush1.bf16.msra.mxu0 %v2035
        %2271 = vmatprep.subr.bf16.mxu0 %v2040
        %2272 = vmatpush1.bf16.msra.mxu0 %v2039
        %2273 = vmatprep.subr.bf16.mxu0 %v2044
        %2274 = vmatpush1.bf16.msra.mxu0 %v2043
        %2275 = vmatprep.subr.bf16.mxu0 %v2048
        %2276 = vmatpush1.bf16.msra.mxu0 %v2047
        %2277 = vmatprep.subr.bf16.mxu0 %v2052
        %2278 = vmatpush1.bf16.msra.mxu0 %v2051
        %2279 = vmatprep.mubr.bf16.mxu0 %v1394
        %2280 = vmatmul.mubr.bf16.gmra.mrb[0].mxu0 %v1393
        %v2281 = vpop.f32.mrb[0].mxu0
        %v2282 = vadd.f32 %v1590, %v2281
        %v2283 = vpop.f32.mrb[0].mxu0
        %v2284 = vadd.f32 %v1594, %v2283
        %v2285 = vpop.f32.mrb[0].mxu0
        %v2286 = vadd.f32 %v1590, %v2285
        %v2287 = vpop.f32.mrb[0].mxu0
        %v2288 = vadd.f32 %v1594, %v2287
        %2289 = vmatprep.mubr.bf16.mxu0 %v1398
        %2290 = vmatmul.mubr.bf16.gmra.mrb[0].mxu0 %v1397
        %v2291 = vpop.f32.mrb[0].mxu0
        %v2292 = vadd.f32 %v1590, %v2291
        %v2293 = vpop.f32.mrb[0].mxu0
        %v2294 = vadd.f32 %v1594, %v2293
        %v2295 = vpop.f32.mrb[0].mxu0
        %v2296 = vadd.f32 %v1590, %v2295
        %v2297 = vpop.f32.mrb[0].mxu0
        %v2298 = vadd.f32 %v1594, %v2297
        %2299 = vmatprep.mubr.bf16.mxu0 %v1402
        %2300 = vmatmul.mubr.bf16.gmra.mrb[0].mxu0 %v1401
        %v2301 = vpop.f32.mrb[0].mxu0
        %v2302 = vadd.f32 %v1590, %v2301
        %v2303 = vpop.f32.mrb[0].mxu0
        %v2304 = vadd.f32 %v1594, %v2303
        %v2305 = vpop.f32.mrb[0].mxu0
        %v2306 = vadd.f32 %v1590, %v2305
        %v2307 = vpop.f32.mrb[0].mxu0
        %v2308 = vadd.f32 %v1594, %v2307
        %2309 = vmatprep.mubr.bf16.mxu0 %v1406
        %2310 = vmatmul.mubr.bf16.gmra.mrb[0].mxu0 %v1405
        %v2311 = vpop.f32.mrb[0].mxu0
        %v2312 = vadd.f32 %v1590, %v2311
        %v2313 = vpop.f32.mrb[0].mxu0
        %v2314 = vadd.f32 %v1594, %v2313
        %v2315 = vpop.f32.mrb[0].mxu0
        %v2316 = vadd.f32 %v1590, %v2315
        %v2317 = vpop.f32.mrb[0].mxu0
        %v2318 = vadd.f32 %v1594, %v2317
        %2319 = vmatprep.mubr.bf16.mxu0 %v1410
        %2320 = vmatmul.mubr.bf16.gmra.mrb[0].mxu0 %v1409
        %v2321 = vpop.f32.mrb[0].mxu0
        %v2322 = vadd.f32 %v1590, %v2321
        %v2323 = vpop.f32.mrb[0].mxu0
        %v2324 = vadd.f32 %v1594, %v2323
        %v2325 = vpop.f32.mrb[0].mxu0
        %v2326 = vadd.f32 %v1590, %v2325
        %v2327 = vpop.f32.mrb[0].mxu0
        %v2328 = vadd.f32 %v1594, %v2327
        %2329 = vmatprep.mubr.bf16.mxu0 %v1414
        %2330 = vmatmul.mubr.bf16.gmra.mrb[0].mxu0 %v1413
        %v2331 = vpop.f32.mrb[0].mxu0
        %v2332 = vadd.f32 %v1590, %v2331
        %v2333 = vpop.f32.mrb[0].mxu0
        %v2334 = vadd.f32 %v1594, %v2333
        %v2335 = vpop.f32.mrb[0].mxu0
        %v2336 = vadd.f32 %v1590, %v2335
        %v2337 = vpop.f32.mrb[0].mxu0
        %v2338 = vadd.f32 %v1594, %v2337
        %2339 = vmatprep.mubr.bf16.mxu0 %v1418
        %2340 = vmatmul.mubr.bf16.gmra.mrb[0].mxu0 %v1417
        %v2341 = vpop.f32.mrb[0].mxu0
        %v2342 = vadd.f32 %v1590, %v2341
        %v2343 = vpop.f32.mrb[0].mxu0
        %v2344 = vadd.f32 %v1594, %v2343
        %v2345 = vpop.f32.mrb[0].mxu0
        %v2346 = vadd.f32 %v1590, %v2345
        %v2347 = vpop.f32.mrb[0].mxu0
        %v2348 = vadd.f32 %v1594, %v2347
        %2349 = vmatprep.mubr.bf16.mxu0 %v1422
        %2350 = vmatmul.mubr.bf16.gmra.mrb[0].mxu0 %v1421
        %v2351 = vpop.f32.mrb[0].mxu0
        %v2352 = vadd.f32 %v1590, %v2351
        %v2353 = vpop.f32.mrb[0].mxu0
        %v2354 = vadd.f32 %v1594, %v2353
        %v2355 = vpop.f32.mrb[0].mxu0
        %v2356 = vadd.f32 %v1590, %v2355
        %v2357 = vpop.f32.mrb[0].mxu0
        %v2358 = vadd.f32 %v1594, %v2357
        %2359 = vmatprep.mubr.bf16.mxu0 %v1426
        %2360 = vmatmul.mubr.bf16.gmra.mrb[0].mxu0 %v1425
        %v2361 = vpop.f32.mrb[0].mxu0
        %v2362 = vadd.f32 %v1590, %v2361
        %v2363 = vpop.f32.mrb[0].mxu0
        %v2364 = vadd.f32 %v1594, %v2363
        %v2365 = vpop.f32.mrb[0].mxu0
        %v2366 = vadd.f32 %v1590, %v2365
        %v2367 = vpop.f32.mrb[0].mxu0
        %v2368 = vadd.f32 %v1594, %v2367
        %2369 = vmatprep.mubr.bf16.mxu0 %v1430
        %2370 = vmatmul.mubr.bf16.gmra.mrb[0].mxu0 %v1429
        %v2371 = vpop.f32.mrb[0].mxu0
        %v2372 = vadd.f32 %v1590, %v2371
        %v2373 = vpop.f32.mrb[0].mxu0
        %v2374 = vadd.f32 %v1594, %v2373
        %v2375 = vpop.f32.mrb[0].mxu0
        %v2376 = vadd.f32 %v1590, %v2375
        %v2377 = vpop.f32.mrb[0].mxu0
        %v2378 = vadd.f32 %v1594, %v2377
        %2379 = vmatprep.mubr.bf16.mxu0 %v1434
        %2380 = vmatmul.mubr.bf16.gmra.mrb[0].mxu0 %v1433
        %v2381 = vpop.f32.mrb[0].mxu0
        %v2382 = vadd.f32 %v1590, %v2381
        %v2383 = vpop.f32.mrb[0].mxu0
        %v2384 = vadd.f32 %v1594, %v2383
        %v2385 = vpop.f32.mrb[0].mxu0
        %v2386 = vadd.f32 %v1590, %v2385
        %v2387 = vpop.f32.mrb[0].mxu0
        %v2388 = vadd.f32 %v1594, %v2387
        %2389 = vmatprep.mubr.bf16.mxu0 %v1438
        %2390 = vmatmul.mubr.bf16.gmra.mrb[0].mxu0 %v1437
        %v2391 = vpop.f32.mrb[0].mxu0
        %v2392 = vadd.f32 %v1590, %v2391
        %v2393 = vpop.f32.mrb[0].mxu0
        %v2394 = vadd.f32 %v1594, %v2393
        %v2395 = vpop.f32.mrb[0].mxu0
        %v2396 = vadd.f32 %v1590, %v2395
        %v2397 = vpop.f32.mrb[0].mxu0
        %v2398 = vadd.f32 %v1594, %v2397
        %2399 = vmatprep.mubr.bf16.mxu0 %v1442
        %2400 = vmatmul.mubr.bf16.gmra.mrb[0].mxu0 %v1441
        %v2401 = vpop.f32.mrb[0].mxu0
        %v2402 = vadd.f32 %v1590, %v2401
        %v2403 = vpop.f32.mrb[0].mxu0
        %v2404 = vadd.f32 %v1594, %v2403
        %v2405 = vpop.f32.mrb[0].mxu0
        %v2406 = vadd.f32 %v1590, %v2405
        %v2407 = vpop.f32.mrb[0].mxu0
        %v2408 = vadd.f32 %v1594, %v2407
        %2409 = vmatprep.mubr.bf16.mxu0 %v1446
        %2410 = vmatmul.mubr.bf16.gmra.mrb[0].mxu0 %v1445
        %v2411 = vpop.f32.mrb[0].mxu0
        %v2412 = vadd.f32 %v1590, %v2411
        %v2413 = vpop.f32.mrb[0].mxu0
        %v2414 = vadd.f32 %v1594, %v2413
        %v2415 = vpop.f32.mrb[0].mxu0
        %v2416 = vadd.f32 %v1590, %v2415
        %v2417 = vpop.f32.mrb[0].mxu0
        %v2418 = vadd.f32 %v1594, %v2417
        %2419 = vmatprep.mubr.bf16.mxu0 %v1450
        %2420 = vmatmul.mubr.bf16.gmra.mrb[0].mxu0 %v1449
        %v2421 = vpop.f32.mrb[0].mxu0
        %v2422 = vadd.f32 %v1590, %v2421
        %v2423 = vpop.f32.mrb[0].mxu0
        %v2424 = vadd.f32 %v1594, %v2423
        %v2425 = vpop.f32.mrb[0].mxu0
        %v2426 = vadd.f32 %v1590, %v2425
        %v2427 = vpop.f32.mrb[0].mxu0
        %v2428 = vadd.f32 %v1594, %v2427
        %2429 = vmatprep.mubr.bf16.mxu0 %v1454
        %2430 = vmatmul.mubr.bf16.gmra.mrb[0].mxu0 %v1453
        %v2431 = vpop.f32.mrb[0].mxu0
        %v2432 = vadd.f32 %v1590, %v2431
        %v2433 = vpop.f32.mrb[0].mxu0
        %v2434 = vadd.f32 %v1594, %v2433
        %v2435 = vpop.f32.mrb[0].mxu0
        %v2436 = vadd.f32 %v1590, %v2435
        %v2437 = vpop.f32.mrb[0].mxu0
        %v2438 = vadd.f32 %v1594, %v2437
        %2439 = vdwg.mxu0
        %2440 = vmatprep.subr.bf16.mxu0 %v2056
        %2441 = vmatpush1.bf16.msra.mxu0 %v2055
        %2442 = vmatprep.subr.bf16.mxu0 %v2060
        %2443 = vmatpush1.bf16.msra.mxu0 %v2059
        %2444 = vmatprep.subr.bf16.mxu0 %v2064
        %2445 = vmatpush1.bf16.msra.mxu0 %v2063
        %2446 = vmatprep.subr.bf16.mxu0 %v2068
        %2447 = vmatpush1.bf16.msra.mxu0 %v2067
        %2448 = vmatprep.subr.bf16.mxu0 %v2072
        %2449 = vmatpush1.bf16.msra.mxu0 %v2071
        %2450 = vmatprep.subr.bf16.mxu0 %v2076
        %2451 = vmatpush1.bf16.msra.mxu0 %v2075
        %2452 = vmatprep.subr.bf16.mxu0 %v2080
        %2453 = vmatpush1.bf16.msra.mxu0 %v2079
        %2454 = vmatprep.subr.bf16.mxu0 %v2084
        %2455 = vmatpush1.bf16.msra.mxu0 %v2083
        %2456 = vmatprep.subr.bf16.mxu0 %v2088
        %2457 = vmatpush1.bf16.msra.mxu0 %v2087
        %2458 = vmatprep.subr.bf16.mxu0 %v2092
        %2459 = vmatpush1.bf16.msra.mxu0 %v2091
        %2460 = vmatprep.subr.bf16.mxu0 %v2096
        %2461 = vmatpush1.bf16.msra.mxu0 %v2095
        %2462 = vmatprep.subr.bf16.mxu0 %v2100
        %2463 = vmatpush1.bf16.msra.mxu0 %v2099
        %2464 = vmatprep.subr.bf16.mxu0 %v2104
        %2465 = vmatpush1.bf16.msra.mxu0 %v2103
        %2466 = vmatprep.subr.bf16.mxu0 %v2108
        %2467 = vmatpush1.bf16.msra.mxu0 %v2107
        %2468 = vmatprep.subr.bf16.mxu0 %v2112
        %2469 = vmatpush1.bf16.msra.mxu0 %v2111
        %2470 = vmatprep.subr.bf16.mxu0 %v2116
        %2471 = vmatpush1.bf16.msra.mxu0 %v2115
        %2472 = vmatprep.mubr.bf16.mxu0 %v1396
        %2473 = vmatmul.mubr.bf16.gmra.mrb[0].mxu0 %v1395
        %v2474 = vpop.f32.mrb[0].mxu0
        %v2475 = vadd.f32 %v2282, %v2474
        %v2476 = vpop.f32.mrb[0].mxu0
        %v2477 = vadd.f32 %v2284, %v2476
        %v2478 = vpop.f32.mrb[0].mxu0
        %v2479 = vadd.f32 %v2286, %v2478
        %v2480 = vpop.f32.mrb[0].mxu0
        %v2481 = vadd.f32 %v2288, %v2480
        %2482 = vmatprep.mubr.bf16.mxu0 %v1400
        %2483 = vmatmul.mubr.bf16.gmra.mrb[0].mxu0 %v1399
        %v2484 = vpop.f32.mrb[0].mxu0
        %v2485 = vadd.f32 %v2292, %v2484
        %v2486 = vpop.f32.mrb[0].mxu0
        %v2487 = vadd.f32 %v2294, %v2486
        %v2488 = vpop.f32.mrb[0].mxu0
        %v2489 = vadd.f32 %v2296, %v2488
        %v2490 = vpop.f32.mrb[0].mxu0
        %v2491 = vadd.f32 %v2298, %v2490
        %2492 = vmatprep.mubr.bf16.mxu0 %v1404
        %2493 = vmatmul.mubr.bf16.gmra.mrb[0].mxu0 %v1403
        %v2494 = vpop.f32.mrb[0].mxu0
        %v2495 = vadd.f32 %v2302, %v2494
        %v2496 = vpop.f32.mrb[0].mxu0
        %v2497 = vadd.f32 %v2304, %v2496
        %v2498 = vpop.f32.mrb[0].mxu0
        %v2499 = vadd.f32 %v2306, %v2498
        %v2500 = vpop.f32.mrb[0].mxu0
        %v2501 = vadd.f32 %v2308, %v2500
        %2502 = vmatprep.mubr.bf16.mxu0 %v1408
        %2503 = vmatmul.mubr.bf16.gmra.mrb[0].mxu0 %v1407
        %v2504 = vpop.f32.mrb[0].mxu0
        %v2505 = vadd.f32 %v2312, %v2504
        %v2506 = vpop.f32.mrb[0].mxu0
        %v2507 = vadd.f32 %v2314, %v2506
        %v2508 = vpop.f32.mrb[0].mxu0
        %v2509 = vadd.f32 %v2316, %v2508
        %v2510 = vpop.f32.mrb[0].mxu0
        %v2511 = vadd.f32 %v2318, %v2510
        %2512 = vmatprep.mubr.bf16.mxu0 %v1412
        %2513 = vmatmul.mubr.bf16.gmra.mrb[0].mxu0 %v1411
        %v2514 = vpop.f32.mrb[0].mxu0
        %v2515 = vadd.f32 %v2322, %v2514
        %v2516 = vpop.f32.mrb[0].mxu0
        %v2517 = vadd.f32 %v2324, %v2516
        %v2518 = vpop.f32.mrb[0].mxu0
        %v2519 = vadd.f32 %v2326, %v2518
        %v2520 = vpop.f32.mrb[0].mxu0
        %v2521 = vadd.f32 %v2328, %v2520
        %2522 = vmatprep.mubr.bf16.mxu0 %v1416
        %2523 = vmatmul.mubr.bf16.gmra.mrb[0].mxu0 %v1415
        %v2524 = vpop.f32.mrb[0].mxu0
        %v2525 = vadd.f32 %v2332, %v2524
        %v2526 = vpop.f32.mrb[0].mxu0
        %v2527 = vadd.f32 %v2334, %v2526
        %v2528 = vpop.f32.mrb[0].mxu0
        %v2529 = vadd.f32 %v2336, %v2528
        %v2530 = vpop.f32.mrb[0].mxu0
        %v2531 = vadd.f32 %v2338, %v2530
        %2532 = vmatprep.mubr.bf16.mxu0 %v1420
        %2533 = vmatmul.mubr.bf16.gmra.mrb[0].mxu0 %v1419
        %v2534 = vpop.f32.mrb[0].mxu0
        %v2535 = vadd.f32 %v2342, %v2534
        %v2536 = vpop.f32.mrb[0].mxu0
        %v2537 = vadd.f32 %v2344, %v2536
        %v2538 = vpop.f32.mrb[0].mxu0
        %v2539 = vadd.f32 %v2346, %v2538
        %v2540 = vpop.f32.mrb[0].mxu0
        %v2541 = vadd.f32 %v2348, %v2540
        %2542 = vmatprep.mubr.bf16.mxu0 %v1424
        %2543 = vmatmul.mubr.bf16.gmra.mrb[0].mxu0 %v1423
        %v2544 = vpop.f32.mrb[0].mxu0
        %v2545 = vadd.f32 %v2352, %v2544
        %v2546 = vpop.f32.mrb[0].mxu0
        %v2547 = vadd.f32 %v2354, %v2546
        %v2548 = vpop.f32.mrb[0].mxu0
        %v2549 = vadd.f32 %v2356, %v2548
        %v2550 = vpop.f32.mrb[0].mxu0
        %v2551 = vadd.f32 %v2358, %v2550
        %2552 = vmatprep.mubr.bf16.mxu0 %v1428
        %2553 = vmatmul.mubr.bf16.gmra.mrb[0].mxu0 %v1427
        %v2554 = vpop.f32.mrb[0].mxu0
        %v2555 = vadd.f32 %v2362, %v2554
        %v2556 = vpop.f32.mrb[0].mxu0
        %v2557 = vadd.f32 %v2364, %v2556
        %v2558 = vpop.f32.mrb[0].mxu0
        %v2559 = vadd.f32 %v2366, %v2558
        %v2560 = vpop.f32.mrb[0].mxu0
        %v2561 = vadd.f32 %v2368, %v2560
        %2562 = vmatprep.mubr.bf16.mxu0 %v1432
        %2563 = vmatmul.mubr.bf16.gmra.mrb[0].mxu0 %v1431
        %v2564 = vpop.f32.mrb[0].mxu0
        %v2565 = vadd.f32 %v2372, %v2564
        %v2566 = vpop.f32.mrb[0].mxu0
        %v2567 = vadd.f32 %v2374, %v2566
        %v2568 = vpop.f32.mrb[0].mxu0
        %v2569 = vadd.f32 %v2376, %v2568
        %v2570 = vpop.f32.mrb[0].mxu0
        %v2571 = vadd.f32 %v2378, %v2570
        %2572 = vmatprep.mubr.bf16.mxu0 %v1436
        %2573 = vmatmul.mubr.bf16.gmra.mrb[0].mxu0 %v1435
        %v2574 = vpop.f32.mrb[0].mxu0
        %v2575 = vadd.f32 %v2382, %v2574
        %v2576 = vpop.f32.mrb[0].mxu0
        %v2577 = vadd.f32 %v2384, %v2576
        %v2578 = vpop.f32.mrb[0].mxu0
        %v2579 = vadd.f32 %v2386, %v2578
        %v2580 = vpop.f32.mrb[0].mxu0
        %v2581 = vadd.f32 %v2388, %v2580
        %2582 = vmatprep.mubr.bf16.mxu0 %v1440
        %2583 = vmatmul.mubr.bf16.gmra.mrb[0].mxu0 %v1439
        %v2584 = vpop.f32.mrb[0].mxu0
        %v2585 = vadd.f32 %v2392, %v2584
        %v2586 = vpop.f32.mrb[0].mxu0
        %v2587 = vadd.f32 %v2394, %v2586
        %v2588 = vpop.f32.mrb[0].mxu0
        %v2589 = vadd.f32 %v2396, %v2588
        %v2590 = vpop.f32.mrb[0].mxu0
        %v2591 = vadd.f32 %v2398, %v2590
        %2592 = vmatprep.mubr.bf16.mxu0 %v1444
        %2593 = vmatmul.mubr.bf16.gmra.mrb[0].mxu0 %v1443
        %v2594 = vpop.f32.mrb[0].mxu0
        %v2595 = vadd.f32 %v2402, %v2594
        %v2596 = vpop.f32.mrb[0].mxu0
        %v2597 = vadd.f32 %v2404, %v2596
        %v2598 = vpop.f32.mrb[0].mxu0
        %v2599 = vadd.f32 %v2406, %v2598
        %v2600 = vpop.f32.mrb[0].mxu0
        %v2601 = vadd.f32 %v2408, %v2600
        %2602 = vmatprep.mubr.bf16.mxu0 %v1448
        %2603 = vmatmul.mubr.bf16.gmra.mrb[0].mxu0 %v1447
        %v2604 = vpop.f32.mrb[0].mxu0
        %v2605 = vadd.f32 %v2412, %v2604
        %v2606 = vpop.f32.mrb[0].mxu0
        %v2607 = vadd.f32 %v2414, %v2606
        %v2608 = vpop.f32.mrb[0].mxu0
        %v2609 = vadd.f32 %v2416, %v2608
        %v2610 = vpop.f32.mrb[0].mxu0
        %v2611 = vadd.f32 %v2418, %v2610
        %2612 = vmatprep.mubr.bf16.mxu0 %v1452
        %2613 = vmatmul.mubr.bf16.gmra.mrb[0].mxu0 %v1451
        %v2614 = vpop.f32.mrb[0].mxu0
        %v2615 = vadd.f32 %v2422, %v2614
        %v2616 = vpop.f32.mrb[0].mxu0
        %v2617 = vadd.f32 %v2424, %v2616
        %v2618 = vpop.f32.mrb[0].mxu0
        %v2619 = vadd.f32 %v2426, %v2618
        %v2620 = vpop.f32.mrb[0].mxu0
        %v2621 = vadd.f32 %v2428, %v2620
        %2622 = vmatprep.mubr.bf16.mxu0 %v1456
        %2623 = vmatmul.mubr.bf16.gmra.mrb[0].mxu0 %v1455
        %v2624 = vpop.f32.mrb[0].mxu0
        %v2625 = vadd.f32 %v2432, %v2624
        %v2626 = vpop.f32.mrb[0].mxu0
        %v2627 = vadd.f32 %v2434, %v2626
        %v2628 = vpop.f32.mrb[0].mxu0
        %v2629 = vadd.f32 %v2436, %v2628
        %v2630 = vpop.f32.mrb[0].mxu0
        %v2631 = vadd.f32 %v2438, %v2630
        %2632 = vdwg.mxu0
        %2633 = vmatprep.subr.bf16.mxu0 %v1994
        %2634 = vmatpush1.bf16.msra.mxu0 %v1993
        %2635 = vmatprep.subr.bf16.mxu0 %v1998
        %2636 = vmatpush1.bf16.msra.mxu0 %v1997
        %2637 = vmatprep.subr.bf16.mxu0 %v2002
        %2638 = vmatpush1.bf16.msra.mxu0 %v2001
        %2639 = vmatprep.subr.bf16.mxu0 %v2006
        %2640 = vmatpush1.bf16.msra.mxu0 %v2005
        %2641 = vmatprep.subr.bf16.mxu0 %v2010
        %2642 = vmatpush1.bf16.msra.mxu0 %v2009
        %2643 = vmatprep.subr.bf16.mxu0 %v2014
        %2644 = vmatpush1.bf16.msra.mxu0 %v2013
        %2645 = vmatprep.subr.bf16.mxu0 %v2018
        %2646 = vmatpush1.bf16.msra.mxu0 %v2017
        %2647 = vmatprep.subr.bf16.mxu0 %v2022
        %2648 = vmatpush1.bf16.msra.mxu0 %v2021
        %2649 = vmatprep.subr.bf16.mxu0 %v2026
        %2650 = vmatpush1.bf16.msra.mxu0 %v2025
        %2651 = vmatprep.subr.bf16.mxu0 %v2030
        %2652 = vmatpush1.bf16.msra.mxu0 %v2029
        %2653 = vmatprep.subr.bf16.mxu0 %v2034
        %2654 = vmatpush1.bf16.msra.mxu0 %v2033
        %2655 = vmatprep.subr.bf16.mxu0 %v2038
        %2656 = vmatpush1.bf16.msra.mxu0 %v2037
        %2657 = vmatprep.subr.bf16.mxu0 %v2042
        %2658 = vmatpush1.bf16.msra.mxu0 %v2041
        %2659 = vmatprep.subr.bf16.mxu0 %v2046
        %2660 = vmatpush1.bf16.msra.mxu0 %v2045
        %2661 = vmatprep.subr.bf16.mxu0 %v2050
        %2662 = vmatpush1.bf16.msra.mxu0 %v2049
        %2663 = vmatprep.subr.bf16.mxu0 %v2054
        %2664 = vmatpush1.bf16.msra.mxu0 %v2053
        %2665 = vmatprep.mubr.bf16.mxu0 %v1394
        %2666 = vmatmul.mubr.bf16.gmra.mrb[0].mxu0 %v1393
        %v2667 = vpop.f32.mrb[0].mxu0
        %v2668 = vadd.f32 %v1598, %v2667
        %v2669 = vpop.f32.mrb[0].mxu0
        %v2670 = vadd.f32 %v1602, %v2669
        %v2671 = vpop.f32.mrb[0].mxu0
        %v2672 = vadd.f32 %v1598, %v2671
        %v2673 = vpop.f32.mrb[0].mxu0
        %v2674 = vadd.f32 %v1602, %v2673
        %2675 = vmatprep.mubr.bf16.mxu0 %v1398
        %2676 = vmatmul.mubr.bf16.gmra.mrb[0].mxu0 %v1397
        %v2677 = vpop.f32.mrb[0].mxu0
        %v2678 = vadd.f32 %v1598, %v2677
        %v2679 = vpop.f32.mrb[0].mxu0
        %v2680 = vadd.f32 %v1602, %v2679
        %v2681 = vpop.f32.mrb[0].mxu0
        %v2682 = vadd.f32 %v1598, %v2681
        %v2683 = vpop.f32.mrb[0].mxu0
        %v2684 = vadd.f32 %v1602, %v2683
        %2685 = vmatprep.mubr.bf16.mxu0 %v1402
        %2686 = vmatmul.mubr.bf16.gmra.mrb[0].mxu0 %v1401
        %v2687 = vpop.f32.mrb[0].mxu0
        %v2688 = vadd.f32 %v1598, %v2687
        %v2689 = vpop.f32.mrb[0].mxu0
        %v2690 = vadd.f32 %v1602, %v2689
        %v2691 = vpop.f32.mrb[0].mxu0
        %v2692 = vadd.f32 %v1598, %v2691
        %v2693 = vpop.f32.mrb[0].mxu0
        %v2694 = vadd.f32 %v1602, %v2693
        %2695 = vmatprep.mubr.bf16.mxu0 %v1406
        %2696 = vmatmul.mubr.bf16.gmra.mrb[0].mxu0 %v1405
        %v2697 = vpop.f32.mrb[0].mxu0
        %v2698 = vadd.f32 %v1598, %v2697
        %v2699 = vpop.f32.mrb[0].mxu0
        %v2700 = vadd.f32 %v1602, %v2699
        %v2701 = vpop.f32.mrb[0].mxu0
        %v2702 = vadd.f32 %v1598, %v2701
        %v2703 = vpop.f32.mrb[0].mxu0
        %v2704 = vadd.f32 %v1602, %v2703
        %2705 = vmatprep.mubr.bf16.mxu0 %v1410
        %2706 = vmatmul.mubr.bf16.gmra.mrb[0].mxu0 %v1409
        %v2707 = vpop.f32.mrb[0].mxu0
        %v2708 = vadd.f32 %v1598, %v2707
        %v2709 = vpop.f32.mrb[0].mxu0
        %v2710 = vadd.f32 %v1602, %v2709
        %v2711 = vpop.f32.mrb[0].mxu0
        %v2712 = vadd.f32 %v1598, %v2711
        %v2713 = vpop.f32.mrb[0].mxu0
        %v2714 = vadd.f32 %v1602, %v2713
        %2715 = vmatprep.mubr.bf16.mxu0 %v1414
        %2716 = vmatmul.mubr.bf16.gmra.mrb[0].mxu0 %v1413
        %v2717 = vpop.f32.mrb[0].mxu0
        %v2718 = vadd.f32 %v1598, %v2717
        %v2719 = vpop.f32.mrb[0].mxu0
        %v2720 = vadd.f32 %v1602, %v2719
        %v2721 = vpop.f32.mrb[0].mxu0
        %v2722 = vadd.f32 %v1598, %v2721
        %v2723 = vpop.f32.mrb[0].mxu0
        %v2724 = vadd.f32 %v1602, %v2723
        %2725 = vmatprep.mubr.bf16.mxu0 %v1418
        %2726 = vmatmul.mubr.bf16.gmra.mrb[0].mxu0 %v1417
        %v2727 = vpop.f32.mrb[0].mxu0
        %v2728 = vadd.f32 %v1598, %v2727
        %v2729 = vpop.f32.mrb[0].mxu0
        %v2730 = vadd.f32 %v1602, %v2729
        %v2731 = vpop.f32.mrb[0].mxu0
        %v2732 = vadd.f32 %v1598, %v2731
        %v2733 = vpop.f32.mrb[0].mxu0
        %v2734 = vadd.f32 %v1602, %v2733
        %2735 = vmatprep.mubr.bf16.mxu0 %v1422
        %2736 = vmatmul.mubr.bf16.gmra.mrb[0].mxu0 %v1421
        %v2737 = vpop.f32.mrb[0].mxu0
        %v2738 = vadd.f32 %v1598, %v2737
        %v2739 = vpop.f32.mrb[0].mxu0
        %v2740 = vadd.f32 %v1602, %v2739
        %v2741 = vpop.f32.mrb[0].mxu0
        %v2742 = vadd.f32 %v1598, %v2741
        %v2743 = vpop.f32.mrb[0].mxu0
        %v2744 = vadd.f32 %v1602, %v2743
        %2745 = vmatprep.mubr.bf16.mxu0 %v1426
        %2746 = vmatmul.mubr.bf16.gmra.mrb[0].mxu0 %v1425
        %v2747 = vpop.f32.mrb[0].mxu0
        %v2748 = vadd.f32 %v1598, %v2747
        %v2749 = vpop.f32.mrb[0].mxu0
        %v2750 = vadd.f32 %v1602, %v2749
        %v2751 = vpop.f32.mrb[0].mxu0
        %v2752 = vadd.f32 %v1598, %v2751
        %v2753 = vpop.f32.mrb[0].mxu0
        %v2754 = vadd.f32 %v1602, %v2753
        %2755 = vmatprep.mubr.bf16.mxu0 %v1430
        %2756 = vmatmul.mubr.bf16.gmra.mrb[0].mxu0 %v1429
        %v2757 = vpop.f32.mrb[0].mxu0
        %v2758 = vadd.f32 %v1598, %v2757
        %v2759 = vpop.f32.mrb[0].mxu0
        %v2760 = vadd.f32 %v1602, %v2759
        %v2761 = vpop.f32.mrb[0].mxu0
        %v2762 = vadd.f32 %v1598, %v2761
        %v2763 = vpop.f32.mrb[0].mxu0
        %v2764 = vadd.f32 %v1602, %v2763
        %2765 = vmatprep.mubr.bf16.mxu0 %v1434
        %2766 = vmatmul.mubr.bf16.gmra.mrb[0].mxu0 %v1433
        %v2767 = vpop.f32.mrb[0].mxu0
        %v2768 = vadd.f32 %v1598, %v2767
        %v2769 = vpop.f32.mrb[0].mxu0
        %v2770 = vadd.f32 %v1602, %v2769
        %v2771 = vpop.f32.mrb[0].mxu0
        %v2772 = vadd.f32 %v1598, %v2771
        %v2773 = vpop.f32.mrb[0].mxu0
        %v2774 = vadd.f32 %v1602, %v2773
        %2775 = vmatprep.mubr.bf16.mxu0 %v1438
        %2776 = vmatmul.mubr.bf16.gmra.mrb[0].mxu0 %v1437
        %v2777 = vpop.f32.mrb[0].mxu0
        %v2778 = vadd.f32 %v1598, %v2777
        %v2779 = vpop.f32.mrb[0].mxu0
        %v2780 = vadd.f32 %v1602, %v2779
        %v2781 = vpop.f32.mrb[0].mxu0
        %v2782 = vadd.f32 %v1598, %v2781
        %v2783 = vpop.f32.mrb[0].mxu0
        %v2784 = vadd.f32 %v1602, %v2783
        %2785 = vmatprep.mubr.bf16.mxu0 %v1442
        %2786 = vmatmul.mubr.bf16.gmra.mrb[0].mxu0 %v1441
        %v2787 = vpop.f32.mrb[0].mxu0
        %v2788 = vadd.f32 %v1598, %v2787
        %v2789 = vpop.f32.mrb[0].mxu0
        %v2790 = vadd.f32 %v1602, %v2789
        %v2791 = vpop.f32.mrb[0].mxu0
        %v2792 = vadd.f32 %v1598, %v2791
        %v2793 = vpop.f32.mrb[0].mxu0
        %v2794 = vadd.f32 %v1602, %v2793
        %2795 = vmatprep.mubr.bf16.mxu0 %v1446
        %2796 = vmatmul.mubr.bf16.gmra.mrb[0].mxu0 %v1445
        %v2797 = vpop.f32.mrb[0].mxu0
        %v2798 = vadd.f32 %v1598, %v2797
        %v2799 = vpop.f32.mrb[0].mxu0
        %v2800 = vadd.f32 %v1602, %v2799
        %v2801 = vpop.f32.mrb[0].mxu0
        %v2802 = vadd.f32 %v1598, %v2801
        %v2803 = vpop.f32.mrb[0].mxu0
        %v2804 = vadd.f32 %v1602, %v2803
        %2805 = vmatprep.mubr.bf16.mxu0 %v1450
        %2806 = vmatmul.mubr.bf16.gmra.mrb[0].mxu0 %v1449
        %v2807 = vpop.f32.mrb[0].mxu0
        %v2808 = vadd.f32 %v1598, %v2807
        %v2809 = vpop.f32.mrb[0].mxu0
        %v2810 = vadd.f32 %v1602, %v2809
        %v2811 = vpop.f32.mrb[0].mxu0
        %v2812 = vadd.f32 %v1598, %v2811
        %v2813 = vpop.f32.mrb[0].mxu0
        %v2814 = vadd.f32 %v1602, %v2813
        %2815 = vmatprep.mubr.bf16.mxu0 %v1454
        %2816 = vmatmul.mubr.bf16.gmra.mrb[0].mxu0 %v1453
        %v2817 = vpop.f32.mrb[0].mxu0
        %v2818 = vadd.f32 %v1598, %v2817
        %v2819 = vpop.f32.mrb[0].mxu0
        %v2820 = vadd.f32 %v1602, %v2819
        %v2821 = vpop.f32.mrb[0].mxu0
        %v2822 = vadd.f32 %v1598, %v2821
        %v2823 = vpop.f32.mrb[0].mxu0
        %v2824 = vadd.f32 %v1602, %v2823
        %2825 = vdwg.mxu0
        %2826 = vmatprep.subr.bf16.mxu0 %v2058
        %2827 = vmatpush1.bf16.msra.mxu0 %v2057
        %2828 = vmatprep.subr.bf16.mxu0 %v2062
        %2829 = vmatpush1.bf16.msra.mxu0 %v2061
        %2830 = vmatprep.subr.bf16.mxu0 %v2066
        %2831 = vmatpush1.bf16.msra.mxu0 %v2065
        %2832 = vmatprep.subr.bf16.mxu0 %v2070
        %2833 = vmatpush1.bf16.msra.mxu0 %v2069
        %2834 = vmatprep.subr.bf16.mxu0 %v2074
        %2835 = vmatpush1.bf16.msra.mxu0 %v2073
        %2836 = vmatprep.subr.bf16.mxu0 %v2078
        %2837 = vmatpush1.bf16.msra.mxu0 %v2077
        %2838 = vmatprep.subr.bf16.mxu0 %v2082
        %2839 = vmatpush1.bf16.msra.mxu0 %v2081
        %2840 = vmatprep.subr.bf16.mxu0 %v2086
        %2841 = vmatpush1.bf16.msra.mxu0 %v2085
        %2842 = vmatprep.subr.bf16.mxu0 %v2090
        %2843 = vmatpush1.bf16.msra.mxu0 %v2089
        %2844 = vmatprep.subr.bf16.mxu0 %v2094
        %2845 = vmatpush1.bf16.msra.mxu0 %v2093
        %2846 = vmatprep.subr.bf16.mxu0 %v2098
        %2847 = vmatpush1.bf16.msra.mxu0 %v2097
        %2848 = vmatprep.subr.bf16.mxu0 %v2102
        %2849 = vmatpush1.bf16.msra.mxu0 %v2101
        %2850 = vmatprep.subr.bf16.mxu0 %v2106
        %2851 = vmatpush1.bf16.msra.mxu0 %v2105
        %2852 = vmatprep.subr.bf16.mxu0 %v2110
        %2853 = vmatpush1.bf16.msra.mxu0 %v2109
        %2854 = vmatprep.subr.bf16.mxu0 %v2114
        %2855 = vmatpush1.bf16.msra.mxu0 %v2113
        %2856 = vmatprep.subr.bf16.mxu0 %v2118
        %2857 = vmatpush1.bf16.msra.mxu0 %v2117
        %2858 = vmatprep.mubr.bf16.mxu0 %v1396
        %2859 = vmatmul.mubr.bf16.gmra.mrb[0].mxu0 %v1395
        %v2860 = vpop.f32.mrb[0].mxu0
        %v2861 = vadd.f32 %v2668, %v2860
        %v2862 = vpop.f32.mrb[0].mxu0
        %v2863 = vadd.f32 %v2670, %v2862
        %v2864 = vpop.f32.mrb[0].mxu0
        %v2865 = vadd.f32 %v2672, %v2864
        %v2866 = vpop.f32.mrb[0].mxu0
        %v2867 = vadd.f32 %v2674, %v2866
        %2868 = vmatprep.mubr.bf16.mxu0 %v1400
        %2869 = vmatmul.mubr.bf16.gmra.mrb[0].mxu0 %v1399
        %v2870 = vpop.f32.mrb[0].mxu0
        %v2871 = vadd.f32 %v2678, %v2870
        %v2872 = vpop.f32.mrb[0].mxu0
        %v2873 = vadd.f32 %v2680, %v2872
        %v2874 = vpop.f32.mrb[0].mxu0
        %v2875 = vadd.f32 %v2682, %v2874
        %v2876 = vpop.f32.mrb[0].mxu0
        %v2877 = vadd.f32 %v2684, %v2876
        %2878 = vmatprep.mubr.bf16.mxu0 %v1404
        %2879 = vmatmul.mubr.bf16.gmra.mrb[0].mxu0 %v1403
        %v2880 = vpop.f32.mrb[0].mxu0
        %v2881 = vadd.f32 %v2688, %v2880
        %v2882 = vpop.f32.mrb[0].mxu0
        %v2883 = vadd.f32 %v2690, %v2882
        %v2884 = vpop.f32.mrb[0].mxu0
        %v2885 = vadd.f32 %v2692, %v2884
        %v2886 = vpop.f32.mrb[0].mxu0
        %v2887 = vadd.f32 %v2694, %v2886
        %2888 = vmatprep.mubr.bf16.mxu0 %v1408
        %2889 = vmatmul.mubr.bf16.gmra.mrb[0].mxu0 %v1407
        %v2890 = vpop.f32.mrb[0].mxu0
        %v2891 = vadd.f32 %v2698, %v2890
        %v2892 = vpop.f32.mrb[0].mxu0
        %v2893 = vadd.f32 %v2700, %v2892
        %v2894 = vpop.f32.mrb[0].mxu0
        %v2895 = vadd.f32 %v2702, %v2894
        %v2896 = vpop.f32.mrb[0].mxu0
        %v2897 = vadd.f32 %v2704, %v2896
        %2898 = vmatprep.mubr.bf16.mxu0 %v1412
        %2899 = vmatmul.mubr.bf16.gmra.mrb[0].mxu0 %v1411
        %v2900 = vpop.f32.mrb[0].mxu0
        %v2901 = vadd.f32 %v2708, %v2900
        %v2902 = vpop.f32.mrb[0].mxu0
        %v2903 = vadd.f32 %v2710, %v2902
        %v2904 = vpop.f32.mrb[0].mxu0
        %v2905 = vadd.f32 %v2712, %v2904
        %v2906 = vpop.f32.mrb[0].mxu0
        %v2907 = vadd.f32 %v2714, %v2906
        %2908 = vmatprep.mubr.bf16.mxu0 %v1416
        %2909 = vmatmul.mubr.bf16.gmra.mrb[0].mxu0 %v1415
        %v2910 = vpop.f32.mrb[0].mxu0
        %v2911 = vadd.f32 %v2718, %v2910
        %v2912 = vpop.f32.mrb[0].mxu0
        %v2913 = vadd.f32 %v2720, %v2912
        %v2914 = vpop.f32.mrb[0].mxu0
        %v2915 = vadd.f32 %v2722, %v2914
        %v2916 = vpop.f32.mrb[0].mxu0
        %v2917 = vadd.f32 %v2724, %v2916
        %2918 = vmatprep.mubr.bf16.mxu0 %v1420
        %2919 = vmatmul.mubr.bf16.gmra.mrb[0].mxu0 %v1419
        %v2920 = vpop.f32.mrb[0].mxu0
        %v2921 = vadd.f32 %v2728, %v2920
        %v2922 = vpop.f32.mrb[0].mxu0
        %v2923 = vadd.f32 %v2730, %v2922
        %v2924 = vpop.f32.mrb[0].mxu0
        %v2925 = vadd.f32 %v2732, %v2924
        %v2926 = vpop.f32.mrb[0].mxu0
        %v2927 = vadd.f32 %v2734, %v2926
        %2928 = vmatprep.mubr.bf16.mxu0 %v1424
        %2929 = vmatmul.mubr.bf16.gmra.mrb[0].mxu0 %v1423
        %v2930 = vpop.f32.mrb[0].mxu0
        %v2931 = vadd.f32 %v2738, %v2930
        %v2932 = vpop.f32.mrb[0].mxu0
        %v2933 = vadd.f32 %v2740, %v2932
        %v2934 = vpop.f32.mrb[0].mxu0
        %v2935 = vadd.f32 %v2742, %v2934
        %v2936 = vpop.f32.mrb[0].mxu0
        %v2937 = vadd.f32 %v2744, %v2936
        %2938 = vmatprep.mubr.bf16.mxu0 %v1428
        %2939 = vmatmul.mubr.bf16.gmra.mrb[0].mxu0 %v1427
        %v2940 = vpop.f32.mrb[0].mxu0
        %v2941 = vadd.f32 %v2748, %v2940
        %v2942 = vpop.f32.mrb[0].mxu0
        %v2943 = vadd.f32 %v2750, %v2942
        %v2944 = vpop.f32.mrb[0].mxu0
        %v2945 = vadd.f32 %v2752, %v2944
        %v2946 = vpop.f32.mrb[0].mxu0
        %v2947 = vadd.f32 %v2754, %v2946
        %2948 = vmatprep.mubr.bf16.mxu0 %v1432
        %2949 = vmatmul.mubr.bf16.gmra.mrb[0].mxu0 %v1431
        %v2950 = vpop.f32.mrb[0].mxu0
        %v2951 = vadd.f32 %v2758, %v2950
        %v2952 = vpop.f32.mrb[0].mxu0
        %v2953 = vadd.f32 %v2760, %v2952
        %v2954 = vpop.f32.mrb[0].mxu0
        %v2955 = vadd.f32 %v2762, %v2954
        %v2956 = vpop.f32.mrb[0].mxu0
        %v2957 = vadd.f32 %v2764, %v2956
        %2958 = vmatprep.mubr.bf16.mxu0 %v1436
        %2959 = vmatmul.mubr.bf16.gmra.mrb[0].mxu0 %v1435
        %v2960 = vpop.f32.mrb[0].mxu0
        %v2961 = vadd.f32 %v2768, %v2960
        %v2962 = vpop.f32.mrb[0].mxu0
        %v2963 = vadd.f32 %v2770, %v2962
        %v2964 = vpop.f32.mrb[0].mxu0
        %v2965 = vadd.f32 %v2772, %v2964
        %v2966 = vpop.f32.mrb[0].mxu0
        %v2967 = vadd.f32 %v2774, %v2966
        %2968 = vmatprep.mubr.bf16.mxu0 %v1440
        %2969 = vmatmul.mubr.bf16.gmra.mrb[0].mxu0 %v1439
        %v2970 = vpop.f32.mrb[0].mxu0
        %v2971 = vadd.f32 %v2778, %v2970
        %v2972 = vpop.f32.mrb[0].mxu0
        %v2973 = vadd.f32 %v2780, %v2972
        %v2974 = vpop.f32.mrb[0].mxu0
        %v2975 = vadd.f32 %v2782, %v2974
        %v2976 = vpop.f32.mrb[0].mxu0
        %v2977 = vadd.f32 %v2784, %v2976
        %2978 = vmatprep.mubr.bf16.mxu0 %v1444
        %2979 = vmatmul.mubr.bf16.gmra.mrb[0].mxu0 %v1443
        %v2980 = vpop.f32.mrb[0].mxu0
        %v2981 = vadd.f32 %v2788, %v2980
        %v2982 = vpop.f32.mrb[0].mxu0
        %v2983 = vadd.f32 %v2790, %v2982
        %v2984 = vpop.f32.mrb[0].mxu0
        %v2985 = vadd.f32 %v2792, %v2984
        %v2986 = vpop.f32.mrb[0].mxu0
        %v2987 = vadd.f32 %v2794, %v2986
        %2988 = vmatprep.mubr.bf16.mxu0 %v1448
        %2989 = vmatmul.mubr.bf16.gmra.mrb[0].mxu0 %v1447
        %v2990 = vpop.f32.mrb[0].mxu0
        %v2991 = vadd.f32 %v2798, %v2990
        %v2992 = vpop.f32.mrb[0].mxu0
        %v2993 = vadd.f32 %v2800, %v2992
        %v2994 = vpop.f32.mrb[0].mxu0
        %v2995 = vadd.f32 %v2802, %v2994
        %v2996 = vpop.f32.mrb[0].mxu0
        %v2997 = vadd.f32 %v2804, %v2996
        %2998 = vmatprep.mubr.bf16.mxu0 %v1452
        %2999 = vmatmul.mubr.bf16.gmra.mrb[0].mxu0 %v1451
        %v3000 = vpop.f32.mrb[0].mxu0
        %v3001 = vadd.f32 %v2808, %v3000
        %v3002 = vpop.f32.mrb[0].mxu0
        %v3003 = vadd.f32 %v2810, %v3002
        %v3004 = vpop.f32.mrb[0].mxu0
        %v3005 = vadd.f32 %v2812, %v3004
        %v3006 = vpop.f32.mrb[0].mxu0
        %v3007 = vadd.f32 %v2814, %v3006
        %3008 = vmatprep.mubr.bf16.mxu0 %v1456
        %3009 = vmatmul.mubr.bf16.gmra.mrb[0].mxu0 %v1455
        %v3010 = vpop.f32.mrb[0].mxu0
        %v3011 = vadd.f32 %v2818, %v3010
        %v3012 = vpop.f32.mrb[0].mxu0
        %v3013 = vadd.f32 %v2820, %v3012
        %v3014 = vpop.f32.mrb[0].mxu0
        %v3015 = vadd.f32 %v2822, %v3014
        %v3016 = vpop.f32.mrb[0].mxu0
        %v3017 = vadd.f32 %v2824, %v3016
        %3018 = vdwg.mxu0
        %v3019 = vmax.f32 %v2475, 0.0
        %v3020 = vmax.f32 %v2477, 0.0
        %v3021 = vmax.f32 %v2861, 0.0
        %v3022 = vmax.f32 %v2863, 0.0
        %v3023 = vmax.f32 %v2479, 0.0
        %v3024 = vmax.f32 %v2481, 0.0
        %v3025 = vmax.f32 %v2865, 0.0
        %v3026 = vmax.f32 %v2867, 0.0
        %v3027 = vmax.f32 %v2485, 0.0
        %v3028 = vmax.f32 %v2487, 0.0
        %v3029 = vmax.f32 %v2871, 0.0
        %v3030 = vmax.f32 %v2873, 0.0
        %v3031 = vmax.f32 %v2489, 0.0
        %v3032 = vmax.f32 %v2491, 0.0
        %v3033 = vmax.f32 %v2875, 0.0
        %v3034 = vmax.f32 %v2877, 0.0
        %v3035 = vmax.f32 %v2495, 0.0
        %v3036 = vmax.f32 %v2497, 0.0
        %v3037 = vmax.f32 %v2881, 0.0
        %v3038 = vmax.f32 %v2883, 0.0
        %v3039 = vmax.f32 %v2499, 0.0
        %v3040 = vmax.f32 %v2501, 0.0
        %v3041 = vmax.f32 %v2885, 0.0
        %v3042 = vmax.f32 %v2887, 0.0
        %v3043 = vmax.f32 %v2505, 0.0
        %v3044 = vmax.f32 %v2507, 0.0
        %v3045 = vmax.f32 %v2891, 0.0
        %v3046 = vmax.f32 %v2893, 0.0
        %v3047 = vmax.f32 %v2509, 0.0
        %v3048 = vmax.f32 %v2511, 0.0
        %v3049 = vmax.f32 %v2895, 0.0
        %v3050 = vmax.f32 %v2897, 0.0
        %v3051 = vmax.f32 %v2515, 0.0
        %v3052 = vmax.f32 %v2517, 0.0
        %v3053 = vmax.f32 %v2901, 0.0
        %v3054 = vmax.f32 %v2903, 0.0
        %v3055 = vmax.f32 %v2519, 0.0
        %v3056 = vmax.f32 %v2521, 0.0
        %v3057 = vmax.f32 %v2905, 0.0
        %v3058 = vmax.f32 %v2907, 0.0
        %v3059 = vmax.f32 %v2525, 0.0
        %v3060 = vmax.f32 %v2527, 0.0
        %v3061 = vmax.f32 %v2911, 0.0
        %v3062 = vmax.f32 %v2913, 0.0
        %v3063 = vmax.f32 %v2529, 0.0
        %v3064 = vmax.f32 %v2531, 0.0
        %v3065 = vmax.f32 %v2915, 0.0
        %v3066 = vmax.f32 %v2917, 0.0
        %v3067 = vmax.f32 %v2535, 0.0
        %v3068 = vmax.f32 %v2537, 0.0
        %v3069 = vmax.f32 %v2921, 0.0
        %v3070 = vmax.f32 %v2923, 0.0
        %v3071 = vmax.f32 %v2539, 0.0
        %v3072 = vmax.f32 %v2541, 0.0
        %v3073 = vmax.f32 %v2925, 0.0
        %v3074 = vmax.f32 %v2927, 0.0
        %v3075 = vmax.f32 %v2545, 0.0
        %v3076 = vmax.f32 %v2547, 0.0
        %v3077 = vmax.f32 %v2931, 0.0
        %v3078 = vmax.f32 %v2933, 0.0
        %v3079 = vmax.f32 %v2549, 0.0
        %v3080 = vmax.f32 %v2551, 0.0
        %v3081 = vmax.f32 %v2935, 0.0
        %v3082 = vmax.f32 %v2937, 0.0
        %v3083 = vmax.f32 %v2555, 0.0
        %v3084 = vmax.f32 %v2557, 0.0
        %v3085 = vmax.f32 %v2941, 0.0
        %v3086 = vmax.f32 %v2943, 0.0
        %v3087 = vmax.f32 %v2559, 0.0
        %v3088 = vmax.f32 %v2561, 0.0
        %v3089 = vmax.f32 %v2945, 0.0
        %v3090 = vmax.f32 %v2947, 0.0
        %v3091 = vmax.f32 %v2565, 0.0
        %v3092 = vmax.f32 %v2567, 0.0
        %v3093 = vmax.f32 %v2951, 0.0
        %v3094 = vmax.f32 %v2953, 0.0
        %v3095 = vmax.f32 %v2569, 0.0
        %v3096 = vmax.f32 %v2571, 0.0
        %v3097 = vmax.f32 %v2955, 0.0
        %v3098 = vmax.f32 %v2957, 0.0
        %v3099 = vmax.f32 %v2575, 0.0
        %v3100 = vmax.f32 %v2577, 0.0
        %v3101 = vmax.f32 %v2961, 0.0
        %v3102 = vmax.f32 %v2963, 0.0
        %v3103 = vmax.f32 %v2579, 0.0
        %v3104 = vmax.f32 %v2581, 0.0
        %v3105 = vmax.f32 %v2965, 0.0
        %v3106 = vmax.f32 %v2967, 0.0
        %v3107 = vmax.f32 %v2585, 0.0
        %v3108 = vmax.f32 %v2587, 0.0
        %v3109 = vmax.f32 %v2971, 0.0
        %v3110 = vmax.f32 %v2973, 0.0
        %v3111 = vmax.f32 %v2589, 0.0
        %v3112 = vmax.f32 %v2591, 0.0
        %v3113 = vmax.f32 %v2975, 0.0
        %v3114 = vmax.f32 %v2977, 0.0
        %v3115 = vmax.f32 %v2595, 0.0
        %v3116 = vmax.f32 %v2597, 0.0
        %v3117 = vmax.f32 %v2981, 0.0
        %v3118 = vmax.f32 %v2983, 0.0
        %v3119 = vmax.f32 %v2599, 0.0
        %v3120 = vmax.f32 %v2601, 0.0
        %v3121 = vmax.f32 %v2985, 0.0
        %v3122 = vmax.f32 %v2987, 0.0
        %v3123 = vmax.f32 %v2605, 0.0
        %v3124 = vmax.f32 %v2607, 0.0
        %v3125 = vmax.f32 %v2991, 0.0
        %v3126 = vmax.f32 %v2993, 0.0
        %v3127 = vmax.f32 %v2609, 0.0
        %v3128 = vmax.f32 %v2611, 0.0
        %v3129 = vmax.f32 %v2995, 0.0
        %v3130 = vmax.f32 %v2997, 0.0
        %v3131 = vmax.f32 %v2615, 0.0
        %v3132 = vmax.f32 %v2617, 0.0
        %v3133 = vmax.f32 %v3001, 0.0
        %v3134 = vmax.f32 %v3003, 0.0
        %v3135 = vmax.f32 %v2619, 0.0
        %v3136 = vmax.f32 %v2621, 0.0
        %v3137 = vmax.f32 %v3005, 0.0
        %v3138 = vmax.f32 %v3007, 0.0
        %v3139 = vmax.f32 %v2625, 0.0
        %v3140 = vmax.f32 %v2627, 0.0
        %v3141 = vmax.f32 %v3011, 0.0
        %v3142 = vmax.f32 %v3013, 0.0
        %v3143 = vmax.f32 %v2629, 0.0
        %v3144 = vmax.f32 %v2631, 0.0
        %v3145 = vmax.f32 %v3015, 0.0
        %v3146 = vmax.f32 %v3017, 0.0
        %v3147 = vpack.c.bf16 %v3023, %v3019
        %v3148 = vpack.c.bf16 %v3024, %v3020
        %v3149 = vpack.c.bf16 %v3025, %v3021
        %v3150 = vpack.c.bf16 %v3026, %v3022
        %v3151 = vpack.c.bf16 %v3031, %v3027
        %v3152 = vpack.c.bf16 %v3032, %v3028
        %v3153 = vpack.c.bf16 %v3033, %v3029
        %v3154 = vpack.c.bf16 %v3034, %v3030
        %v3155 = vpack.c.bf16 %v3039, %v3035
        %v3156 = vpack.c.bf16 %v3040, %v3036
        %v3157 = vpack.c.bf16 %v3041, %v3037
        %v3158 = vpack.c.bf16 %v3042, %v3038
        %v3159 = vpack.c.bf16 %v3047, %v3043
        %v3160 = vpack.c.bf16 %v3048, %v3044
        %v3161 = vpack.c.bf16 %v3049, %v3045
        %v3162 = vpack.c.bf16 %v3050, %v3046
        %v3163 = vpack.c.bf16 %v3055, %v3051
        %v3164 = vpack.c.bf16 %v3056, %v3052
        %v3165 = vpack.c.bf16 %v3057, %v3053
        %v3166 = vpack.c.bf16 %v3058, %v3054
        %v3167 = vpack.c.bf16 %v3063, %v3059
        %v3168 = vpack.c.bf16 %v3064, %v3060
        %v3169 = vpack.c.bf16 %v3065, %v3061
        %v3170 = vpack.c.bf16 %v3066, %v3062
        %v3171 = vpack.c.bf16 %v3071, %v3067
        %v3172 = vpack.c.bf16 %v3072, %v3068
        %v3173 = vpack.c.bf16 %v3073, %v3069
        %v3174 = vpack.c.bf16 %v3074, %v3070
        %v3175 = vpack.c.bf16 %v3079, %v3075
        %v3176 = vpack.c.bf16 %v3080, %v3076
        %v3177 = vpack.c.bf16 %v3081, %v3077
        %v3178 = vpack.c.bf16 %v3082, %v3078
        %v3179 = vpack.c.bf16 %v3087, %v3083
        %v3180 = vpack.c.bf16 %v3088, %v3084
        %v3181 = vpack.c.bf16 %v3089, %v3085
        %v3182 = vpack.c.bf16 %v3090, %v3086
        %v3183 = vpack.c.bf16 %v3095, %v3091
        %v3184 = vpack.c.bf16 %v3096, %v3092
        %v3185 = vpack.c.bf16 %v3097, %v3093
        %v3186 = vpack.c.bf16 %v3098, %v3094
        %v3187 = vpack.c.bf16 %v3103, %v3099
        %v3188 = vpack.c.bf16 %v3104, %v3100
        %v3189 = vpack.c.bf16 %v3105, %v3101
        %v3190 = vpack.c.bf16 %v3106, %v3102
        %v3191 = vpack.c.bf16 %v3111, %v3107
        %v3192 = vpack.c.bf16 %v3112, %v3108
        %v3193 = vpack.c.bf16 %v3113, %v3109
        %v3194 = vpack.c.bf16 %v3114, %v3110
        %v3195 = vpack.c.bf16 %v3119, %v3115
        %v3196 = vpack.c.bf16 %v3120, %v3116
        %v3197 = vpack.c.bf16 %v3121, %v3117
        %v3198 = vpack.c.bf16 %v3122, %v3118
        %v3199 = vpack.c.bf16 %v3127, %v3123
        %v3200 = vpack.c.bf16 %v3128, %v3124
        %v3201 = vpack.c.bf16 %v3129, %v3125
        %v3202 = vpack.c.bf16 %v3130, %v3126
        %v3203 = vpack.c.bf16 %v3135, %v3131
        %v3204 = vpack.c.bf16 %v3136, %v3132
        %v3205 = vpack.c.bf16 %v3137, %v3133
        %v3206 = vpack.c.bf16 %v3138, %v3134
        %v3207 = vpack.c.bf16 %v3143, %v3139
        %v3208 = vpack.c.bf16 %v3144, %v3140
        %v3209 = vpack.c.bf16 %v3145, %v3141
        %v3210 = vpack.c.bf16 %v3146, %v3142
        %v3211 = vld [vmem:[#allocation6] sm:$0xff]
        %v3212 = vld [vmem:[#allocation6 + $0x8] sm:$0xff]
        %v3213 = vld [vmem:[#allocation6 + $0x10] sm:$0xff]
        %v3214 = vld [vmem:[#allocation6 + $0x18] sm:$0xff]
        %v3215 = vld [vmem:[#allocation6 + $0x20] sm:$0xff]
        %v3216 = vld [vmem:[#allocation6 + $0x28] sm:$0xff]
        %v3217 = vld [vmem:[#allocation6 + $0x30] sm:$0xff]
        %v3218 = vld [vmem:[#allocation6 + $0x38] sm:$0xff]
        %v3219 = vld [vmem:[#allocation6 + $0x40] sm:$0xff]
        %v3220 = vld [vmem:[#allocation6 + $0x48] sm:$0xff]
        %v3221 = vld [vmem:[#allocation6 + $0x50] sm:$0xff]
        %v3222 = vld [vmem:[#allocation6 + $0x58] sm:$0xff]
        %v3223 = vld [vmem:[#allocation6 + $0x60] sm:$0xff]
        %v3224 = vld [vmem:[#allocation6 + $0x68] sm:$0xff]
        %v3225 = vld [vmem:[#allocation6 + $0x70] sm:$0xff]
        %v3226 = vld [vmem:[#allocation6 + $0x78] sm:$0xff]
        %v3227 = vld [vmem:[#allocation6 + $0x80] sm:$0xff]
        %v3228 = vld [vmem:[#allocation6 + $0x88] sm:$0xff]
        %v3229 = vld [vmem:[#allocation6 + $0x90] sm:$0xff]
        %v3230 = vld [vmem:[#allocation6 + $0x98] sm:$0xff]
        %v3231 = vld [vmem:[#allocation6 + $0xa0] sm:$0xff]
        %v3232 = vld [vmem:[#allocation6 + $0xa8] sm:$0xff]
        %v3233 = vld [vmem:[#allocation6 + $0xb0] sm:$0xff]
        %v3234 = vld [vmem:[#allocation6 + $0xb8] sm:$0xff]
        %v3235 = vld [vmem:[#allocation6 + $0xc0] sm:$0xff]
        %v3236 = vld [vmem:[#allocation6 + $0xc8] sm:$0xff]
        %v3237 = vld [vmem:[#allocation6 + $0xd0] sm:$0xff]
        %v3238 = vld [vmem:[#allocation6 + $0xd8] sm:$0xff]
        %v3239 = vld [vmem:[#allocation6 + $0xe0] sm:$0xff]
        %v3240 = vld [vmem:[#allocation6 + $0xe8] sm:$0xff]
        %v3241 = vld [vmem:[#allocation6 + $0xf0] sm:$0xff]
        %v3242 = vld [vmem:[#allocation6 + $0xf8] sm:$0xff]
        %v3243 = vld [vmem:[#allocation6 + $0x100] sm:$0xff]
        %v3244 = vld [vmem:[#allocation6 + $0x108] sm:$0xff]
        %v3245 = vld [vmem:[#allocation6 + $0x110] sm:$0xff]
        %v3246 = vld [vmem:[#allocation6 + $0x118] sm:$0xff]
        %v3247 = vld [vmem:[#allocation6 + $0x120] sm:$0xff]
        %v3248 = vld [vmem:[#allocation6 + $0x128] sm:$0xff]
        %v3249 = vld [vmem:[#allocation6 + $0x130] sm:$0xff]
        %v3250 = vld [vmem:[#allocation6 + $0x138] sm:$0xff]
        %v3251 = vld [vmem:[#allocation6 + $0x140] sm:$0xff]
        %v3252 = vld [vmem:[#allocation6 + $0x148] sm:$0xff]
        %v3253 = vld [vmem:[#allocation6 + $0x150] sm:$0xff]
        %v3254 = vld [vmem:[#allocation6 + $0x158] sm:$0xff]
        %v3255 = vld [vmem:[#allocation6 + $0x160] sm:$0xff]
        %v3256 = vld [vmem:[#allocation6 + $0x168] sm:$0xff]
        %v3257 = vld [vmem:[#allocation6 + $0x170] sm:$0xff]
        %v3258 = vld [vmem:[#allocation6 + $0x178] sm:$0xff]
        %v3259 = vld [vmem:[#allocation6 + $0x180] sm:$0xff]
        %v3260 = vld [vmem:[#allocation6 + $0x188] sm:$0xff]
        %v3261 = vld [vmem:[#allocation6 + $0x190] sm:$0xff]
        %v3262 = vld [vmem:[#allocation6 + $0x198] sm:$0xff]
        %v3263 = vld [vmem:[#allocation6 + $0x1a0] sm:$0xff]
        %v3264 = vld [vmem:[#allocation6 + $0x1a8] sm:$0xff]
        %v3265 = vld [vmem:[#allocation6 + $0x1b0] sm:$0xff]
        %v3266 = vld [vmem:[#allocation6 + $0x1b8] sm:$0xff]
        %v3267 = vld [vmem:[#allocation6 + $0x1c0] sm:$0xff]
        %v3268 = vld [vmem:[#allocation6 + $0x1c8] sm:$0xff]
        %v3269 = vld [vmem:[#allocation6 + $0x1d0] sm:$0xff]
        %v3270 = vld [vmem:[#allocation6 + $0x1d8] sm:$0xff]
        %v3271 = vld [vmem:[#allocation6 + $0x1e0] sm:$0xff]
        %v3272 = vld [vmem:[#allocation6 + $0x1e8] sm:$0xff]
        %v3273 = vld [vmem:[#allocation6 + $0x1f0] sm:$0xff]
        %v3274 = vld [vmem:[#allocation6 + $0x1f8] sm:$0xff]
        %v3275 = vld [vmem:[#allocation6 + $0x200] sm:$0xff]
        %v3276 = vld [vmem:[#allocation6 + $0x208] sm:$0xff]
        %v3277 = vld [vmem:[#allocation6 + $0x210] sm:$0xff]
        %v3278 = vld [vmem:[#allocation6 + $0x218] sm:$0xff]
        %v3279 = vld [vmem:[#allocation6 + $0x220] sm:$0xff]
        %v3280 = vld [vmem:[#allocation6 + $0x228] sm:$0xff]
        %v3281 = vld [vmem:[#allocation6 + $0x230] sm:$0xff]
        %v3282 = vld [vmem:[#allocation6 + $0x238] sm:$0xff]
        %v3283 = vld [vmem:[#allocation6 + $0x240] sm:$0xff]
        %v3284 = vld [vmem:[#allocation6 + $0x248] sm:$0xff]
        %v3285 = vld [vmem:[#allocation6 + $0x250] sm:$0xff]
        %v3286 = vld [vmem:[#allocation6 + $0x258] sm:$0xff]
        %v3287 = vld [vmem:[#allocation6 + $0x260] sm:$0xff]
        %v3288 = vld [vmem:[#allocation6 + $0x268] sm:$0xff]
        %v3289 = vld [vmem:[#allocation6 + $0x270] sm:$0xff]
        %v3290 = vld [vmem:[#allocation6 + $0x278] sm:$0xff]
        %v3291 = vld [vmem:[#allocation6 + $0x280] sm:$0xff]
        %v3292 = vld [vmem:[#allocation6 + $0x288] sm:$0xff]
        %v3293 = vld [vmem:[#allocation6 + $0x290] sm:$0xff]
        %v3294 = vld [vmem:[#allocation6 + $0x298] sm:$0xff]
        %v3295 = vld [vmem:[#allocation6 + $0x2a0] sm:$0xff]
        %v3296 = vld [vmem:[#allocation6 + $0x2a8] sm:$0xff]
        %v3297 = vld [vmem:[#allocation6 + $0x2b0] sm:$0xff]
        %v3298 = vld [vmem:[#allocation6 + $0x2b8] sm:$0xff]
        %v3299 = vld [vmem:[#allocation6 + $0x2c0] sm:$0xff]
        %v3300 = vld [vmem:[#allocation6 + $0x2c8] sm:$0xff]
        %v3301 = vld [vmem:[#allocation6 + $0x2d0] sm:$0xff]
        %v3302 = vld [vmem:[#allocation6 + $0x2d8] sm:$0xff]
        %v3303 = vld [vmem:[#allocation6 + $0x2e0] sm:$0xff]
        %v3304 = vld [vmem:[#allocation6 + $0x2e8] sm:$0xff]
        %v3305 = vld [vmem:[#allocation6 + $0x2f0] sm:$0xff]
        %v3306 = vld [vmem:[#allocation6 + $0x2f8] sm:$0xff]
        %v3307 = vld [vmem:[#allocation6 + $0x300] sm:$0xff]
        %v3308 = vld [vmem:[#allocation6 + $0x308] sm:$0xff]
        %v3309 = vld [vmem:[#allocation6 + $0x310] sm:$0xff]
        %v3310 = vld [vmem:[#allocation6 + $0x318] sm:$0xff]
        %v3311 = vld [vmem:[#allocation6 + $0x320] sm:$0xff]
        %v3312 = vld [vmem:[#allocation6 + $0x328] sm:$0xff]
        %v3313 = vld [vmem:[#allocation6 + $0x330] sm:$0xff]
        %v3314 = vld [vmem:[#allocation6 + $0x338] sm:$0xff]
        %v3315 = vld [vmem:[#allocation6 + $0x340] sm:$0xff]
        %v3316 = vld [vmem:[#allocation6 + $0x348] sm:$0xff]
        %v3317 = vld [vmem:[#allocation6 + $0x350] sm:$0xff]
        %v3318 = vld [vmem:[#allocation6 + $0x358] sm:$0xff]
        %v3319 = vld [vmem:[#allocation6 + $0x360] sm:$0xff]
        %v3320 = vld [vmem:[#allocation6 + $0x368] sm:$0xff]
        %v3321 = vld [vmem:[#allocation6 + $0x370] sm:$0xff]
        %v3322 = vld [vmem:[#allocation6 + $0x378] sm:$0xff]
        %v3323 = vld [vmem:[#allocation6 + $0x380] sm:$0xff]
        %v3324 = vld [vmem:[#allocation6 + $0x388] sm:$0xff]
        %v3325 = vld [vmem:[#allocation6 + $0x390] sm:$0xff]
        %v3326 = vld [vmem:[#allocation6 + $0x398] sm:$0xff]
        %v3327 = vld [vmem:[#allocation6 + $0x3a0] sm:$0xff]
        %v3328 = vld [vmem:[#allocation6 + $0x3a8] sm:$0xff]
        %v3329 = vld [vmem:[#allocation6 + $0x3b0] sm:$0xff]
        %v3330 = vld [vmem:[#allocation6 + $0x3b8] sm:$0xff]
        %v3331 = vld [vmem:[#allocation6 + $0x3c0] sm:$0xff]
        %v3332 = vld [vmem:[#allocation6 + $0x3c8] sm:$0xff]
        %v3333 = vld [vmem:[#allocation6 + $0x3d0] sm:$0xff]
        %v3334 = vld [vmem:[#allocation6 + $0x3d8] sm:$0xff]
        %v3335 = vld [vmem:[#allocation6 + $0x3e0] sm:$0xff]
        %v3336 = vld [vmem:[#allocation6 + $0x3e8] sm:$0xff]
        %v3337 = vld [vmem:[#allocation6 + $0x3f0] sm:$0xff]
        %v3338 = vld [vmem:[#allocation6 + $0x3f8] sm:$0xff]
        %v3339 = vld [vmem:[%s6] sm:$0xf]
        %v3341 = vlaneseq
        %v3342 = vshrl.u32 %v3341, 7
        %v3343 = vsub.s32 0, %v3342
        %v3344 = vrot.slane %v3339, %v3343
        %v3345 = vlaneseq
        %v3346 = vshrl.u32 %v3345, 7
        %v3347 = vsub.s32 1, %v3346
        %v3348 = vrot.slane %v3339, %v3347
        %v3349 = vlaneseq
        %v3350 = vshrl.u32 %v3349, 7
        %v3351 = vsub.s32 2, %v3350
        %v3352 = vrot.slane %v3339, %v3351
        %v3353 = vlaneseq
        %v3354 = vshrl.u32 %v3353, 7
        %v3355 = vsub.s32 3, %v3354
        %v3356 = vrot.slane %v3339, %v3355
        %v3489 = vunpack.c.l.b16 %v3211
        %v3490 = vunpack.c.h.b16 %v3211
        %v3491 = vunpack.c.l.b16 %v3212
        %v3492 = vunpack.c.h.b16 %v3212
        %v3493 = vunpack.c.l.b16 %v3213
        %v3494 = vunpack.c.h.b16 %v3213
        %v3495 = vunpack.c.l.b16 %v3214
        %v3496 = vunpack.c.h.b16 %v3214
        %v3497 = vunpack.c.l.b16 %v3215
        %v3498 = vunpack.c.h.b16 %v3215
        %v3499 = vunpack.c.l.b16 %v3216
        %v3500 = vunpack.c.h.b16 %v3216
        %v3501 = vunpack.c.l.b16 %v3217
        %v3502 = vunpack.c.h.b16 %v3217
        %v3503 = vunpack.c.l.b16 %v3218
        %v3504 = vunpack.c.h.b16 %v3218
        %v3505 = vunpack.c.l.b16 %v3219
        %v3506 = vunpack.c.h.b16 %v3219
        %v3507 = vunpack.c.l.b16 %v3220
        %v3508 = vunpack.c.h.b16 %v3220
        %v3509 = vunpack.c.l.b16 %v3221
        %v3510 = vunpack.c.h.b16 %v3221
        %v3511 = vunpack.c.l.b16 %v3222
        %v3512 = vunpack.c.h.b16 %v3222
        %v3513 = vunpack.c.l.b16 %v3223
        %v3514 = vunpack.c.h.b16 %v3223
        %v3515 = vunpack.c.l.b16 %v3224
        %v3516 = vunpack.c.h.b16 %v3224
        %v3517 = vunpack.c.l.b16 %v3225
        %v3518 = vunpack.c.h.b16 %v3225
        %v3519 = vunpack.c.l.b16 %v3226
        %v3520 = vunpack.c.h.b16 %v3226
        %v3521 = vunpack.c.l.b16 %v3227
        %v3522 = vunpack.c.h.b16 %v3227
        %v3523 = vunpack.c.l.b16 %v3228
        %v3524 = vunpack.c.h.b16 %v3228
        %v3525 = vunpack.c.l.b16 %v3229
        %v3526 = vunpack.c.h.b16 %v3229
        %v3527 = vunpack.c.l.b16 %v3230
        %v3528 = vunpack.c.h.b16 %v3230
        %v3529 = vunpack.c.l.b16 %v3231
        %v3530 = vunpack.c.h.b16 %v3231
        %v3531 = vunpack.c.l.b16 %v3232
        %v3532 = vunpack.c.h.b16 %v3232
        %v3533 = vunpack.c.l.b16 %v3233
        %v3534 = vunpack.c.h.b16 %v3233
        %v3535 = vunpack.c.l.b16 %v3234
        %v3536 = vunpack.c.h.b16 %v3234
        %v3537 = vunpack.c.l.b16 %v3235
        %v3538 = vunpack.c.h.b16 %v3235
        %v3539 = vunpack.c.l.b16 %v3236
        %v3540 = vunpack.c.h.b16 %v3236
        %v3541 = vunpack.c.l.b16 %v3237
        %v3542 = vunpack.c.h.b16 %v3237
        %v3543 = vunpack.c.l.b16 %v3238
        %v3544 = vunpack.c.h.b16 %v3238
        %v3545 = vunpack.c.l.b16 %v3239
        %v3546 = vunpack.c.h.b16 %v3239
        %v3547 = vunpack.c.l.b16 %v3240
        %v3548 = vunpack.c.h.b16 %v3240
        %v3549 = vunpack.c.l.b16 %v3241
        %v3550 = vunpack.c.h.b16 %v3241
        %v3551 = vunpack.c.l.b16 %v3242
        %v3552 = vunpack.c.h.b16 %v3242
        %v3553 = vunpack.c.l.b16 %v3243
        %v3554 = vunpack.c.h.b16 %v3243
        %v3555 = vunpack.c.l.b16 %v3244
        %v3556 = vunpack.c.h.b16 %v3244
        %v3557 = vunpack.c.l.b16 %v3245
        %v3558 = vunpack.c.h.b16 %v3245
        %v3559 = vunpack.c.l.b16 %v3246
        %v3560 = vunpack.c.h.b16 %v3246
        %v3561 = vunpack.c.l.b16 %v3247
        %v3562 = vunpack.c.h.b16 %v3247
        %v3563 = vunpack.c.l.b16 %v3248
        %v3564 = vunpack.c.h.b16 %v3248
        %v3565 = vunpack.c.l.b16 %v3249
        %v3566 = vunpack.c.h.b16 %v3249
        %v3567 = vunpack.c.l.b16 %v3250
        %v3568 = vunpack.c.h.b16 %v3250
        %v3569 = vunpack.c.l.b16 %v3251
        %v3570 = vunpack.c.h.b16 %v3251
        %v3571 = vunpack.c.l.b16 %v3252
        %v3572 = vunpack.c.h.b16 %v3252
        %v3573 = vunpack.c.l.b16 %v3253
        %v3574 = vunpack.c.h.b16 %v3253
        %v3575 = vunpack.c.l.b16 %v3254
        %v3576 = vunpack.c.h.b16 %v3254
        %v3577 = vunpack.c.l.b16 %v3255
        %v3578 = vunpack.c.h.b16 %v3255
        %v3579 = vunpack.c.l.b16 %v3256
        %v3580 = vunpack.c.h.b16 %v3256
        %v3581 = vunpack.c.l.b16 %v3257
        %v3582 = vunpack.c.h.b16 %v3257
        %v3583 = vunpack.c.l.b16 %v3258
        %v3584 = vunpack.c.h.b16 %v3258
        %v3585 = vunpack.c.l.b16 %v3259
        %v3586 = vunpack.c.h.b16 %v3259
        %v3587 = vunpack.c.l.b16 %v3260
        %v3588 = vunpack.c.h.b16 %v3260
        %v3589 = vunpack.c.l.b16 %v3261
        %v3590 = vunpack.c.h.b16 %v3261
        %v3591 = vunpack.c.l.b16 %v3262
        %v3592 = vunpack.c.h.b16 %v3262
        %v3593 = vunpack.c.l.b16 %v3263
        %v3594 = vunpack.c.h.b16 %v3263
        %v3595 = vunpack.c.l.b16 %v3264
        %v3596 = vunpack.c.h.b16 %v3264
        %v3597 = vunpack.c.l.b16 %v3265
        %v3598 = vunpack.c.h.b16 %v3265
        %v3599 = vunpack.c.l.b16 %v3266
        %v3600 = vunpack.c.h.b16 %v3266
        %v3601 = vunpack.c.l.b16 %v3267
        %v3602 = vunpack.c.h.b16 %v3267
        %v3603 = vunpack.c.l.b16 %v3268
        %v3604 = vunpack.c.h.b16 %v3268
        %v3605 = vunpack.c.l.b16 %v3269
        %v3606 = vunpack.c.h.b16 %v3269
        %v3607 = vunpack.c.l.b16 %v3270
        %v3608 = vunpack.c.h.b16 %v3270
        %v3609 = vunpack.c.l.b16 %v3271
        %v3610 = vunpack.c.h.b16 %v3271
        %v3611 = vunpack.c.l.b16 %v3272
        %v3612 = vunpack.c.h.b16 %v3272
        %v3613 = vunpack.c.l.b16 %v3273
        %v3614 = vunpack.c.h.b16 %v3273
        %v3615 = vunpack.c.l.b16 %v3274
        %v3616 = vunpack.c.h.b16 %v3274
        %v3617 = vunpack.c.l.b16 %v3275
        %v3618 = vunpack.c.h.b16 %v3275
        %v3619 = vunpack.c.l.b16 %v3276
        %v3620 = vunpack.c.h.b16 %v3276
        %v3621 = vunpack.c.l.b16 %v3277
        %v3622 = vunpack.c.h.b16 %v3277
        %v3623 = vunpack.c.l.b16 %v3278
        %v3624 = vunpack.c.h.b16 %v3278
        %v3625 = vunpack.c.l.b16 %v3279
        %v3626 = vunpack.c.h.b16 %v3279
        %v3627 = vunpack.c.l.b16 %v3280
        %v3628 = vunpack.c.h.b16 %v3280
        %v3629 = vunpack.c.l.b16 %v3281
        %v3630 = vunpack.c.h.b16 %v3281
        %v3631 = vunpack.c.l.b16 %v3282
        %v3632 = vunpack.c.h.b16 %v3282
        %v3633 = vunpack.c.l.b16 %v3283
        %v3634 = vunpack.c.h.b16 %v3283
        %v3635 = vunpack.c.l.b16 %v3284
        %v3636 = vunpack.c.h.b16 %v3284
        %v3637 = vunpack.c.l.b16 %v3285
        %v3638 = vunpack.c.h.b16 %v3285
        %v3639 = vunpack.c.l.b16 %v3286
        %v3640 = vunpack.c.h.b16 %v3286
        %v3641 = vunpack.c.l.b16 %v3287
        %v3642 = vunpack.c.h.b16 %v3287
        %v3643 = vunpack.c.l.b16 %v3288
        %v3644 = vunpack.c.h.b16 %v3288
        %v3645 = vunpack.c.l.b16 %v3289
        %v3646 = vunpack.c.h.b16 %v3289
        %v3647 = vunpack.c.l.b16 %v3290
        %v3648 = vunpack.c.h.b16 %v3290
        %v3649 = vunpack.c.l.b16 %v3291
        %v3650 = vunpack.c.h.b16 %v3291
        %v3651 = vunpack.c.l.b16 %v3292
        %v3652 = vunpack.c.h.b16 %v3292
        %v3653 = vunpack.c.l.b16 %v3293
        %v3654 = vunpack.c.h.b16 %v3293
        %v3655 = vunpack.c.l.b16 %v3294
        %v3656 = vunpack.c.h.b16 %v3294
        %v3657 = vunpack.c.l.b16 %v3295
        %v3658 = vunpack.c.h.b16 %v3295
        %v3659 = vunpack.c.l.b16 %v3296
        %v3660 = vunpack.c.h.b16 %v3296
        %v3661 = vunpack.c.l.b16 %v3297
        %v3662 = vunpack.c.h.b16 %v3297
        %v3663 = vunpack.c.l.b16 %v3298
        %v3664 = vunpack.c.h.b16 %v3298
        %v3665 = vunpack.c.l.b16 %v3299
        %v3666 = vunpack.c.h.b16 %v3299
        %v3667 = vunpack.c.l.b16 %v3300
        %v3668 = vunpack.c.h.b16 %v3300
        %v3669 = vunpack.c.l.b16 %v3301
        %v3670 = vunpack.c.h.b16 %v3301
        %v3671 = vunpack.c.l.b16 %v3302
        %v3672 = vunpack.c.h.b16 %v3302
        %v3673 = vunpack.c.l.b16 %v3303
        %v3674 = vunpack.c.h.b16 %v3303
        %v3675 = vunpack.c.l.b16 %v3304
        %v3676 = vunpack.c.h.b16 %v3304
        %v3677 = vunpack.c.l.b16 %v3305
        %v3678 = vunpack.c.h.b16 %v3305
        %v3679 = vunpack.c.l.b16 %v3306
        %v3680 = vunpack.c.h.b16 %v3306
        %v3681 = vunpack.c.l.b16 %v3307
        %v3682 = vunpack.c.h.b16 %v3307
        %v3683 = vunpack.c.l.b16 %v3308
        %v3684 = vunpack.c.h.b16 %v3308
        %v3685 = vunpack.c.l.b16 %v3309
        %v3686 = vunpack.c.h.b16 %v3309
        %v3687 = vunpack.c.l.b16 %v3310
        %v3688 = vunpack.c.h.b16 %v3310
        %v3689 = vunpack.c.l.b16 %v3311
        %v3690 = vunpack.c.h.b16 %v3311
        %v3691 = vunpack.c.l.b16 %v3312
        %v3692 = vunpack.c.h.b16 %v3312
        %v3693 = vunpack.c.l.b16 %v3313
        %v3694 = vunpack.c.h.b16 %v3313
        %v3695 = vunpack.c.l.b16 %v3314
        %v3696 = vunpack.c.h.b16 %v3314
        %v3697 = vunpack.c.l.b16 %v3315
        %v3698 = vunpack.c.h.b16 %v3315
        %v3699 = vunpack.c.l.b16 %v3316
        %v3700 = vunpack.c.h.b16 %v3316
        %v3701 = vunpack.c.l.b16 %v3317
        %v3702 = vunpack.c.h.b16 %v3317
        %v3703 = vunpack.c.l.b16 %v3318
        %v3704 = vunpack.c.h.b16 %v3318
        %v3705 = vunpack.c.l.b16 %v3319
        %v3706 = vunpack.c.h.b16 %v3319
        %v3707 = vunpack.c.l.b16 %v3320
        %v3708 = vunpack.c.h.b16 %v3320
        %v3709 = vunpack.c.l.b16 %v3321
        %v3710 = vunpack.c.h.b16 %v3321
        %v3711 = vunpack.c.l.b16 %v3322
        %v3712 = vunpack.c.h.b16 %v3322
        %v3713 = vunpack.c.l.b16 %v3323
        %v3714 = vunpack.c.h.b16 %v3323
        %v3715 = vunpack.c.l.b16 %v3324
        %v3716 = vunpack.c.h.b16 %v3324
        %v3717 = vunpack.c.l.b16 %v3325
        %v3718 = vunpack.c.h.b16 %v3325
        %v3719 = vunpack.c.l.b16 %v3326
        %v3720 = vunpack.c.h.b16 %v3326
        %v3721 = vunpack.c.l.b16 %v3327
        %v3722 = vunpack.c.h.b16 %v3327
        %v3723 = vunpack.c.l.b16 %v3328
        %v3724 = vunpack.c.h.b16 %v3328
        %v3725 = vunpack.c.l.b16 %v3329
        %v3726 = vunpack.c.h.b16 %v3329
        %v3727 = vunpack.c.l.b16 %v3330
        %v3728 = vunpack.c.h.b16 %v3330
        %v3729 = vunpack.c.l.b16 %v3331
        %v3730 = vunpack.c.h.b16 %v3331
        %v3731 = vunpack.c.l.b16 %v3332
        %v3732 = vunpack.c.h.b16 %v3332
        %v3733 = vunpack.c.l.b16 %v3333
        %v3734 = vunpack.c.h.b16 %v3333
        %v3735 = vunpack.c.l.b16 %v3334
        %v3736 = vunpack.c.h.b16 %v3334
        %v3737 = vunpack.c.l.b16 %v3335
        %v3738 = vunpack.c.h.b16 %v3335
        %v3739 = vunpack.c.l.b16 %v3336
        %v3740 = vunpack.c.h.b16 %v3336
        %v3741 = vunpack.c.l.b16 %v3337
        %v3742 = vunpack.c.h.b16 %v3337
        %v3743 = vunpack.c.l.b16 %v3338
        %v3744 = vunpack.c.h.b16 %v3338
        %v3745 = vpack.c.b16 %v3493, %v3489
        %v3746 = vpack.c.b16 %v3494, %v3490
        %v3747 = vpack.c.b16 %v3495, %v3491
        %v3748 = vpack.c.b16 %v3496, %v3492
        %v3749 = vpack.c.b16 %v3501, %v3497
        %v3750 = vpack.c.b16 %v3502, %v3498
        %v3751 = vpack.c.b16 %v3503, %v3499
        %v3752 = vpack.c.b16 %v3504, %v3500
        %v3753 = vpack.c.b16 %v3509, %v3505
        %v3754 = vpack.c.b16 %v3510, %v3506
        %v3755 = vpack.c.b16 %v3511, %v3507
        %v3756 = vpack.c.b16 %v3512, %v3508
        %v3757 = vpack.c.b16 %v3517, %v3513
        %v3758 = vpack.c.b16 %v3518, %v3514
        %v3759 = vpack.c.b16 %v3519, %v3515
        %v3760 = vpack.c.b16 %v3520, %v3516
        %v3761 = vpack.c.b16 %v3525, %v3521
        %v3762 = vpack.c.b16 %v3526, %v3522
        %v3763 = vpack.c.b16 %v3527, %v3523
        %v3764 = vpack.c.b16 %v3528, %v3524
        %v3765 = vpack.c.b16 %v3533, %v3529
        %v3766 = vpack.c.b16 %v3534, %v3530
        %v3767 = vpack.c.b16 %v3535, %v3531
        %v3768 = vpack.c.b16 %v3536, %v3532
        %v3769 = vpack.c.b16 %v3541, %v3537
        %v3770 = vpack.c.b16 %v3542, %v3538
        %v3771 = vpack.c.b16 %v3543, %v3539
        %v3772 = vpack.c.b16 %v3544, %v3540
        %v3773 = vpack.c.b16 %v3549, %v3545
        %v3774 = vpack.c.b16 %v3550, %v3546
        %v3775 = vpack.c.b16 %v3551, %v3547
        %v3776 = vpack.c.b16 %v3552, %v3548
        %v3777 = vpack.c.b16 %v3557, %v3553
        %v3778 = vpack.c.b16 %v3558, %v3554
        %v3779 = vpack.c.b16 %v3559, %v3555
        %v3780 = vpack.c.b16 %v3560, %v3556
        %v3781 = vpack.c.b16 %v3565, %v3561
        %v3782 = vpack.c.b16 %v3566, %v3562
        %v3783 = vpack.c.b16 %v3567, %v3563
        %v3784 = vpack.c.b16 %v3568, %v3564
        %v3785 = vpack.c.b16 %v3573, %v3569
        %v3786 = vpack.c.b16 %v3574, %v3570
        %v3787 = vpack.c.b16 %v3575, %v3571
        %v3788 = vpack.c.b16 %v3576, %v3572
        %v3789 = vpack.c.b16 %v3581, %v3577
        %v3790 = vpack.c.b16 %v3582, %v3578
        %v3791 = vpack.c.b16 %v3583, %v3579
        %v3792 = vpack.c.b16 %v3584, %v3580
        %v3793 = vpack.c.b16 %v3589, %v3585
        %v3794 = vpack.c.b16 %v3590, %v3586
        %v3795 = vpack.c.b16 %v3591, %v3587
        %v3796 = vpack.c.b16 %v3592, %v3588
        %v3797 = vpack.c.b16 %v3597, %v3593
        %v3798 = vpack.c.b16 %v3598, %v3594
        %v3799 = vpack.c.b16 %v3599, %v3595
        %v3800 = vpack.c.b16 %v3600, %v3596
        %v3801 = vpack.c.b16 %v3605, %v3601
        %v3802 = vpack.c.b16 %v3606, %v3602
        %v3803 = vpack.c.b16 %v3607, %v3603
        %v3804 = vpack.c.b16 %v3608, %v3604
        %v3805 = vpack.c.b16 %v3613, %v3609
        %v3806 = vpack.c.b16 %v3614, %v3610
        %v3807 = vpack.c.b16 %v3615, %v3611
        %v3808 = vpack.c.b16 %v3616, %v3612
        %v3809 = vpack.c.b16 %v3621, %v3617
        %v3810 = vpack.c.b16 %v3622, %v3618
        %v3811 = vpack.c.b16 %v3623, %v3619
        %v3812 = vpack.c.b16 %v3624, %v3620
        %v3813 = vpack.c.b16 %v3629, %v3625
        %v3814 = vpack.c.b16 %v3630, %v3626
        %v3815 = vpack.c.b16 %v3631, %v3627
        %v3816 = vpack.c.b16 %v3632, %v3628
        %v3817 = vpack.c.b16 %v3637, %v3633
        %v3818 = vpack.c.b16 %v3638, %v3634
        %v3819 = vpack.c.b16 %v3639, %v3635
        %v3820 = vpack.c.b16 %v3640, %v3636
        %v3821 = vpack.c.b16 %v3645, %v3641
        %v3822 = vpack.c.b16 %v3646, %v3642
        %v3823 = vpack.c.b16 %v3647, %v3643
        %v3824 = vpack.c.b16 %v3648, %v3644
        %v3825 = vpack.c.b16 %v3653, %v3649
        %v3826 = vpack.c.b16 %v3654, %v3650
        %v3827 = vpack.c.b16 %v3655, %v3651
        %v3828 = vpack.c.b16 %v3656, %v3652
        %v3829 = vpack.c.b16 %v3661, %v3657
        %v3830 = vpack.c.b16 %v3662, %v3658
        %v3831 = vpack.c.b16 %v3663, %v3659
        %v3832 = vpack.c.b16 %v3664, %v3660
        %v3833 = vpack.c.b16 %v3669, %v3665
        %v3834 = vpack.c.b16 %v3670, %v3666
        %v3835 = vpack.c.b16 %v3671, %v3667
        %v3836 = vpack.c.b16 %v3672, %v3668
        %v3837 = vpack.c.b16 %v3677, %v3673
        %v3838 = vpack.c.b16 %v3678, %v3674
        %v3839 = vpack.c.b16 %v3679, %v3675
        %v3840 = vpack.c.b16 %v3680, %v3676
        %v3841 = vpack.c.b16 %v3685, %v3681
        %v3842 = vpack.c.b16 %v3686, %v3682
        %v3843 = vpack.c.b16 %v3687, %v3683
        %v3844 = vpack.c.b16 %v3688, %v3684
        %v3845 = vpack.c.b16 %v3693, %v3689
        %v3846 = vpack.c.b16 %v3694, %v3690
        %v3847 = vpack.c.b16 %v3695, %v3691
        %v3848 = vpack.c.b16 %v3696, %v3692
        %v3849 = vpack.c.b16 %v3701, %v3697
        %v3850 = vpack.c.b16 %v3702, %v3698
        %v3851 = vpack.c.b16 %v3703, %v3699
        %v3852 = vpack.c.b16 %v3704, %v3700
        %v3853 = vpack.c.b16 %v3709, %v3705
        %v3854 = vpack.c.b16 %v3710, %v3706
        %v3855 = vpack.c.b16 %v3711, %v3707
        %v3856 = vpack.c.b16 %v3712, %v3708
        %v3857 = vpack.c.b16 %v3717, %v3713
        %v3858 = vpack.c.b16 %v3718, %v3714
        %v3859 = vpack.c.b16 %v3719, %v3715
        %v3860 = vpack.c.b16 %v3720, %v3716
        %v3861 = vpack.c.b16 %v3725, %v3721
        %v3862 = vpack.c.b16 %v3726, %v3722
        %v3863 = vpack.c.b16 %v3727, %v3723
        %v3864 = vpack.c.b16 %v3728, %v3724
        %v3865 = vpack.c.b16 %v3733, %v3729
        %v3866 = vpack.c.b16 %v3734, %v3730
        %v3867 = vpack.c.b16 %v3735, %v3731
        %v3868 = vpack.c.b16 %v3736, %v3732
        %v3869 = vpack.c.b16 %v3741, %v3737
        %v3870 = vpack.c.b16 %v3742, %v3738
        %v3871 = vpack.c.b16 %v3743, %v3739
        %v3872 = vpack.c.b16 %v3744, %v3740
        %4001 = vmatprep.subr.bf16.mxu0 %v3746
        %4002 = vmatpush1.bf16.msra.mxu0 %v3745
        %4003 = vmatprep.subr.bf16.mxu0 %v3750
        %4004 = vmatpush1.bf16.msra.mxu0 %v3749
        %4005 = vmatprep.subr.bf16.mxu0 %v3754
        %4006 = vmatpush1.bf16.msra.mxu0 %v3753
        %4007 = vmatprep.subr.bf16.mxu0 %v3758
        %4008 = vmatpush1.bf16.msra.mxu0 %v3757
        %4009 = vmatprep.subr.bf16.mxu0 %v3762
        %4010 = vmatpush1.bf16.msra.mxu0 %v3761
        %4011 = vmatprep.subr.bf16.mxu0 %v3766
        %4012 = vmatpush1.bf16.msra.mxu0 %v3765
        %4013 = vmatprep.subr.bf16.mxu0 %v3770
        %4014 = vmatpush1.bf16.msra.mxu0 %v3769
        %4015 = vmatprep.subr.bf16.mxu0 %v3774
        %4016 = vmatpush1.bf16.msra.mxu0 %v3773
        %4017 = vmatprep.subr.bf16.mxu0 %v3778
        %4018 = vmatpush1.bf16.msra.mxu0 %v3777
        %4019 = vmatprep.subr.bf16.mxu0 %v3782
        %4020 = vmatpush1.bf16.msra.mxu0 %v3781
        %4021 = vmatprep.subr.bf16.mxu0 %v3786
        %4022 = vmatpush1.bf16.msra.mxu0 %v3785
        %4023 = vmatprep.subr.bf16.mxu0 %v3790
        %4024 = vmatpush1.bf16.msra.mxu0 %v3789
        %4025 = vmatprep.subr.bf16.mxu0 %v3794
        %4026 = vmatpush1.bf16.msra.mxu0 %v3793
        %4027 = vmatprep.subr.bf16.mxu0 %v3798
        %4028 = vmatpush1.bf16.msra.mxu0 %v3797
        %4029 = vmatprep.subr.bf16.mxu0 %v3802
        %4030 = vmatpush1.bf16.msra.mxu0 %v3801
        %4031 = vmatprep.subr.bf16.mxu0 %v3806
        %4032 = vmatpush1.bf16.msra.mxu0 %v3805
        %4033 = vmatprep.mubr.bf16.mxu0 %v3148
        %4034 = vmatmul.mubr.bf16.gmra.mrb[0].mxu0 %v3147
        %v4035 = vpop.f32.mrb[0].mxu0
        %v4036 = vadd.f32 %v3344, %v4035
        %v4037 = vpop.f32.mrb[0].mxu0
        %v4038 = vadd.f32 %v3348, %v4037
        %v4039 = vpop.f32.mrb[0].mxu0
        %v4040 = vadd.f32 %v3344, %v4039
        %v4041 = vpop.f32.mrb[0].mxu0
        %v4042 = vadd.f32 %v3348, %v4041
        %4043 = vmatprep.mubr.bf16.mxu0 %v3152
        %4044 = vmatmul.mubr.bf16.gmra.mrb[0].mxu0 %v3151
        %v4045 = vpop.f32.mrb[0].mxu0
        %v4046 = vadd.f32 %v3344, %v4045
        %v4047 = vpop.f32.mrb[0].mxu0
        %v4048 = vadd.f32 %v3348, %v4047
        %v4049 = vpop.f32.mrb[0].mxu0
        %v4050 = vadd.f32 %v3344, %v4049
        %v4051 = vpop.f32.mrb[0].mxu0
        %v4052 = vadd.f32 %v3348, %v4051
        %4053 = vmatprep.mubr.bf16.mxu0 %v3156
        %4054 = vmatmul.mubr.bf16.gmra.mrb[0].mxu0 %v3155
        %v4055 = vpop.f32.mrb[0].mxu0
        %v4056 = vadd.f32 %v3344, %v4055
        %v4057 = vpop.f32.mrb[0].mxu0
        %v4058 = vadd.f32 %v3348, %v4057
        %v4059 = vpop.f32.mrb[0].mxu0
        %v4060 = vadd.f32 %v3344, %v4059
        %v4061 = vpop.f32.mrb[0].mxu0
        %v4062 = vadd.f32 %v3348, %v4061
        %4063 = vmatprep.mubr.bf16.mxu0 %v3160
        %4064 = vmatmul.mubr.bf16.gmra.mrb[0].mxu0 %v3159
        %v4065 = vpop.f32.mrb[0].mxu0
        %v4066 = vadd.f32 %v3344, %v4065
        %v4067 = vpop.f32.mrb[0].mxu0
        %v4068 = vadd.f32 %v3348, %v4067
        %v4069 = vpop.f32.mrb[0].mxu0
        %v4070 = vadd.f32 %v3344, %v4069
        %v4071 = vpop.f32.mrb[0].mxu0
        %v4072 = vadd.f32 %v3348, %v4071
        %4073 = vmatprep.mubr.bf16.mxu0 %v3164
        %4074 = vmatmul.mubr.bf16.gmra.mrb[0].mxu0 %v3163
        %v4075 = vpop.f32.mrb[0].mxu0
        %v4076 = vadd.f32 %v3344, %v4075
        %v4077 = vpop.f32.mrb[0].mxu0
        %v4078 = vadd.f32 %v3348, %v4077
        %v4079 = vpop.f32.mrb[0].mxu0
        %v4080 = vadd.f32 %v3344, %v4079
        %v4081 = vpop.f32.mrb[0].mxu0
        %v4082 = vadd.f32 %v3348, %v4081
        %4083 = vmatprep.mubr.bf16.mxu0 %v3168
        %4084 = vmatmul.mubr.bf16.gmra.mrb[0].mxu0 %v3167
        %v4085 = vpop.f32.mrb[0].mxu0
        %v4086 = vadd.f32 %v3344, %v4085
        %v4087 = vpop.f32.mrb[0].mxu0
        %v4088 = vadd.f32 %v3348, %v4087
        %v4089 = vpop.f32.mrb[0].mxu0
        %v4090 = vadd.f32 %v3344, %v4089
        %v4091 = vpop.f32.mrb[0].mxu0
        %v4092 = vadd.f32 %v3348, %v4091
        %4093 = vmatprep.mubr.bf16.mxu0 %v3172
        %4094 = vmatmul.mubr.bf16.gmra.mrb[0].mxu0 %v3171
        %v4095 = vpop.f32.mrb[0].mxu0
        %v4096 = vadd.f32 %v3344, %v4095
        %v4097 = vpop.f32.mrb[0].mxu0
        %v4098 = vadd.f32 %v3348, %v4097
        %v4099 = vpop.f32.mrb[0].mxu0
        %v4100 = vadd.f32 %v3344, %v4099
        %v4101 = vpop.f32.mrb[0].mxu0
        %v4102 = vadd.f32 %v3348, %v4101
        %4103 = vmatprep.mubr.bf16.mxu0 %v3176
        %4104 = vmatmul.mubr.bf16.gmra.mrb[0].mxu0 %v3175
        %v4105 = vpop.f32.mrb[0].mxu0
        %v4106 = vadd.f32 %v3344, %v4105
        %v4107 = vpop.f32.mrb[0].mxu0
        %v4108 = vadd.f32 %v3348, %v4107
        %v4109 = vpop.f32.mrb[0].mxu0
        %v4110 = vadd.f32 %v3344, %v4109
        %v4111 = vpop.f32.mrb[0].mxu0
        %v4112 = vadd.f32 %v3348, %v4111
        %4113 = vmatprep.mubr.bf16.mxu0 %v3180
        %4114 = vmatmul.mubr.bf16.gmra.mrb[0].mxu0 %v3179
        %v4115 = vpop.f32.mrb[0].mxu0
        %v4116 = vadd.f32 %v3344, %v4115
        %v4117 = vpop.f32.mrb[0].mxu0
        %v4118 = vadd.f32 %v3348, %v4117
        %v4119 = vpop.f32.mrb[0].mxu0
        %v4120 = vadd.f32 %v3344, %v4119
        %v4121 = vpop.f32.mrb[0].mxu0
        %v4122 = vadd.f32 %v3348, %v4121
        %4123 = vmatprep.mubr.bf16.mxu0 %v3184
        %4124 = vmatmul.mubr.bf16.gmra.mrb[0].mxu0 %v3183
        %v4125 = vpop.f32.mrb[0].mxu0
        %v4126 = vadd.f32 %v3344, %v4125
        %v4127 = vpop.f32.mrb[0].mxu0
        %v4128 = vadd.f32 %v3348, %v4127
        %v4129 = vpop.f32.mrb[0].mxu0
        %v4130 = vadd.f32 %v3344, %v4129
        %v4131 = vpop.f32.mrb[0].mxu0
        %v4132 = vadd.f32 %v3348, %v4131
        %4133 = vmatprep.mubr.bf16.mxu0 %v3188
        %4134 = vmatmul.mubr.bf16.gmra.mrb[0].mxu0 %v3187
        %v4135 = vpop.f32.mrb[0].mxu0
        %v4136 = vadd.f32 %v3344, %v4135
        %v4137 = vpop.f32.mrb[0].mxu0
        %v4138 = vadd.f32 %v3348, %v4137
        %v4139 = vpop.f32.mrb[0].mxu0
        %v4140 = vadd.f32 %v3344, %v4139
        %v4141 = vpop.f32.mrb[0].mxu0
        %v4142 = vadd.f32 %v3348, %v4141
        %4143 = vmatprep.mubr.bf16.mxu0 %v3192
        %4144 = vmatmul.mubr.bf16.gmra.mrb[0].mxu0 %v3191
        %v4145 = vpop.f32.mrb[0].mxu0
        %v4146 = vadd.f32 %v3344, %v4145
        %v4147 = vpop.f32.mrb[0].mxu0
        %v4148 = vadd.f32 %v3348, %v4147
        %v4149 = vpop.f32.mrb[0].mxu0
        %v4150 = vadd.f32 %v3344, %v4149
        %v4151 = vpop.f32.mrb[0].mxu0
        %v4152 = vadd.f32 %v3348, %v4151
        %4153 = vmatprep.mubr.bf16.mxu0 %v3196
        %4154 = vmatmul.mubr.bf16.gmra.mrb[0].mxu0 %v3195
        %v4155 = vpop.f32.mrb[0].mxu0
        %v4156 = vadd.f32 %v3344, %v4155
        %v4157 = vpop.f32.mrb[0].mxu0
        %v4158 = vadd.f32 %v3348, %v4157
        %v4159 = vpop.f32.mrb[0].mxu0
        %v4160 = vadd.f32 %v3344, %v4159
        %v4161 = vpop.f32.mrb[0].mxu0
        %v4162 = vadd.f32 %v3348, %v4161
        %4163 = vmatprep.mubr.bf16.mxu0 %v3200
        %4164 = vmatmul.mubr.bf16.gmra.mrb[0].mxu0 %v3199
        %v4165 = vpop.f32.mrb[0].mxu0
        %v4166 = vadd.f32 %v3344, %v4165
        %v4167 = vpop.f32.mrb[0].mxu0
        %v4168 = vadd.f32 %v3348, %v4167
        %v4169 = vpop.f32.mrb[0].mxu0
        %v4170 = vadd.f32 %v3344, %v4169
        %v4171 = vpop.f32.mrb[0].mxu0
        %v4172 = vadd.f32 %v3348, %v4171
        %4173 = vmatprep.mubr.bf16.mxu0 %v3204
        %4174 = vmatmul.mubr.bf16.gmra.mrb[0].mxu0 %v3203
        %v4175 = vpop.f32.mrb[0].mxu0
        %v4176 = vadd.f32 %v3344, %v4175
        %v4177 = vpop.f32.mrb[0].mxu0
        %v4178 = vadd.f32 %v3348, %v4177
        %v4179 = vpop.f32.mrb[0].mxu0
        %v4180 = vadd.f32 %v3344, %v4179
        %v4181 = vpop.f32.mrb[0].mxu0
        %v4182 = vadd.f32 %v3348, %v4181
        %4183 = vmatprep.mubr.bf16.mxu0 %v3208
        %4184 = vmatmul.mubr.bf16.gmra.mrb[0].mxu0 %v3207
        %v4185 = vpop.f32.mrb[0].mxu0
        %v4186 = vadd.f32 %v3344, %v4185
        %v4187 = vpop.f32.mrb[0].mxu0
        %v4188 = vadd.f32 %v3348, %v4187
        %v4189 = vpop.f32.mrb[0].mxu0
        %v4190 = vadd.f32 %v3344, %v4189
        %v4191 = vpop.f32.mrb[0].mxu0
        %v4192 = vadd.f32 %v3348, %v4191
        %4193 = vdwg.mxu0
        %4194 = vmatprep.subr.bf16.mxu0 %v3810
        %4195 = vmatpush1.bf16.msra.mxu0 %v3809
        %4196 = vmatprep.subr.bf16.mxu0 %v3814
        %4197 = vmatpush1.bf16.msra.mxu0 %v3813
        %4198 = vmatprep.subr.bf16.mxu0 %v3818
        %4199 = vmatpush1.bf16.msra.mxu0 %v3817
        %4200 = vmatprep.subr.bf16.mxu0 %v3822
        %4201 = vmatpush1.bf16.msra.mxu0 %v3821
        %4202 = vmatprep.subr.bf16.mxu0 %v3826
        %4203 = vmatpush1.bf16.msra.mxu0 %v3825
        %4204 = vmatprep.subr.bf16.mxu0 %v3830
        %4205 = vmatpush1.bf16.msra.mxu0 %v3829
        %4206 = vmatprep.subr.bf16.mxu0 %v3834
        %4207 = vmatpush1.bf16.msra.mxu0 %v3833
        %4208 = vmatprep.subr.bf16.mxu0 %v3838
        %4209 = vmatpush1.bf16.msra.mxu0 %v3837
        %4210 = vmatprep.subr.bf16.mxu0 %v3842
        %4211 = vmatpush1.bf16.msra.mxu0 %v3841
        %4212 = vmatprep.subr.bf16.mxu0 %v3846
        %4213 = vmatpush1.bf16.msra.mxu0 %v3845
        %4214 = vmatprep.subr.bf16.mxu0 %v3850
        %4215 = vmatpush1.bf16.msra.mxu0 %v3849
        %4216 = vmatprep.subr.bf16.mxu0 %v3854
        %4217 = vmatpush1.bf16.msra.mxu0 %v3853
        %4218 = vmatprep.subr.bf16.mxu0 %v3858
        %4219 = vmatpush1.bf16.msra.mxu0 %v3857
        %4220 = vmatprep.subr.bf16.mxu0 %v3862
        %4221 = vmatpush1.bf16.msra.mxu0 %v3861
        %4222 = vmatprep.subr.bf16.mxu0 %v3866
        %4223 = vmatpush1.bf16.msra.mxu0 %v3865
        %4224 = vmatprep.subr.bf16.mxu0 %v3870
        %4225 = vmatpush1.bf16.msra.mxu0 %v3869
        %4226 = vmatprep.mubr.bf16.mxu0 %v3150
        %4227 = vmatmul.mubr.bf16.gmra.mrb[0].mxu0 %v3149
        %v4228 = vpop.f32.mrb[0].mxu0
        %v4229 = vadd.f32 %v4036, %v4228
        %v4230 = vpop.f32.mrb[0].mxu0
        %v4231 = vadd.f32 %v4038, %v4230
        %v4232 = vpop.f32.mrb[0].mxu0
        %v4233 = vadd.f32 %v4040, %v4232
        %v4234 = vpop.f32.mrb[0].mxu0
        %v4235 = vadd.f32 %v4042, %v4234
        %4236 = vmatprep.mubr.bf16.mxu0 %v3154
        %4237 = vmatmul.mubr.bf16.gmra.mrb[0].mxu0 %v3153
        %v4238 = vpop.f32.mrb[0].mxu0
        %v4239 = vadd.f32 %v4046, %v4238
        %v4240 = vpop.f32.mrb[0].mxu0
        %v4241 = vadd.f32 %v4048, %v4240
        %v4242 = vpop.f32.mrb[0].mxu0
        %v4243 = vadd.f32 %v4050, %v4242
        %v4244 = vpop.f32.mrb[0].mxu0
        %v4245 = vadd.f32 %v4052, %v4244
        %4246 = vmatprep.mubr.bf16.mxu0 %v3158
        %4247 = vmatmul.mubr.bf16.gmra.mrb[0].mxu0 %v3157
        %v4248 = vpop.f32.mrb[0].mxu0
        %v4249 = vadd.f32 %v4056, %v4248
        %v4250 = vpop.f32.mrb[0].mxu0
        %v4251 = vadd.f32 %v4058, %v4250
        %v4252 = vpop.f32.mrb[0].mxu0
        %v4253 = vadd.f32 %v4060, %v4252
        %v4254 = vpop.f32.mrb[0].mxu0
        %v4255 = vadd.f32 %v4062, %v4254
        %4256 = vmatprep.mubr.bf16.mxu0 %v3162
        %4257 = vmatmul.mubr.bf16.gmra.mrb[0].mxu0 %v3161
        %v4258 = vpop.f32.mrb[0].mxu0
        %v4259 = vadd.f32 %v4066, %v4258
        %v4260 = vpop.f32.mrb[0].mxu0
        %v4261 = vadd.f32 %v4068, %v4260
        %v4262 = vpop.f32.mrb[0].mxu0
        %v4263 = vadd.f32 %v4070, %v4262
        %v4264 = vpop.f32.mrb[0].mxu0
        %v4265 = vadd.f32 %v4072, %v4264
        %4266 = vmatprep.mubr.bf16.mxu0 %v3166
        %4267 = vmatmul.mubr.bf16.gmra.mrb[0].mxu0 %v3165
        %v4268 = vpop.f32.mrb[0].mxu0
        %v4269 = vadd.f32 %v4076, %v4268
        %v4270 = vpop.f32.mrb[0].mxu0
        %v4271 = vadd.f32 %v4078, %v4270
        %v4272 = vpop.f32.mrb[0].mxu0
        %v4273 = vadd.f32 %v4080, %v4272
        %v4274 = vpop.f32.mrb[0].mxu0
        %v4275 = vadd.f32 %v4082, %v4274
        %4276 = vmatprep.mubr.bf16.mxu0 %v3170
        %4277 = vmatmul.mubr.bf16.gmra.mrb[0].mxu0 %v3169
        %v4278 = vpop.f32.mrb[0].mxu0
        %v4279 = vadd.f32 %v4086, %v4278
        %v4280 = vpop.f32.mrb[0].mxu0
        %v4281 = vadd.f32 %v4088, %v4280
        %v4282 = vpop.f32.mrb[0].mxu0
        %v4283 = vadd.f32 %v4090, %v4282
        %v4284 = vpop.f32.mrb[0].mxu0
        %v4285 = vadd.f32 %v4092, %v4284
        %4286 = vmatprep.mubr.bf16.mxu0 %v3174
        %4287 = vmatmul.mubr.bf16.gmra.mrb[0].mxu0 %v3173
        %v4288 = vpop.f32.mrb[0].mxu0
        %v4289 = vadd.f32 %v4096, %v4288
        %v4290 = vpop.f32.mrb[0].mxu0
        %v4291 = vadd.f32 %v4098, %v4290
        %v4292 = vpop.f32.mrb[0].mxu0
        %v4293 = vadd.f32 %v4100, %v4292
        %v4294 = vpop.f32.mrb[0].mxu0
        %v4295 = vadd.f32 %v4102, %v4294
        %4296 = vmatprep.mubr.bf16.mxu0 %v3178
        %4297 = vmatmul.mubr.bf16.gmra.mrb[0].mxu0 %v3177
        %v4298 = vpop.f32.mrb[0].mxu0
        %v4299 = vadd.f32 %v4106, %v4298
        %v4300 = vpop.f32.mrb[0].mxu0
        %v4301 = vadd.f32 %v4108, %v4300
        %v4302 = vpop.f32.mrb[0].mxu0
        %v4303 = vadd.f32 %v4110, %v4302
        %v4304 = vpop.f32.mrb[0].mxu0
        %v4305 = vadd.f32 %v4112, %v4304
        %4306 = vmatprep.mubr.bf16.mxu0 %v3182
        %4307 = vmatmul.mubr.bf16.gmra.mrb[0].mxu0 %v3181
        %v4308 = vpop.f32.mrb[0].mxu0
        %v4309 = vadd.f32 %v4116, %v4308
        %v4310 = vpop.f32.mrb[0].mxu0
        %v4311 = vadd.f32 %v4118, %v4310
        %v4312 = vpop.f32.mrb[0].mxu0
        %v4313 = vadd.f32 %v4120, %v4312
        %v4314 = vpop.f32.mrb[0].mxu0
        %v4315 = vadd.f32 %v4122, %v4314
        %4316 = vmatprep.mubr.bf16.mxu0 %v3186
        %4317 = vmatmul.mubr.bf16.gmra.mrb[0].mxu0 %v3185
        %v4318 = vpop.f32.mrb[0].mxu0
        %v4319 = vadd.f32 %v4126, %v4318
        %v4320 = vpop.f32.mrb[0].mxu0
        %v4321 = vadd.f32 %v4128, %v4320
        %v4322 = vpop.f32.mrb[0].mxu0
        %v4323 = vadd.f32 %v4130, %v4322
        %v4324 = vpop.f32.mrb[0].mxu0
        %v4325 = vadd.f32 %v4132, %v4324
        %4326 = vmatprep.mubr.bf16.mxu0 %v3190
        %4327 = vmatmul.mubr.bf16.gmra.mrb[0].mxu0 %v3189
        %v4328 = vpop.f32.mrb[0].mxu0
        %v4329 = vadd.f32 %v4136, %v4328
        %v4330 = vpop.f32.mrb[0].mxu0
        %v4331 = vadd.f32 %v4138, %v4330
        %v4332 = vpop.f32.mrb[0].mxu0
        %v4333 = vadd.f32 %v4140, %v4332
        %v4334 = vpop.f32.mrb[0].mxu0
        %v4335 = vadd.f32 %v4142, %v4334
        %4336 = vmatprep.mubr.bf16.mxu0 %v3194
        %4337 = vmatmul.mubr.bf16.gmra.mrb[0].mxu0 %v3193
        %v4338 = vpop.f32.mrb[0].mxu0
        %v4339 = vadd.f32 %v4146, %v4338
        %v4340 = vpop.f32.mrb[0].mxu0
        %v4341 = vadd.f32 %v4148, %v4340
        %v4342 = vpop.f32.mrb[0].mxu0
        %v4343 = vadd.f32 %v4150, %v4342
        %v4344 = vpop.f32.mrb[0].mxu0
        %v4345 = vadd.f32 %v4152, %v4344
        %4346 = vmatprep.mubr.bf16.mxu0 %v3198
        %4347 = vmatmul.mubr.bf16.gmra.mrb[0].mxu0 %v3197
        %v4348 = vpop.f32.mrb[0].mxu0
        %v4349 = vadd.f32 %v4156, %v4348
        %v4350 = vpop.f32.mrb[0].mxu0
        %v4351 = vadd.f32 %v4158, %v4350
        %v4352 = vpop.f32.mrb[0].mxu0
        %v4353 = vadd.f32 %v4160, %v4352
        %v4354 = vpop.f32.mrb[0].mxu0
        %v4355 = vadd.f32 %v4162, %v4354
        %4356 = vmatprep.mubr.bf16.mxu0 %v3202
        %4357 = vmatmul.mubr.bf16.gmra.mrb[0].mxu0 %v3201
        %v4358 = vpop.f32.mrb[0].mxu0
        %v4359 = vadd.f32 %v4166, %v4358
        %v4360 = vpop.f32.mrb[0].mxu0
        %v4361 = vadd.f32 %v4168, %v4360
        %v4362 = vpop.f32.mrb[0].mxu0
        %v4363 = vadd.f32 %v4170, %v4362
        %v4364 = vpop.f32.mrb[0].mxu0
        %v4365 = vadd.f32 %v4172, %v4364
        %4366 = vmatprep.mubr.bf16.mxu0 %v3206
        %4367 = vmatmul.mubr.bf16.gmra.mrb[0].mxu0 %v3205
        %v4368 = vpop.f32.mrb[0].mxu0
        %v4369 = vadd.f32 %v4176, %v4368
        %v4370 = vpop.f32.mrb[0].mxu0
        %v4371 = vadd.f32 %v4178, %v4370
        %v4372 = vpop.f32.mrb[0].mxu0
        %v4373 = vadd.f32 %v4180, %v4372
        %v4374 = vpop.f32.mrb[0].mxu0
        %v4375 = vadd.f32 %v4182, %v4374
        %4376 = vmatprep.mubr.bf16.mxu0 %v3210
        %4377 = vmatmul.mubr.bf16.gmra.mrb[0].mxu0 %v3209
        %v4378 = vpop.f32.mrb[0].mxu0
        %v4379 = vadd.f32 %v4186, %v4378
        %v4380 = vpop.f32.mrb[0].mxu0
        %v4381 = vadd.f32 %v4188, %v4380
        %v4382 = vpop.f32.mrb[0].mxu0
        %v4383 = vadd.f32 %v4190, %v4382
        %v4384 = vpop.f32.mrb[0].mxu0
        %v4385 = vadd.f32 %v4192, %v4384
        %4386 = vdwg.mxu0
        %4387 = vmatprep.subr.bf16.mxu0 %v3748
        %4388 = vmatpush1.bf16.msra.mxu0 %v3747
        %4389 = vmatprep.subr.bf16.mxu0 %v3752
        %4390 = vmatpush1.bf16.msra.mxu0 %v3751
        %4391 = vmatprep.subr.bf16.mxu0 %v3756
        %4392 = vmatpush1.bf16.msra.mxu0 %v3755
        %4393 = vmatprep.subr.bf16.mxu0 %v3760
        %4394 = vmatpush1.bf16.msra.mxu0 %v3759
        %4395 = vmatprep.subr.bf16.mxu0 %v3764
        %4396 = vmatpush1.bf16.msra.mxu0 %v3763
        %4397 = vmatprep.subr.bf16.mxu0 %v3768
        %4398 = vmatpush1.bf16.msra.mxu0 %v3767
        %4399 = vmatprep.subr.bf16.mxu0 %v3772
        %4400 = vmatpush1.bf16.msra.mxu0 %v3771
        %4401 = vmatprep.subr.bf16.mxu0 %v3776
        %4402 = vmatpush1.bf16.msra.mxu0 %v3775
        %4403 = vmatprep.subr.bf16.mxu0 %v3780
        %4404 = vmatpush1.bf16.msra.mxu0 %v3779
        %4405 = vmatprep.subr.bf16.mxu0 %v3784
        %4406 = vmatpush1.bf16.msra.mxu0 %v3783
        %4407 = vmatprep.subr.bf16.mxu0 %v3788
        %4408 = vmatpush1.bf16.msra.mxu0 %v3787
        %4409 = vmatprep.subr.bf16.mxu0 %v3792
        %4410 = vmatpush1.bf16.msra.mxu0 %v3791
        %4411 = vmatprep.subr.bf16.mxu0 %v3796
        %4412 = vmatpush1.bf16.msra.mxu0 %v3795
        %4413 = vmatprep.subr.bf16.mxu0 %v3800
        %4414 = vmatpush1.bf16.msra.mxu0 %v3799
        %4415 = vmatprep.subr.bf16.mxu0 %v3804
        %4416 = vmatpush1.bf16.msra.mxu0 %v3803
        %4417 = vmatprep.subr.bf16.mxu0 %v3808
        %4418 = vmatpush1.bf16.msra.mxu0 %v3807
        %4419 = vmatprep.mubr.bf16.mxu0 %v3148
        %4420 = vmatmul.mubr.bf16.gmra.mrb[0].mxu0 %v3147
        %v4421 = vpop.f32.mrb[0].mxu0
        %v4422 = vadd.f32 %v3352, %v4421
        %v4423 = vpop.f32.mrb[0].mxu0
        %v4424 = vadd.f32 %v3356, %v4423
        %v4425 = vpop.f32.mrb[0].mxu0
        %v4426 = vadd.f32 %v3352, %v4425
        %v4427 = vpop.f32.mrb[0].mxu0
        %v4428 = vadd.f32 %v3356, %v4427
        %4429 = vmatprep.mubr.bf16.mxu0 %v3152
        %4430 = vmatmul.mubr.bf16.gmra.mrb[0].mxu0 %v3151
        %v4431 = vpop.f32.mrb[0].mxu0
        %v4432 = vadd.f32 %v3352, %v4431
        %v4433 = vpop.f32.mrb[0].mxu0
        %v4434 = vadd.f32 %v3356, %v4433
        %v4435 = vpop.f32.mrb[0].mxu0
        %v4436 = vadd.f32 %v3352, %v4435
        %v4437 = vpop.f32.mrb[0].mxu0
        %v4438 = vadd.f32 %v3356, %v4437
        %4439 = vmatprep.mubr.bf16.mxu0 %v3156
        %4440 = vmatmul.mubr.bf16.gmra.mrb[0].mxu0 %v3155
        %v4441 = vpop.f32.mrb[0].mxu0
        %v4442 = vadd.f32 %v3352, %v4441
        %v4443 = vpop.f32.mrb[0].mxu0
        %v4444 = vadd.f32 %v3356, %v4443
        %v4445 = vpop.f32.mrb[0].mxu0
        %v4446 = vadd.f32 %v3352, %v4445
        %v4447 = vpop.f32.mrb[0].mxu0
        %v4448 = vadd.f32 %v3356, %v4447
        %4449 = vmatprep.mubr.bf16.mxu0 %v3160
        %4450 = vmatmul.mubr.bf16.gmra.mrb[0].mxu0 %v3159
        %v4451 = vpop.f32.mrb[0].mxu0
        %v4452 = vadd.f32 %v3352, %v4451
        %v4453 = vpop.f32.mrb[0].mxu0
        %v4454 = vadd.f32 %v3356, %v4453
        %v4455 = vpop.f32.mrb[0].mxu0
        %v4456 = vadd.f32 %v3352, %v4455
        %v4457 = vpop.f32.mrb[0].mxu0
        %v4458 = vadd.f32 %v3356, %v4457
        %4459 = vmatprep.mubr.bf16.mxu0 %v3164
        %4460 = vmatmul.mubr.bf16.gmra.mrb[0].mxu0 %v3163
        %v4461 = vpop.f32.mrb[0].mxu0
        %v4462 = vadd.f32 %v3352, %v4461
        %v4463 = vpop.f32.mrb[0].mxu0
        %v4464 = vadd.f32 %v3356, %v4463
        %v4465 = vpop.f32.mrb[0].mxu0
        %v4466 = vadd.f32 %v3352, %v4465
        %v4467 = vpop.f32.mrb[0].mxu0
        %v4468 = vadd.f32 %v3356, %v4467
        %4469 = vmatprep.mubr.bf16.mxu0 %v3168
        %4470 = vmatmul.mubr.bf16.gmra.mrb[0].mxu0 %v3167
        %v4471 = vpop.f32.mrb[0].mxu0
        %v4472 = vadd.f32 %v3352, %v4471
        %v4473 = vpop.f32.mrb[0].mxu0
        %v4474 = vadd.f32 %v3356, %v4473
        %v4475 = vpop.f32.mrb[0].mxu0
        %v4476 = vadd.f32 %v3352, %v4475
        %v4477 = vpop.f32.mrb[0].mxu0
        %v4478 = vadd.f32 %v3356, %v4477
        %4479 = vmatprep.mubr.bf16.mxu0 %v3172
        %4480 = vmatmul.mubr.bf16.gmra.mrb[0].mxu0 %v3171
        %v4481 = vpop.f32.mrb[0].mxu0
        %v4482 = vadd.f32 %v3352, %v4481
        %v4483 = vpop.f32.mrb[0].mxu0
        %v4484 = vadd.f32 %v3356, %v4483
        %v4485 = vpop.f32.mrb[0].mxu0
        %v4486 = vadd.f32 %v3352, %v4485
        %v4487 = vpop.f32.mrb[0].mxu0
        %v4488 = vadd.f32 %v3356, %v4487
        %4489 = vmatprep.mubr.bf16.mxu0 %v3176
        %4490 = vmatmul.mubr.bf16.gmra.mrb[0].mxu0 %v3175
        %v4491 = vpop.f32.mrb[0].mxu0
        %v4492 = vadd.f32 %v3352, %v4491
        %v4493 = vpop.f32.mrb[0].mxu0
        %v4494 = vadd.f32 %v3356, %v4493
        %v4495 = vpop.f32.mrb[0].mxu0
        %v4496 = vadd.f32 %v3352, %v4495
        %v4497 = vpop.f32.mrb[0].mxu0
        %v4498 = vadd.f32 %v3356, %v4497
        %4499 = vmatprep.mubr.bf16.mxu0 %v3180
        %4500 = vmatmul.mubr.bf16.gmra.mrb[0].mxu0 %v3179
        %v4501 = vpop.f32.mrb[0].mxu0
        %v4502 = vadd.f32 %v3352, %v4501
        %v4503 = vpop.f32.mrb[0].mxu0
        %v4504 = vadd.f32 %v3356, %v4503
        %v4505 = vpop.f32.mrb[0].mxu0
        %v4506 = vadd.f32 %v3352, %v4505
        %v4507 = vpop.f32.mrb[0].mxu0
        %v4508 = vadd.f32 %v3356, %v4507
        %4509 = vmatprep.mubr.bf16.mxu0 %v3184
        %4510 = vmatmul.mubr.bf16.gmra.mrb[0].mxu0 %v3183
        %v4511 = vpop.f32.mrb[0].mxu0
        %v4512 = vadd.f32 %v3352, %v4511
        %v4513 = vpop.f32.mrb[0].mxu0
        %v4514 = vadd.f32 %v3356, %v4513
        %v4515 = vpop.f32.mrb[0].mxu0
        %v4516 = vadd.f32 %v3352, %v4515
        %v4517 = vpop.f32.mrb[0].mxu0
        %v4518 = vadd.f32 %v3356, %v4517
        %4519 = vmatprep.mubr.bf16.mxu0 %v3188
        %4520 = vmatmul.mubr.bf16.gmra.mrb[0].mxu0 %v3187
        %v4521 = vpop.f32.mrb[0].mxu0
        %v4522 = vadd.f32 %v3352, %v4521
        %v4523 = vpop.f32.mrb[0].mxu0
        %v4524 = vadd.f32 %v3356, %v4523
        %v4525 = vpop.f32.mrb[0].mxu0
        %v4526 = vadd.f32 %v3352, %v4525
        %v4527 = vpop.f32.mrb[0].mxu0
        %v4528 = vadd.f32 %v3356, %v4527
        %4529 = vmatprep.mubr.bf16.mxu0 %v3192
        %4530 = vmatmul.mubr.bf16.gmra.mrb[0].mxu0 %v3191
        %v4531 = vpop.f32.mrb[0].mxu0
        %v4532 = vadd.f32 %v3352, %v4531
        %v4533 = vpop.f32.mrb[0].mxu0
        %v4534 = vadd.f32 %v3356, %v4533
        %v4535 = vpop.f32.mrb[0].mxu0
        %v4536 = vadd.f32 %v3352, %v4535
        %v4537 = vpop.f32.mrb[0].mxu0
        %v4538 = vadd.f32 %v3356, %v4537
        %4539 = vmatprep.mubr.bf16.mxu0 %v3196
        %4540 = vmatmul.mubr.bf16.gmra.mrb[0].mxu0 %v3195
        %v4541 = vpop.f32.mrb[0].mxu0
        %v4542 = vadd.f32 %v3352, %v4541
        %v4543 = vpop.f32.mrb[0].mxu0
        %v4544 = vadd.f32 %v3356, %v4543
        %v4545 = vpop.f32.mrb[0].mxu0
        %v4546 = vadd.f32 %v3352, %v4545
        %v4547 = vpop.f32.mrb[0].mxu0
        %v4548 = vadd.f32 %v3356, %v4547
        %4549 = vmatprep.mubr.bf16.mxu0 %v3200
        %4550 = vmatmul.mubr.bf16.gmra.mrb[0].mxu0 %v3199
        %v4551 = vpop.f32.mrb[0].mxu0
        %v4552 = vadd.f32 %v3352, %v4551
        %v4553 = vpop.f32.mrb[0].mxu0
        %v4554 = vadd.f32 %v3356, %v4553
        %v4555 = vpop.f32.mrb[0].mxu0
        %v4556 = vadd.f32 %v3352, %v4555
        %v4557 = vpop.f32.mrb[0].mxu0
        %v4558 = vadd.f32 %v3356, %v4557
        %4559 = vmatprep.mubr.bf16.mxu0 %v3204
        %4560 = vmatmul.mubr.bf16.gmra.mrb[0].mxu0 %v3203
        %v4561 = vpop.f32.mrb[0].mxu0
        %v4562 = vadd.f32 %v3352, %v4561
        %v4563 = vpop.f32.mrb[0].mxu0
        %v4564 = vadd.f32 %v3356, %v4563
        %v4565 = vpop.f32.mrb[0].mxu0
        %v4566 = vadd.f32 %v3352, %v4565
        %v4567 = vpop.f32.mrb[0].mxu0
        %v4568 = vadd.f32 %v3356, %v4567
        %4569 = vmatprep.mubr.bf16.mxu0 %v3208
        %4570 = vmatmul.mubr.bf16.gmra.mrb[0].mxu0 %v3207
        %v4571 = vpop.f32.mrb[0].mxu0
        %v4572 = vadd.f32 %v3352, %v4571
        %v4573 = vpop.f32.mrb[0].mxu0
        %v4574 = vadd.f32 %v3356, %v4573
        %v4575 = vpop.f32.mrb[0].mxu0
        %v4576 = vadd.f32 %v3352, %v4575
        %v4577 = vpop.f32.mrb[0].mxu0
        %v4578 = vadd.f32 %v3356, %v4577
        %4579 = vdwg.mxu0
        %4580 = vmatprep.subr.bf16.mxu0 %v3812
        %4581 = vmatpush1.bf16.msra.mxu0 %v3811
        %4582 = vmatprep.subr.bf16.mxu0 %v3816
        %4583 = vmatpush1.bf16.msra.mxu0 %v3815
        %4584 = vmatprep.subr.bf16.mxu0 %v3820
        %4585 = vmatpush1.bf16.msra.mxu0 %v3819
        %4586 = vmatprep.subr.bf16.mxu0 %v3824
        %4587 = vmatpush1.bf16.msra.mxu0 %v3823
        %4588 = vmatprep.subr.bf16.mxu0 %v3828
        %4589 = vmatpush1.bf16.msra.mxu0 %v3827
        %4590 = vmatprep.subr.bf16.mxu0 %v3832
        %4591 = vmatpush1.bf16.msra.mxu0 %v3831
        %4592 = vmatprep.subr.bf16.mxu0 %v3836
        %4593 = vmatpush1.bf16.msra.mxu0 %v3835
        %4594 = vmatprep.subr.bf16.mxu0 %v3840
        %4595 = vmatpush1.bf16.msra.mxu0 %v3839
        %4596 = vmatprep.subr.bf16.mxu0 %v3844
        %4597 = vmatpush1.bf16.msra.mxu0 %v3843
        %4598 = vmatprep.subr.bf16.mxu0 %v3848
        %4599 = vmatpush1.bf16.msra.mxu0 %v3847
        %4600 = vmatprep.subr.bf16.mxu0 %v3852
        %4601 = vmatpush1.bf16.msra.mxu0 %v3851
        %4602 = vmatprep.subr.bf16.mxu0 %v3856
        %4603 = vmatpush1.bf16.msra.mxu0 %v3855
        %4604 = vmatprep.subr.bf16.mxu0 %v3860
        %4605 = vmatpush1.bf16.msra.mxu0 %v3859
        %4606 = vmatprep.subr.bf16.mxu0 %v3864
        %4607 = vmatpush1.bf16.msra.mxu0 %v3863
        %4608 = vmatprep.subr.bf16.mxu0 %v3868
        %4609 = vmatpush1.bf16.msra.mxu0 %v3867
        %4610 = vmatprep.subr.bf16.mxu0 %v3872
        %4611 = vmatpush1.bf16.msra.mxu0 %v3871
        %4612 = vmatprep.mubr.bf16.mxu0 %v3150
        %4613 = vmatmul.mubr.bf16.gmra.mrb[0].mxu0 %v3149
        %v4614 = vpop.f32.mrb[0].mxu0
        %v4615 = vadd.f32 %v4422, %v4614
        %v4616 = vpop.f32.mrb[0].mxu0
        %v4617 = vadd.f32 %v4424, %v4616
        %v4618 = vpop.f32.mrb[0].mxu0
        %v4619 = vadd.f32 %v4426, %v4618
        %v4620 = vpop.f32.mrb[0].mxu0
        %v4621 = vadd.f32 %v4428, %v4620
        %4622 = vmatprep.mubr.bf16.mxu0 %v3154
        %4623 = vmatmul.mubr.bf16.gmra.mrb[0].mxu0 %v3153
        %v4624 = vpop.f32.mrb[0].mxu0
        %v4625 = vadd.f32 %v4432, %v4624
        %v4626 = vpop.f32.mrb[0].mxu0
        %v4627 = vadd.f32 %v4434, %v4626
        %v4628 = vpop.f32.mrb[0].mxu0
        %v4629 = vadd.f32 %v4436, %v4628
        %v4630 = vpop.f32.mrb[0].mxu0
        %v4631 = vadd.f32 %v4438, %v4630
        %4632 = vmatprep.mubr.bf16.mxu0 %v3158
        %4633 = vmatmul.mubr.bf16.gmra.mrb[0].mxu0 %v3157
        %v4634 = vpop.f32.mrb[0].mxu0
        %v4635 = vadd.f32 %v4442, %v4634
        %v4636 = vpop.f32.mrb[0].mxu0
        %v4637 = vadd.f32 %v4444, %v4636
        %v4638 = vpop.f32.mrb[0].mxu0
        %v4639 = vadd.f32 %v4446, %v4638
        %v4640 = vpop.f32.mrb[0].mxu0
        %v4641 = vadd.f32 %v4448, %v4640
        %4642 = vmatprep.mubr.bf16.mxu0 %v3162
        %4643 = vmatmul.mubr.bf16.gmra.mrb[0].mxu0 %v3161
        %v4644 = vpop.f32.mrb[0].mxu0
        %v4645 = vadd.f32 %v4452, %v4644
        %v4646 = vpop.f32.mrb[0].mxu0
        %v4647 = vadd.f32 %v4454, %v4646
        %v4648 = vpop.f32.mrb[0].mxu0
        %v4649 = vadd.f32 %v4456, %v4648
        %v4650 = vpop.f32.mrb[0].mxu0
        %v4651 = vadd.f32 %v4458, %v4650
        %4652 = vmatprep.mubr.bf16.mxu0 %v3166
        %4653 = vmatmul.mubr.bf16.gmra.mrb[0].mxu0 %v3165
        %v4654 = vpop.f32.mrb[0].mxu0
        %v4655 = vadd.f32 %v4462, %v4654
        %v4656 = vpop.f32.mrb[0].mxu0
        %v4657 = vadd.f32 %v4464, %v4656
        %v4658 = vpop.f32.mrb[0].mxu0
        %v4659 = vadd.f32 %v4466, %v4658
        %v4660 = vpop.f32.mrb[0].mxu0
        %v4661 = vadd.f32 %v4468, %v4660
        %4662 = vmatprep.mubr.bf16.mxu0 %v3170
        %4663 = vmatmul.mubr.bf16.gmra.mrb[0].mxu0 %v3169
        %v4664 = vpop.f32.mrb[0].mxu0
        %v4665 = vadd.f32 %v4472, %v4664
        %v4666 = vpop.f32.mrb[0].mxu0
        %v4667 = vadd.f32 %v4474, %v4666
        %v4668 = vpop.f32.mrb[0].mxu0
        %v4669 = vadd.f32 %v4476, %v4668
        %v4670 = vpop.f32.mrb[0].mxu0
        %v4671 = vadd.f32 %v4478, %v4670
        %4672 = vmatprep.mubr.bf16.mxu0 %v3174
        %4673 = vmatmul.mubr.bf16.gmra.mrb[0].mxu0 %v3173
        %v4674 = vpop.f32.mrb[0].mxu0
        %v4675 = vadd.f32 %v4482, %v4674
        %v4676 = vpop.f32.mrb[0].mxu0
        %v4677 = vadd.f32 %v4484, %v4676
        %v4678 = vpop.f32.mrb[0].mxu0
        %v4679 = vadd.f32 %v4486, %v4678
        %v4680 = vpop.f32.mrb[0].mxu0
        %v4681 = vadd.f32 %v4488, %v4680
        %4682 = vmatprep.mubr.bf16.mxu0 %v3178
        %4683 = vmatmul.mubr.bf16.gmra.mrb[0].mxu0 %v3177
        %v4684 = vpop.f32.mrb[0].mxu0
        %v4685 = vadd.f32 %v4492, %v4684
        %v4686 = vpop.f32.mrb[0].mxu0
        %v4687 = vadd.f32 %v4494, %v4686
        %v4688 = vpop.f32.mrb[0].mxu0
        %v4689 = vadd.f32 %v4496, %v4688
        %v4690 = vpop.f32.mrb[0].mxu0
        %v4691 = vadd.f32 %v4498, %v4690
        %4692 = vmatprep.mubr.bf16.mxu0 %v3182
        %4693 = vmatmul.mubr.bf16.gmra.mrb[0].mxu0 %v3181
        %v4694 = vpop.f32.mrb[0].mxu0
        %v4695 = vadd.f32 %v4502, %v4694
        %v4696 = vpop.f32.mrb[0].mxu0
        %v4697 = vadd.f32 %v4504, %v4696
        %v4698 = vpop.f32.mrb[0].mxu0
        %v4699 = vadd.f32 %v4506, %v4698
        %v4700 = vpop.f32.mrb[0].mxu0
        %v4701 = vadd.f32 %v4508, %v4700
        %4702 = vmatprep.mubr.bf16.mxu0 %v3186
        %4703 = vmatmul.mubr.bf16.gmra.mrb[0].mxu0 %v3185
        %v4704 = vpop.f32.mrb[0].mxu0
        %v4705 = vadd.f32 %v4512, %v4704
        %v4706 = vpop.f32.mrb[0].mxu0
        %v4707 = vadd.f32 %v4514, %v4706
        %v4708 = vpop.f32.mrb[0].mxu0
        %v4709 = vadd.f32 %v4516, %v4708
        %v4710 = vpop.f32.mrb[0].mxu0
        %v4711 = vadd.f32 %v4518, %v4710
        %4712 = vmatprep.mubr.bf16.mxu0 %v3190
        %4713 = vmatmul.mubr.bf16.gmra.mrb[0].mxu0 %v3189
        %v4714 = vpop.f32.mrb[0].mxu0
        %v4715 = vadd.f32 %v4522, %v4714
        %v4716 = vpop.f32.mrb[0].mxu0
        %v4717 = vadd.f32 %v4524, %v4716
        %v4718 = vpop.f32.mrb[0].mxu0
        %v4719 = vadd.f32 %v4526, %v4718
        %v4720 = vpop.f32.mrb[0].mxu0
        %v4721 = vadd.f32 %v4528, %v4720
        %4722 = vmatprep.mubr.bf16.mxu0 %v3194
        %4723 = vmatmul.mubr.bf16.gmra.mrb[0].mxu0 %v3193
        %v4724 = vpop.f32.mrb[0].mxu0
        %v4725 = vadd.f32 %v4532, %v4724
        %v4726 = vpop.f32.mrb[0].mxu0
        %v4727 = vadd.f32 %v4534, %v4726
        %v4728 = vpop.f32.mrb[0].mxu0
        %v4729 = vadd.f32 %v4536, %v4728
        %v4730 = vpop.f32.mrb[0].mxu0
        %v4731 = vadd.f32 %v4538, %v4730
        %4732 = vmatprep.mubr.bf16.mxu0 %v3198
        %4733 = vmatmul.mubr.bf16.gmra.mrb[0].mxu0 %v3197
        %v4734 = vpop.f32.mrb[0].mxu0
        %v4735 = vadd.f32 %v4542, %v4734
        %v4736 = vpop.f32.mrb[0].mxu0
        %v4737 = vadd.f32 %v4544, %v4736
        %v4738 = vpop.f32.mrb[0].mxu0
        %v4739 = vadd.f32 %v4546, %v4738
        %v4740 = vpop.f32.mrb[0].mxu0
        %v4741 = vadd.f32 %v4548, %v4740
        %4742 = vmatprep.mubr.bf16.mxu0 %v3202
        %4743 = vmatmul.mubr.bf16.gmra.mrb[0].mxu0 %v3201
        %v4744 = vpop.f32.mrb[0].mxu0
        %v4745 = vadd.f32 %v4552, %v4744
        %v4746 = vpop.f32.mrb[0].mxu0
        %v4747 = vadd.f32 %v4554, %v4746
        %v4748 = vpop.f32.mrb[0].mxu0
        %v4749 = vadd.f32 %v4556, %v4748
        %v4750 = vpop.f32.mrb[0].mxu0
        %v4751 = vadd.f32 %v4558, %v4750
        %4752 = vmatprep.mubr.bf16.mxu0 %v3206
        %4753 = vmatmul.mubr.bf16.gmra.mrb[0].mxu0 %v3205
        %v4754 = vpop.f32.mrb[0].mxu0
        %v4755 = vadd.f32 %v4562, %v4754
        %v4756 = vpop.f32.mrb[0].mxu0
        %v4757 = vadd.f32 %v4564, %v4756
        %v4758 = vpop.f32.mrb[0].mxu0
        %v4759 = vadd.f32 %v4566, %v4758
        %v4760 = vpop.f32.mrb[0].mxu0
        %v4761 = vadd.f32 %v4568, %v4760
        %4762 = vmatprep.mubr.bf16.mxu0 %v3210
        %4763 = vmatmul.mubr.bf16.gmra.mrb[0].mxu0 %v3209
        %v4764 = vpop.f32.mrb[0].mxu0
        %v4765 = vadd.f32 %v4572, %v4764
        %v4766 = vpop.f32.mrb[0].mxu0
        %v4767 = vadd.f32 %v4574, %v4766
        %v4768 = vpop.f32.mrb[0].mxu0
        %v4769 = vadd.f32 %v4576, %v4768
        %v4770 = vpop.f32.mrb[0].mxu0
        %v4771 = vadd.f32 %v4578, %v4770
        %4772 = vdwg.mxu0
        %v4773 = vmax.f32 %v4229, 0.0
        %v4774 = vmax.f32 %v4231, 0.0
        %v4775 = vmax.f32 %v4615, 0.0
        %v4776 = vmax.f32 %v4617, 0.0
        %v4777 = vmax.f32 %v4233, 0.0
        %v4778 = vmax.f32 %v4235, 0.0
        %v4779 = vmax.f32 %v4619, 0.0
        %v4780 = vmax.f32 %v4621, 0.0
        %v4781 = vmax.f32 %v4239, 0.0
        %v4782 = vmax.f32 %v4241, 0.0
        %v4783 = vmax.f32 %v4625, 0.0
        %v4784 = vmax.f32 %v4627, 0.0
        %v4785 = vmax.f32 %v4243, 0.0
        %v4786 = vmax.f32 %v4245, 0.0
        %v4787 = vmax.f32 %v4629, 0.0
        %v4788 = vmax.f32 %v4631, 0.0
        %v4789 = vmax.f32 %v4249, 0.0
        %v4790 = vmax.f32 %v4251, 0.0
        %v4791 = vmax.f32 %v4635, 0.0
        %v4792 = vmax.f32 %v4637, 0.0
        %v4793 = vmax.f32 %v4253, 0.0
        %v4794 = vmax.f32 %v4255, 0.0
        %v4795 = vmax.f32 %v4639, 0.0
        %v4796 = vmax.f32 %v4641, 0.0
        %v4797 = vmax.f32 %v4259, 0.0
        %v4798 = vmax.f32 %v4261, 0.0
        %v4799 = vmax.f32 %v4645, 0.0
        %v4800 = vmax.f32 %v4647, 0.0
        %v4801 = vmax.f32 %v4263, 0.0
        %v4802 = vmax.f32 %v4265, 0.0
        %v4803 = vmax.f32 %v4649, 0.0
        %v4804 = vmax.f32 %v4651, 0.0
        %v4805 = vmax.f32 %v4269, 0.0
        %v4806 = vmax.f32 %v4271, 0.0
        %v4807 = vmax.f32 %v4655, 0.0
        %v4808 = vmax.f32 %v4657, 0.0
        %v4809 = vmax.f32 %v4273, 0.0
        %v4810 = vmax.f32 %v4275, 0.0
        %v4811 = vmax.f32 %v4659, 0.0
        %v4812 = vmax.f32 %v4661, 0.0
        %v4813 = vmax.f32 %v4279, 0.0
        %v4814 = vmax.f32 %v4281, 0.0
        %v4815 = vmax.f32 %v4665, 0.0
        %v4816 = vmax.f32 %v4667, 0.0
        %v4817 = vmax.f32 %v4283, 0.0
        %v4818 = vmax.f32 %v4285, 0.0
        %v4819 = vmax.f32 %v4669, 0.0
        %v4820 = vmax.f32 %v4671, 0.0
        %v4821 = vmax.f32 %v4289, 0.0
        %v4822 = vmax.f32 %v4291, 0.0
        %v4823 = vmax.f32 %v4675, 0.0
        %v4824 = vmax.f32 %v4677, 0.0
        %v4825 = vmax.f32 %v4293, 0.0
        %v4826 = vmax.f32 %v4295, 0.0
        %v4827 = vmax.f32 %v4679, 0.0
        %v4828 = vmax.f32 %v4681, 0.0
        %v4829 = vmax.f32 %v4299, 0.0
        %v4830 = vmax.f32 %v4301, 0.0
        %v4831 = vmax.f32 %v4685, 0.0
        %v4832 = vmax.f32 %v4687, 0.0
        %v4833 = vmax.f32 %v4303, 0.0
        %v4834 = vmax.f32 %v4305, 0.0
        %v4835 = vmax.f32 %v4689, 0.0
        %v4836 = vmax.f32 %v4691, 0.0
        %v4837 = vmax.f32 %v4309, 0.0
        %v4838 = vmax.f32 %v4311, 0.0
        %v4839 = vmax.f32 %v4695, 0.0
        %v4840 = vmax.f32 %v4697, 0.0
        %v4841 = vmax.f32 %v4313, 0.0
        %v4842 = vmax.f32 %v4315, 0.0
        %v4843 = vmax.f32 %v4699, 0.0
        %v4844 = vmax.f32 %v4701, 0.0
        %v4845 = vmax.f32 %v4319, 0.0
        %v4846 = vmax.f32 %v4321, 0.0
        %v4847 = vmax.f32 %v4705, 0.0
        %v4848 = vmax.f32 %v4707, 0.0
        %v4849 = vmax.f32 %v4323, 0.0
        %v4850 = vmax.f32 %v4325, 0.0
        %v4851 = vmax.f32 %v4709, 0.0
        %v4852 = vmax.f32 %v4711, 0.0
        %v4853 = vmax.f32 %v4329, 0.0
        %v4854 = vmax.f32 %v4331, 0.0
        %v4855 = vmax.f32 %v4715, 0.0
        %v4856 = vmax.f32 %v4717, 0.0
        %v4857 = vmax.f32 %v4333, 0.0
        %v4858 = vmax.f32 %v4335, 0.0
        %v4859 = vmax.f32 %v4719, 0.0
        %v4860 = vmax.f32 %v4721, 0.0
        %v4861 = vmax.f32 %v4339, 0.0
        %v4862 = vmax.f32 %v4341, 0.0
        %v4863 = vmax.f32 %v4725, 0.0
        %v4864 = vmax.f32 %v4727, 0.0
        %v4865 = vmax.f32 %v4343, 0.0
        %v4866 = vmax.f32 %v4345, 0.0
        %v4867 = vmax.f32 %v4729, 0.0
        %v4868 = vmax.f32 %v4731, 0.0
        %v4869 = vmax.f32 %v4349, 0.0
        %v4870 = vmax.f32 %v4351, 0.0
        %v4871 = vmax.f32 %v4735, 0.0
        %v4872 = vmax.f32 %v4737, 0.0
        %v4873 = vmax.f32 %v4353, 0.0
        %v4874 = vmax.f32 %v4355, 0.0
        %v4875 = vmax.f32 %v4739, 0.0
        %v4876 = vmax.f32 %v4741, 0.0
        %v4877 = vmax.f32 %v4359, 0.0
        %v4878 = vmax.f32 %v4361, 0.0
        %v4879 = vmax.f32 %v4745, 0.0
        %v4880 = vmax.f32 %v4747, 0.0
        %v4881 = vmax.f32 %v4363, 0.0
        %v4882 = vmax.f32 %v4365, 0.0
        %v4883 = vmax.f32 %v4749, 0.0
        %v4884 = vmax.f32 %v4751, 0.0
        %v4885 = vmax.f32 %v4369, 0.0
        %v4886 = vmax.f32 %v4371, 0.0
        %v4887 = vmax.f32 %v4755, 0.0
        %v4888 = vmax.f32 %v4757, 0.0
        %v4889 = vmax.f32 %v4373, 0.0
        %v4890 = vmax.f32 %v4375, 0.0
        %v4891 = vmax.f32 %v4759, 0.0
        %v4892 = vmax.f32 %v4761, 0.0
        %v4893 = vmax.f32 %v4379, 0.0
        %v4894 = vmax.f32 %v4381, 0.0
        %v4895 = vmax.f32 %v4765, 0.0
        %v4896 = vmax.f32 %v4767, 0.0
        %v4897 = vmax.f32 %v4383, 0.0
        %v4898 = vmax.f32 %v4385, 0.0
        %v4899 = vmax.f32 %v4769, 0.0
        %v4900 = vmax.f32 %v4771, 0.0
        %v4901 = vld [vmem:[%s7] sm:$0xff]
        %v4902 = vld [vmem:[%s7 + $0x8] sm:$0xff]
        %v4903 = vpack.c.bf16 %v4777, %v4773
        %v4904 = vpack.c.bf16 %v4778, %v4774
        %v4905 = vpack.c.bf16 %v4779, %v4775
        %v4906 = vpack.c.bf16 %v4780, %v4776
        %v4907 = vpack.c.bf16 %v4785, %v4781
        %v4908 = vpack.c.bf16 %v4786, %v4782
        %v4909 = vpack.c.bf16 %v4787, %v4783
        %v4910 = vpack.c.bf16 %v4788, %v4784
        %v4911 = vpack.c.bf16 %v4793, %v4789
        %v4912 = vpack.c.bf16 %v4794, %v4790
        %v4913 = vpack.c.bf16 %v4795, %v4791
        %v4914 = vpack.c.bf16 %v4796, %v4792
        %v4915 = vpack.c.bf16 %v4801, %v4797
        %v4916 = vpack.c.bf16 %v4802, %v4798
        %v4917 = vpack.c.bf16 %v4803, %v4799
        %v4918 = vpack.c.bf16 %v4804, %v4800
        %v4919 = vpack.c.bf16 %v4809, %v4805
        %v4920 = vpack.c.bf16 %v4810, %v4806
        %v4921 = vpack.c.bf16 %v4811, %v4807
        %v4922 = vpack.c.bf16 %v4812, %v4808
        %v4923 = vpack.c.bf16 %v4817, %v4813
        %v4924 = vpack.c.bf16 %v4818, %v4814
        %v4925 = vpack.c.bf16 %v4819, %v4815
        %v4926 = vpack.c.bf16 %v4820, %v4816
        %v4927 = vpack.c.bf16 %v4825, %v4821
        %v4928 = vpack.c.bf16 %v4826, %v4822
        %v4929 = vpack.c.bf16 %v4827, %v4823
        %v4930 = vpack.c.bf16 %v4828, %v4824
        %v4931 = vpack.c.bf16 %v4833, %v4829
        %v4932 = vpack.c.bf16 %v4834, %v4830
        %v4933 = vpack.c.bf16 %v4835, %v4831
        %v4934 = vpack.c.bf16 %v4836, %v4832
        %v4935 = vpack.c.bf16 %v4841, %v4837
        %v4936 = vpack.c.bf16 %v4842, %v4838
        %v4937 = vpack.c.bf16 %v4843, %v4839
        %v4938 = vpack.c.bf16 %v4844, %v4840
        %v4939 = vpack.c.bf16 %v4849, %v4845
        %v4940 = vpack.c.bf16 %v4850, %v4846
        %v4941 = vpack.c.bf16 %v4851, %v4847
        %v4942 = vpack.c.bf16 %v4852, %v4848
        %v4943 = vpack.c.bf16 %v4857, %v4853
        %v4944 = vpack.c.bf16 %v4858, %v4854
        %v4945 = vpack.c.bf16 %v4859, %v4855
        %v4946 = vpack.c.bf16 %v4860, %v4856
        %v4947 = vpack.c.bf16 %v4865, %v4861
        %v4948 = vpack.c.bf16 %v4866, %v4862
        %v4949 = vpack.c.bf16 %v4867, %v4863
        %v4950 = vpack.c.bf16 %v4868, %v4864
        %v4951 = vpack.c.bf16 %v4873, %v4869
        %v4952 = vpack.c.bf16 %v4874, %v4870
        %v4953 = vpack.c.bf16 %v4875, %v4871
        %v4954 = vpack.c.bf16 %v4876, %v4872
        %v4955 = vpack.c.bf16 %v4881, %v4877
        %v4956 = vpack.c.bf16 %v4882, %v4878
        %v4957 = vpack.c.bf16 %v4883, %v4879
        %v4958 = vpack.c.bf16 %v4884, %v4880
        %v4959 = vpack.c.bf16 %v4889, %v4885
        %v4960 = vpack.c.bf16 %v4890, %v4886
        %v4961 = vpack.c.bf16 %v4891, %v4887
        %v4962 = vpack.c.bf16 %v4892, %v4888
        %v4963 = vpack.c.bf16 %v4897, %v4893
        %v4964 = vpack.c.bf16 %v4898, %v4894
        %v4965 = vpack.c.bf16 %v4899, %v4895
        %v4966 = vpack.c.bf16 %v4900, %v4896
        %v4969 = vunpack.c.l.b16 %v4901
        %v4970 = vunpack.c.h.b16 %v4901
        %v4971 = vunpack.c.l.b16 %v4902
        %v4972 = vunpack.c.h.b16 %v4902
        %v4973 = vpack.c.b16 %v4969, %v4969
        %v4974 = vpack.c.b16 %v4970, %v4970
        %v4975 = vpack.c.b16 %v4971, %v4971
        %v4976 = vpack.c.b16 %v4972, %v4972
        %4981 = vmatprep.subr.bf16.mxu0 %v4904
        %4982 = vmatpush1.bf16.xpose.msra.mxu0 %v4903
        %4983 = vmatprep.subr.bf16.mxu0 %v4908
        %4984 = vmatpush1.bf16.xpose.msra.mxu0 %v4907
        %4985 = vmatprep.subr.bf16.mxu0 %v4912
        %4986 = vmatpush1.bf16.xpose.msra.mxu0 %v4911
        %4987 = vmatprep.subr.bf16.mxu0 %v4916
        %4988 = vmatpush1.bf16.xpose.msra.mxu0 %v4915
        %4989 = vmatprep.subr.bf16.mxu0 %v4920
        %4990 = vmatpush1.bf16.xpose.msra.mxu0 %v4919
        %4991 = vmatprep.subr.bf16.mxu0 %v4924
        %4992 = vmatpush1.bf16.xpose.msra.mxu0 %v4923
        %4993 = vmatprep.subr.bf16.mxu0 %v4928
        %4994 = vmatpush1.bf16.xpose.msra.mxu0 %v4927
        %4995 = vmatprep.subr.bf16.mxu0 %v4932
        %4996 = vmatpush1.bf16.xpose.msra.mxu0 %v4931
        %4997 = vmatprep.subr.bf16.mxu0 %v4936
        %4998 = vmatpush1.bf16.xpose.msra.mxu0 %v4935
        %4999 = vmatprep.subr.bf16.mxu0 %v4940
        %5000 = vmatpush1.bf16.xpose.msra.mxu0 %v4939
        %5001 = vmatprep.subr.bf16.mxu0 %v4944
        %5002 = vmatpush1.bf16.xpose.msra.mxu0 %v4943
        %5003 = vmatprep.subr.bf16.mxu0 %v4948
        %5004 = vmatpush1.bf16.xpose.msra.mxu0 %v4947
        %5005 = vmatprep.subr.bf16.mxu0 %v4952
        %5006 = vmatpush1.bf16.xpose.msra.mxu0 %v4951
        %5007 = vmatprep.subr.bf16.mxu0 %v4956
        %5008 = vmatpush1.bf16.xpose.msra.mxu0 %v4955
        %5009 = vmatprep.subr.bf16.mxu0 %v4960
        %5010 = vmatpush1.bf16.xpose.msra.mxu0 %v4959
        %5011 = vmatprep.subr.bf16.mxu0 %v4964
        %5012 = vmatpush1.bf16.xpose.msra.mxu0 %v4963
        %5013 = vmatprep.mubr.bf16.mxu0 %v4974
        %5014 = vmatmul.mubr.bf16.gmra.mrb[0].mxu0 %v4973
        %v5015 = vpop.f32.mrb[0].mxu0
        %v5016 = vadd.f32 0.0, %v5015
        %v5017 = vpop.f32.mrb[0].mxu0
        %v5018 = vadd.f32 0.0, %v5017
        %v5019 = vpop.f32.mrb[0].mxu0
        %v5020 = vpop.f32.mrb[0].mxu0
        %5021 = vdwg.mxu0
        %5022 = vmatprep.subr.bf16.mxu0 %v4906
        %5023 = vmatpush1.bf16.xpose.msra.mxu0 %v4905
        %5024 = vmatprep.subr.bf16.mxu0 %v4910
        %5025 = vmatpush1.bf16.xpose.msra.mxu0 %v4909
        %5026 = vmatprep.subr.bf16.mxu0 %v4914
        %5027 = vmatpush1.bf16.xpose.msra.mxu0 %v4913
        %5028 = vmatprep.subr.bf16.mxu0 %v4918
        %5029 = vmatpush1.bf16.xpose.msra.mxu0 %v4917
        %5030 = vmatprep.subr.bf16.mxu0 %v4922
        %5031 = vmatpush1.bf16.xpose.msra.mxu0 %v4921
        %5032 = vmatprep.subr.bf16.mxu0 %v4926
        %5033 = vmatpush1.bf16.xpose.msra.mxu0 %v4925
        %5034 = vmatprep.subr.bf16.mxu0 %v4930
        %5035 = vmatpush1.bf16.xpose.msra.mxu0 %v4929
        %5036 = vmatprep.subr.bf16.mxu0 %v4934
        %5037 = vmatpush1.bf16.xpose.msra.mxu0 %v4933
        %5038 = vmatprep.subr.bf16.mxu0 %v4938
        %5039 = vmatpush1.bf16.xpose.msra.mxu0 %v4937
        %5040 = vmatprep.subr.bf16.mxu0 %v4942
        %5041 = vmatpush1.bf16.xpose.msra.mxu0 %v4941
        %5042 = vmatprep.subr.bf16.mxu0 %v4946
        %5043 = vmatpush1.bf16.xpose.msra.mxu0 %v4945
        %5044 = vmatprep.subr.bf16.mxu0 %v4950
        %5045 = vmatpush1.bf16.xpose.msra.mxu0 %v4949
        %5046 = vmatprep.subr.bf16.mxu0 %v4954
        %5047 = vmatpush1.bf16.xpose.msra.mxu0 %v4953
        %5048 = vmatprep.subr.bf16.mxu0 %v4958
        %5049 = vmatpush1.bf16.xpose.msra.mxu0 %v4957
        %5050 = vmatprep.subr.bf16.mxu0 %v4962
        %5051 = vmatpush1.bf16.xpose.msra.mxu0 %v4961
        %5052 = vmatprep.subr.bf16.mxu0 %v4966
        %5053 = vmatpush1.bf16.xpose.msra.mxu0 %v4965
        %5054 = vmatprep.mubr.bf16.mxu0 %v4976
        %5055 = vmatmul.mubr.bf16.gmra.mrb[0].mxu0 %v4975
        %v5056 = vpop.f32.mrb[0].mxu0
        %v5057 = vadd.f32 %v5016, %v5056
        %v5058 = vpop.f32.mrb[0].mxu0
        %v5059 = vadd.f32 %v5018, %v5058
        %v5060 = vpop.f32.mrb[0].mxu0
        %v5061 = vpop.f32.mrb[0].mxu0
        %5062 = vdwg.mxu0
        %v5063 = vld [vmem:[#allocation2] sm:$0x1]
        %5065 = vset.pattern.permute.xlu0 0
        %5066 = vperm.xlu0 %5065, %v5063
        %v5067 = vpop.permute.xlu0 %5066
        %v5069 = vlaneseq
        %v5070 = vshrl.u32 %v5069, 7
        %v5071 = vsub.s32 0, %v5070
        %v5072 = vrot.slane %v5067, %v5071
        %v5073 = vadd.f32 %v5057, %v5072
        %v5074 = vadd.f32 %v5059, %v5072
        %v5075 = vxor.u32 %v5073, 2147483648
        %v5076 = vxor.u32 %v5074, 2147483648
        %v5077 = vmul.f32 %v5075, 1.442695
        %v5078 = vpow.pop %v5077
        %v5079 = vmul.f32 %v5076, 1.442695
        %v5080 = vpow.pop %v5079
        %v5081 = vadd.f32 %v5078, 1.0
        %v5082 = vadd.f32 %v5080, 1.0
        %v5083 = vrcp.pop %v5081
        %v5084 = vmul.f32 1.0, %v5083
        %v5085 = vrcp.pop %v5082
        %v5086 = vmul.f32 1.0, %v5085
        %v5089 = vcombine.low %v5084, %v5086
        %v5091 = vunpack.c.l.s4 1966171168
        %v5092 = vunpack.c.0.s8 %v5091
        %v5093 = vlaneseq
        %v5094 = vshrl.u32 %v5093, 7
        %v5095 = vsub.s32 %v5092, %v5094
        %v5096 = vrot.slane %v5089, %v5095
        %v5098 = vunpack.c.l.s4 1966171168
        %v5099 = vunpack.c.0.s8 %v5098
        %v5100 = vlaneseq
        %v5101 = vshrl.u32 %v5100, 7
        %v5102 = vsub.s32 %v5099, %v5101
        %v5103 = vrot.slane %v5096, %v5102
        %v5105 = vlaneseq
        %vm5106 = vcmp.ge.s32.totalorder %v5105, 0
        %vm5107 = vcmp.lt.s32.totalorder %v5105, 256
        %vm5108 = vmand %vm5106, %vm5107
        %5109 = vst.msk [vmem:[%s358] sm:$0x3] %vm5108, %v5103
        %s5110 = sand.u32 %s229, 1
        %s5111 = scalar_lea.sflag [#allocation5], %s5110
        %s5112 = sand.u32 %s229, 1
        %s5113 = smul.addr %s5112, 2
        %s5114 = scalar_lea.vmem [#allocation8], %s5113
        // Predicated region
        $region65: #{tpu_custom_call.1} parent=55 // pred_check
          %p5115 = pneg %p239
        $region66: #{tpu_custom_call.1} parent=55 // pred_check_branch
          %5117 = sbr.rel (%p5115) target = $region68
        $region67: #{tpu_custom_call.1} parent=55 // pred_region
          %s5118 = smul.u32 2, %s27
          %s5120 = ssub.s32 32, 32
          %5121 = vsyncadd %s5111, %s5120
          %s5122 = smul.addr %s5118, 16
          %s5123 = scalar_lea.hbm %s9, %s5122
          %s5125 = sshll.u32 %s5114, 4
          %s5126 = int_to_ptr.vmem [resolvable:$true] %s5125
          %5128 = dma.vmem_to_hbm [thread:$0]  %s5126, 32, %s5123, %s5111
        $region68: #{tpu_custom_call.1} parent=55 // pred_fallthru
          _
      $region56: #{tpu_custom_call.1} parent=5 // pred_fallthru
        _
      %p5129 = scmp.le.s32.totalorder 2, %s22
      // Predicated region
      $region69: #{tpu_custom_call.1} parent=5 // pred_check
        %p5130 = pneg %p5129
      $region70: #{tpu_custom_call.1} parent=5 // pred_check_branch
        %5132 = sbr.rel (%p5130) target = $region72
      $region71: #{tpu_custom_call.1} parent=5 // pred_region
        %s5133 = ssub.s32 %s22, 2
        // Predicated region
        $region73: #{tpu_custom_call.1} parent=71 // pred_check
          %p5134 = pneg %p245
        $region74: #{tpu_custom_call.1} parent=71 // pred_check_branch
          %5136 = sbr.rel (%p5134) target = $region76
        $region75: #{tpu_custom_call.1} parent=71 // pred_region
          %s5137 = sand.u32 %s230, 1
          %s5138 = scalar_lea.sflag [#allocation5], %s5137
          %s5139 = sand.u32 %s230, 1
          %s5140 = smul.addr %s5139, 2
          %s5141 = scalar_lea.vmem [#allocation8], %s5140
          %5142 = dma.done %s5138, 32
        $region76: #{tpu_custom_call.1} parent=71 // pred_fallthru
          _
      $region72: #{tpu_custom_call.1} parent=5 // pred_fallthru
        _
    $region6: #{tpu_custom_call.1} parent=1 // loop_footer
      %s26 = sadd.s32 1, %s22
    $region7: #{tpu_custom_call.1} parent=1 // loop_footer_branch
      %21 = sbr.rel target = $region3
    $region8: #{tpu_custom_call.1} parent=1 // loop_exit
      _
    %5143 = vsyncpa [#allocation4], 1
    %s5144 = scalar_lea.sflag [#allocation4], 1
    %5145 = vsyncpa %s5144, 1
    %5146 = vsyncpa [#allocation7], 1
    %5147 = vsyncpa [#allocation5], 1
    %s5148 = scalar_lea.sflag [#allocation5], 1
    %5149 = vsyncpa %s5148, 1

</llo_original>
